<compile_context>
chip_gen: v5e
topology: v5e:2x2
jax: 0.10.0
libtpu: 0.0.40
codegen_flags: <defaults>
</compile_context>

<pallas_src>
import functools
import math

import jax
import jax.numpy as jnp
import numpy as np
from jax.experimental import pallas as pl
from jax.experimental.pallas import tpu as pltpu


def _round_up(v, m):
    return (v + m - 1) // m * m


# --------------------------------------------------------------------------------------
# Glue: dense normalized adjacency, exactly mirroring gcn_conv()'s SparseTensor:
#   A[col_e, row_e] = 1/sqrt(d[col_e]) * 1/sqrt(d[row_e]),  d = degree(col, N)
# Built directly at the padded size and in the matmul dtype (padding rows/cols stay 0).
# TODO(synk): the adjacency is still materialized dense (O(N^2) HBM); a true edge-list /
# CSR SpMM (and fp8/int8 A) would be the next step for very large graphs.
# --------------------------------------------------------------------------------------
def build_gcn_adj(edge_index, n_nodes, n_pad, dtype=jnp.bfloat16):
    row, col = edge_index[0], edge_index[1]
    d = jnp.zeros((n_nodes,), jnp.float32).at[col].add(1.0)          # degree(col, N)
    d_norm_in = jnp.sqrt(1.0 / d[col])
    d_norm_out = jnp.sqrt(1.0 / d[row])
    value = jnp.ones_like(row, dtype=jnp.float32) * d_norm_in * d_norm_out
    value = jnp.nan_to_num(value, nan=0.0, posinf=0.0, neginf=0.0)
    # SparseTensor(row=col, col=row, value=value) -> dense A with A[col, row] = value
    adj = jnp.zeros((n_pad, n_pad), dtype).at[col, row].add(value.astype(dtype))
    return adj


# --------------------------------------------------------------------------------------
# Pallas kernel: grid = (row_tiles, col_steps); contraction axis last ("arbitrary").
#   j < cnt[i]      : hi_acc += A[i, bc[i,j]] @ x[bc[i,j]]          (bf16 MXU, f32 acc)
#   j == last step  : out_all = [hi | x_rows] @ W_all   (one 256-deep MXU contraction)
#                     out     = x_rows + sum_k e[:, k] * out_all[:, k-th O block]
# --------------------------------------------------------------------------------------
def _canet_gcn_kernel(bc_ref, cnt_ref, a_ref, xc_ref, xr_ref, e_ref, w_ref, o_ref,
                      hi_acc, *, k_hops, o_pad, residual):
    i = pl.program_id(0)
    j = pl.program_id(1)

    @pl.when(j == 0)
    def _init():
        hi_acc[...] = jnp.zeros_like(hi_acc)

    # Only non-empty A blocks contribute; empty / repeated padding steps are skipped.
    @pl.when(j < cnt_ref[i])
    def _accum():
        hi_acc[...] += jnp.dot(a_ref[...], xc_ref[...],
                               preferred_element_type=jnp.float32)    # (TM, F_pad) f32

    @pl.when(j == pl.num_programs(1) - 1)
    def _finalize():
        xr = xr_ref[...]                                              # (TM, F_pad) f32
        lhs = jnp.concatenate(
            [hi_acc[...].astype(jnp.bfloat16), xr.astype(jnp.bfloat16)], axis=1
        )                                                             # (TM, 2*F_pad) bf16
        out_all = jnp.dot(lhs, w_ref[...],
                          preferred_element_type=jnp.float32)         # (TM, K*O_pad) f32
        e = e_ref[...]                                                # (TM, K) f32
        acc = xr if residual else jnp.zeros((xr.shape[0], o_pad), jnp.float32)
        for k in range(k_hops):   # K tiny & static -> unrolled, 128-lane-aligned slices
            acc = acc + e[:, k:k + 1] * out_all[:, k * o_pad:(k + 1) * o_pad]
        o_ref[...] = acc.astype(o_ref.dtype)


def canet_conv_gcn(x, edge_index, e, weights, *, residual=True):
    """Forward pass of CaNetConv (gcn backbone, variant=False).

    Note: requires a concrete edge_index (block-sparsity metadata is built host-side),
    so the wrapper itself is not meant to be jitted. TODO(synk): move the per-row-tile
    block lists inside the traced graph if jit-ability is required.
    """
    n, f = x.shape
    k_hops, two_f, out_f = weights.shape
    assert two_f == 2 * f
    assert (not residual) or (out_f == f), "residual requires in_features == out_features"

    f_pad = _round_up(f, 128)
    o_pad = _round_up(out_f, 128)

    # Per-generation tile / VMEM budget.
    try:
        vmem_cap = int(pltpu.get_tpu_info().vmem_capacity_bytes)
    except Exception:
        vmem_cap = 64 << 20                      # conservative (v7x) fallback
    if vmem_cap >= (100 << 20):                  # v5e / v6e: 128 MiB per TC
        tile_cap, vmem_cap_limit = 1024, 100 << 20
    else:                                        # v7x: 64 MiB per TC
        tile_cap, vmem_cap_limit = 512, 56 << 20

    tm = min(tile_cap, _round_up(n, 128))
    tn = tm
    n_pad = _round_up(n, tm)
    nbr, nbc = n_pad // tm, n_pad // tn

    adj = build_gcn_adj(edge_index, n, n_pad, dtype=jnp.bfloat16)   # (N_pad, N_pad) bf16

    # Host-side block-sparsity metadata (O(E)). A[col_e, row_e] != 0, so the A-row block
    # of an edge is col_e // tm and its A-col block is row_e // tn.
    ei = np.asarray(edge_index)
    blk = np.zeros((nbr, nbc), bool)
    if ei.shape[1] > 0:
        blk[ei[1] // tm, ei[0] // tn] = True
    cnt = blk.sum(axis=1).astype(np.int32)
    n_steps = max(int(cnt.max()), 1)
    bc = np.zeros((nbr, n_steps), np.int32)
    for r in range(nbr):
        nz = np.flatnonzero(blk[r])
        if nz.size:
            bc[r, :nz.size] = nz
            bc[r, nz.size:] = nz[-1]             # repeats -> revisit-skipped DMAs
    nnz_blocks = max(int(blk.sum()), 1)
    bc_flat = jnp.asarray(bc.reshape(-1))        # 1-D SMEM (avoids 2-D SMEM padding)
    cnt_j = jnp.asarray(cnt)

    xpad = jnp.pad(x.astype(jnp.float32), ((0, n_pad - n), (0, f_pad - f)))
    xb = xpad.astype(jnp.bfloat16)               # column blocks, RHS of A @ x (bf16)
    xr = xpad                                    # f32 rows for residual / concat
    e_pad = jnp.pad(e.astype(jnp.float32), ((0, n_pad - n), (0, 0)))  # (N_pad, K)

    # Stack the K hop weights lane-dense along 2*F: rows [0,f) multiply hi, rows
    # [f_pad, f_pad+f) multiply x -> a single (2*F_pad, K*O_pad) bf16 operand.
    w = jnp.transpose(weights.astype(jnp.float32), (1, 0, 2))        # (2F, K, O)
    pad3 = ((0, f_pad - f), (0, 0), (0, o_pad - out_f))
    w_hi = jnp.pad(w[:f], pad3).reshape(f_pad, k_hops * o_pad)
    w_x = jnp.pad(w[f:], pad3).reshape(f_pad, k_hops * o_pad)
    w_all = jnp.concatenate([w_hi, w_x], axis=0).astype(jnp.bfloat16)  # (2*F_pad, K*O_pad)

    # Itemized VMEM budget (+ headroom), capped per generation.
    vmem_bytes = (
        2 * tm * tn * 2                        # A tiles (bf16, double-buffered)
        + 2 * tn * f_pad * 2                   # x column blocks (bf16)
        + 2 * tm * f_pad * 4                   # x residual rows (f32)
        + 2 * tm * 128 * 4                     # e rows (lane-padded internally)
        + 2 * 2 * f_pad * k_hops * o_pad * 2   # stacked weights (counted double-buffered)
        + 2 * tm * o_pad * 4                   # output tiles
        + tm * f_pad * 4                       # hi accumulator scratch
    )
    vmem_limit = int(min(vmem_bytes + (16 << 20), vmem_cap_limit))

    cost = pl.CostEstimate(
        flops=int(2 * nnz_blocks * tm * tn * f_pad
                  + 2 * n_pad * (2 * f_pad) * (k_hops * o_pad)),
        transcendentals=0,
        bytes_accessed=int(nnz_blocks * tm * tn * 2 + nnz_blocks * tn * f_pad * 2
                           + n_pad * f_pad * 6 + n_pad * k_hops * 4
                           + 2 * f_pad * k_hops * o_pad * 2 + n_pad * o_pad * 4),
    )

    kernel = functools.partial(_canet_gcn_kernel, k_hops=k_hops, o_pad=o_pad,
                               residual=residual)

    def run(w_spec):
        return pl.pallas_call(
            kernel,
            out_shape=jax.ShapeDtypeStruct((n_pad, o_pad), x.dtype),
            grid_spec=pltpu.PrefetchScalarGridSpec(
                num_scalar_prefetch=2,
                grid=(nbr, n_steps),
                in_specs=[
                    # A (TM, TN) tile: walk only the non-empty column blocks of row i.
                    pl.BlockSpec((tm, tn), lambda i, j, bc, cnt: (i, bc[i * n_steps + j])),
                    # matching x column block (bf16 RHS of A @ x)
                    pl.BlockSpec((tn, f_pad), lambda i, j, bc, cnt: (bc[i * n_steps + j], 0)),
                    # f32 x rows for residual / concat
                    pl.BlockSpec((tm, f_pad), lambda i, j, bc, cnt: (i, 0)),
                    # e rows
                    pl.BlockSpec((tm, k_hops), lambda i, j, bc, cnt: (i, 0)),
                    # stacked weights (grid-invariant)
                    w_spec,
                ],
                out_specs=pl.BlockSpec((tm, o_pad), lambda i, j, bc, cnt: (i, 0)),
                scratch_shapes=[pltpu.VMEM((tm, f_pad), jnp.float32)],
            ),
            compiler_params=pltpu.CompilerParams(
                dimension_semantics=("parallel", "arbitrary"),   # row tiles shard on v7x TCs
                vmem_limit_bytes=vmem_limit,
            ),
            cost_estimate=cost,
        )(bc_flat, cnt_j, adj, xb, xr, e_pad, w_all)

    w_shape = (2 * f_pad, k_hops * o_pad)
    w_map = lambda i, j, bc, cnt: (0, 0)
    try:
        # Single-buffer the grid-invariant weight slab (saves one VMEM copy).
        out_pad = run(pl.BlockSpec(w_shape, w_map, pipeline_mode=pl.Buffered(1)))
    except Exception:
        # pipeline_mode / Buffered(1) unsupported on this JAX version -> default buffering.
        out_pad = run(pl.BlockSpec(w_shape, w_map))

    return out_pad[:n, :out_f]


# Pure-JAX reference (mirrors the PyTorch forward). With bf16_inputs=True it applies the
# same bf16 rounding of the matmul operands / adjacency as the kernel (f32 accumulation).
def canet_conv_gcn_ref(x, edge_index, e, weights, *, residual=True, bf16_inputs=False):
    def rd(a):
        a = a.astype(jnp.float32)
        return a.astype(jnp.bfloat16).astype(jnp.float32) if bf16_inputs else a

    adj_dtype = jnp.bfloat16 if bf16_inputs else jnp.float32
    adj = build_gcn_adj(edge_index, x.shape[0], x.shape[0], dtype=adj_dtype)
    hi = adj.astype(jnp.float32) @ rd(x)
    hcat = jnp.concatenate([rd(hi), rd(x)], axis=1)                 # (N, 2F)
    outs = jnp.einsum("nf,kfo->nko", hcat, rd(weights))             # matmul + transpose(1,0)
    out = jnp.sum(e[:, :, None] * outs, axis=1)                     # es * outputs, sum over K
    if residual:
        out = out + x
    return out


if __name__ == "__main__":
    N, F, K = 16, 32, 4
    OUT = F  # residual=True requires in_features == out_features
    E = 48

    key = jax.random.PRNGKey(0)
    kx, ke, ksrc, kdst, kw = jax.random.split(key, 5)

    x = jax.random.normal(kx, (N, F), jnp.float32)
    e = jax.nn.softmax(jax.random.normal(ke, (N, K), jnp.float32), axis=1)
    src = jax.random.randint(ksrc, (E,), 0, N)
    dst = jax.random.randint(kdst, (E,), 0, N)
    edge_index = jnp.stack([src, dst]).astype(jnp.int32)

    # Deterministic parameter init matching reset_parameters(): U(-stdv, stdv).
    stdv = 1.0 / math.sqrt(OUT)
    weights = jax.random.uniform(kw, (K, 2 * F, OUT), jnp.float32, minval=-stdv, maxval=stdv)

    out = canet_conv_gcn(x, edge_index, e, weights)
    jax.block_until_ready(out)
    assert out.shape == (N, OUT)

    # Tight check vs a reference that applies the same bf16 operand rounding (f32 accumulate).
    ref_bf = canet_conv_gcn_ref(x, edge_index, e, weights, bf16_inputs=True)
    assert jnp.allclose(out, ref_bf, atol=2e-3, rtol=2e-3), "mismatch vs bf16-matched reference"

    # Loose sanity check vs the pure-f32 reference (only bf16 operand rounding differs).
    ref_f32 = canet_conv_gcn_ref(x, edge_index, e, weights, bf16_inputs=False)
    assert jnp.allclose(out, ref_f32, atol=1e-1, rtol=1e-1), "mismatch vs f32 reference"

    print("KERNEL_OK")
</pallas_src>

<mosaic_0001>
module attributes {stable_mosaic.version = 11 : i64} {
  func.func @_canet_gcn_kernel(%arg0: i32, %arg1: i32, %arg2: memref<1xi32, #tpu.memory_space<smem>>, %arg3: memref<1xi32, #tpu.memory_space<smem>>, %arg4: memref<128x128xbf16, #tpu.memory_space<vmem>>, %arg5: memref<128x128xbf16, #tpu.memory_space<vmem>>, %arg6: memref<128x128xf32, #tpu.memory_space<vmem>>, %arg7: memref<128x4xf32, #tpu.memory_space<vmem>>, %arg8: memref<256x512xbf16, #tpu.memory_space<vmem>>, %arg9: memref<128x128xf32, #tpu.memory_space<vmem>>, %arg10: memref<128x128xf32, #tpu.memory_space<vmem>>) attributes {dimension_semantics = [#tpu.dimension_semantics<parallel>, #tpu.dimension_semantics<arbitrary>], iteration_bounds = array<i64: 1, 1>, scalar_prefetch = 2 : i64, scratch_operands = 1 : i64, tpu.core_type = #tpu.core_type<tc>, window_params = [{transform_indices = @transform_0, window_bounds = array<i64: 128, 128>}, {transform_indices = @transform_1, window_bounds = array<i64: 128, 128>}, {transform_indices = @transform_2, window_bounds = array<i64: 128, 128>}, {transform_indices = @transform_3, window_bounds = array<i64: 128, 4>}, {pipeline_mode = #tpu.pipeline_mode<synchronous>, transform_indices = @transform_4, window_bounds = array<i64: 256, 512>}, {transform_indices = @transform_5, window_bounds = array<i64: 128, 128>}]} {
    %c0_i32 = arith.constant 0 : i32
    %0 = arith.cmpi eq, %arg1, %c0_i32 : i32
    %1 = arith.extui %0 : i1 to i32
    %c0_i32_0 = arith.constant 0 : i32
    %2 = arith.cmpi ne, %1, %c0_i32_0 : i32
    scf.if %2 {
      %cst = arith.constant 0.000000e+00 : f32
      %11 = vector.broadcast %cst : f32 to vector<128x128xf32>
      %c0 = arith.constant 0 : index
      %c0_4 = arith.constant 0 : index
      %12 = vector.load %arg10[%c0, %c0_4] : memref<128x128xf32, #tpu.memory_space<vmem>>, vector<128x128xf32>
      tpu.vector_store %arg10[%c0, %c0_4], %11 {strides = array<i32>} : memref<128x128xf32, #tpu.memory_space<vmem>>, vector<128x128xf32>,
    } else {
    }
    %3 = arith.index_cast %arg0 : i32 to index
    %4 = memref.load %arg3[%3] : memref<1xi32, #tpu.memory_space<smem>>
    %5 = arith.cmpi slt, %arg1, %4 : i32
    %6 = arith.extui %5 : i1 to i32
    %c0_i32_1 = arith.constant 0 : i32
    %7 = arith.cmpi ne, %6, %c0_i32_1 : i32
    scf.if %7 {
      %c0 = arith.constant 0 : index
      %c0_4 = arith.constant 0 : index
      %11 = vector.load %arg10[%c0, %c0_4] : memref<128x128xf32, #tpu.memory_space<vmem>>, vector<128x128xf32>
      %c0_5 = arith.constant 0 : index
      %c0_6 = arith.constant 0 : index
      %12 = vector.load %arg4[%c0_5, %c0_6] : memref<128x128xbf16, #tpu.memory_space<vmem>>, vector<128x128xbf16>
      %c0_7 = arith.constant 0 : index
      %c0_8 = arith.constant 0 : index
      %13 = vector.load %arg5[%c0_7, %c0_8] : memref<128x128xbf16, #tpu.memory_space<vmem>>, vector<128x128xbf16>
      %cst = arith.constant dense<0.000000e+00> : vector<128x128xf32>
      %14 = tpu.matmul %12, %13, %cst {dimension_numbers = #tpu.dot_dimension_numbers<[1], [0], [0], [1], [0, 0, 1, 1], [], []>} : vector<128x128xbf16>, vector<128x128xbf16>, vector<128x128xf32> -> vector<128x128xf32>
      %15 = arith.addf %11, %14 : vector<128x128xf32>
      %c0_9 = arith.constant 0 : index
      %c0_10 = arith.constant 0 : index
      %16 = vector.load %arg10[%c0_9, %c0_10] : memref<128x128xf32, #tpu.memory_space<vmem>>, vector<128x128xf32>
      tpu.vector_store %arg10[%c0_9, %c0_10], %15 {strides = array<i32>} : memref<128x128xf32, #tpu.memory_space<vmem>>, vector<128x128xf32>,
    } else {
    }
    %c0_i32_2 = arith.constant 0 : i32
    %8 = arith.cmpi eq, %arg1, %c0_i32_2 : i32
    %9 = arith.extui %8 : i1 to i32
    %c0_i32_3 = arith.constant 0 : i32
    %10 = arith.cmpi ne, %9, %c0_i32_3 : i32
    scf.if %10 {
      %c0 = arith.constant 0 : index
      %c0_4 = arith.constant 0 : index
      %11 = vector.load %arg6[%c0, %c0_4] : memref<128x128xf32, #tpu.memory_space<vmem>>, vector<128x128xf32>
      %c0_5 = arith.constant 0 : index
      %c0_6 = arith.constant 0 : index
      %12 = vector.load %arg10[%c0_5, %c0_6] : memref<128x128xf32, #tpu.memory_space<vmem>>, vector<128x128xf32>
      %13 = arith.truncf %12 : vector<128x128xf32> to vector<128x128xbf16>
      %14 = arith.truncf %11 : vector<128x128xf32> to vector<128x128xbf16>
      %15 = tpu.concatenate %13, %14 in 1 : vector<128x128xbf16>, vector<128x128xbf16> -> vector<128x256xbf16>
      %c0_7 = arith.constant 0 : index
      %c0_8 = arith.constant 0 : index
      %16 = vector.load %arg8[%c0_7, %c0_8] : memref<256x512xbf16, #tpu.memory_space<vmem>>, vector<256x512xbf16>
      %cst = arith.constant dense<0.000000e+00> : vector<128x512xf32>
      %17 = tpu.matmul %15, %16, %cst {dimension_numbers = #tpu.dot_dimension_numbers<[1], [0], [0], [1], [0, 0, 1, 1], [], []>} : vector<128x256xbf16>, vector<256x512xbf16>, vector<128x512xf32> -> vector<128x512xf32>
      %c0_9 = arith.constant 0 : index
      %c0_10 = arith.constant 0 : index
      %18 = vector.load %arg7[%c0_9, %c0_10] : memref<128x4xf32, #tpu.memory_space<vmem>>, vector<128x4xf32>
      %19 = vector.extract_strided_slice %18 {offsets = [0, 0], sizes = [128, 1], strides = [1, 1]} : vector<128x4xf32> to vector<128x1xf32>
      %20 = vector.extract_strided_slice %17 {offsets = [0, 0], sizes = [128, 128], strides = [1, 1]} : vector<128x512xf32> to vector<128x128xf32>
      %21 = vector.broadcast %19 : vector<128x1xf32> to vector<128x128xf32>
      %22 = arith.mulf %21, %20 : vector<128x128xf32>
      %23 = arith.addf %11, %22 : vector<128x128xf32>
      %24 = vector.extract_strided_slice %18 {offsets = [0, 1], sizes = [128, 1], strides = [1, 1]} : vector<128x4xf32> to vector<128x1xf32>
      %25 = vector.extract_strided_slice %17 {offsets = [0, 128], sizes = [128, 128], strides = [1, 1]} : vector<128x512xf32> to vector<128x128xf32>
      %26 = vector.broadcast %24 : vector<128x1xf32> to vector<128x128xf32>
      %27 = arith.mulf %26, %25 : vector<128x128xf32>
      %28 = arith.addf %23, %27 : vector<128x128xf32>
      %29 = vector.extract_strided_slice %18 {offsets = [0, 2], sizes = [128, 1], strides = [1, 1]} : vector<128x4xf32> to vector<128x1xf32>
      %30 = vector.extract_strided_slice %17 {offsets = [0, 256], sizes = [128, 128], strides = [1, 1]} : vector<128x512xf32> to vector<128x128xf32>
      %31 = vector.broadcast %29 : vector<128x1xf32> to vector<128x128xf32>
      %32 = arith.mulf %31, %30 : vector<128x128xf32>
      %33 = arith.addf %28, %32 : vector<128x128xf32>
      %34 = vector.extract_strided_slice %18 {offsets = [0, 3], sizes = [128, 1], strides = [1, 1]} : vector<128x4xf32> to vector<128x1xf32>
      %35 = vector.extract_strided_slice %17 {offsets = [0, 384], sizes = [128, 128], strides = [1, 1]} : vector<128x512xf32> to vector<128x128xf32>
      %36 = vector.broadcast %34 : vector<128x1xf32> to vector<128x128xf32>
      %37 = arith.mulf %36, %35 : vector<128x128xf32>
      %38 = arith.addf %33, %37 : vector<128x128xf32>
      %c0_11 = arith.constant 0 : index
      %c0_12 = arith.constant 0 : index
      %39 = vector.load %arg9[%c0_11, %c0_12] : memref<128x128xf32, #tpu.memory_space<vmem>>, vector<128x128xf32>
      tpu.vector_store %arg9[%c0_11, %c0_12], %38 {strides = array<i32>} : memref<128x128xf32, #tpu.memory_space<vmem>>, vector<128x128xf32>,
    } else {
    }
    return
  }
  func.func @transform_0(%arg0: i32, %arg1: i32, %arg2: memref<1xi32, #tpu.memory_space<smem>>, %arg3: memref<1xi32, #tpu.memory_space<smem>>) -> (i32, i32) {
    %c1_i32 = arith.constant 1 : i32
    %0 = arith.muli %arg0, %c1_i32 : i32
    %1 = arith.addi %0, %arg1 : i32
    %2 = arith.index_cast %1 : i32 to index
    %3 = memref.load %arg2[%2] : memref<1xi32, #tpu.memory_space<smem>>
    %c0_i32 = arith.constant 0 : i32
    return %arg0, %3 : i32, i32
  }
  func.func @transform_1(%arg0: i32, %arg1: i32, %arg2: memref<1xi32, #tpu.memory_space<smem>>, %arg3: memref<1xi32, #tpu.memory_space<smem>>) -> (i32, i32) {
    %c1_i32 = arith.constant 1 : i32
    %0 = arith.muli %arg0, %c1_i32 : i32
    %1 = arith.addi %0, %arg1 : i32
    %2 = arith.index_cast %1 : i32 to index
    %3 = memref.load %arg2[%2] : memref<1xi32, #tpu.memory_space<smem>>
    %c0_i32 = arith.constant 0 : i32
    %c0_i32_0 = arith.constant 0 : i32
    return %3, %c0_i32 : i32, i32
  }
  func.func @transform_2(%arg0: i32, %arg1: i32, %arg2: memref<1xi32, #tpu.memory_space<smem>>, %arg3: memref<1xi32, #tpu.memory_space<smem>>) -> (i32, i32) {
    %c0_i32 = arith.constant 0 : i32
    %c0_i32_0 = arith.constant 0 : i32
    return %arg0, %c0_i32 : i32, i32
  }
  func.func @transform_3(%arg0: i32, %arg1: i32, %arg2: memref<1xi32, #tpu.memory_space<smem>>, %arg3: memref<1xi32, #tpu.memory_space<smem>>) -> (i32, i32) {
    %c0_i32 = arith.constant 0 : i32
    %c0_i32_0 = arith.constant 0 : i32
    return %arg0, %c0_i32 : i32, i32
  }
  func.func @transform_4(%arg0: i32, %arg1: i32, %arg2: memref<1xi32, #tpu.memory_space<smem>>, %arg3: memref<1xi32, #tpu.memory_space<smem>>) -> (i32, i32) {
    %c0_i32 = arith.constant 0 : i32
    %c0_i32_0 = arith.constant 0 : i32
    %c0_i32_1 = arith.constant 0 : i32
    return %c0_i32, %c0_i32_0 : i32, i32
  }
  func.func @transform_5(%arg0: i32, %arg1: i32, %arg2: memref<1xi32, #tpu.memory_space<smem>>, %arg3: memref<1xi32, #tpu.memory_space<smem>>) -> (i32, i32) {
    %c0_i32 = arith.constant 0 : i32
    %c0_i32_0 = arith.constant 0 : i32
    return %arg0, %c0_i32 : i32, i32
  }
}

module attributes {stable_mosaic.version = 11 : i64} {
  func.func @_canet_gcn_kernel(%arg0: i32, %arg1: i32, %arg2: memref<1xi32, #tpu.memory_space<smem>>, %arg3: memref<1xi32, #tpu.memory_space<smem>>, %arg4: memref<128x128xbf16, #tpu.memory_space<vmem>>, %arg5: memref<128x128xbf16, #tpu.memory_space<vmem>>, %arg6: memref<128x128xf32, #tpu.memory_space<vmem>>, %arg7: memref<128x4xf32, #tpu.memory_space<vmem>>, %arg8: memref<256x512xbf16, #tpu.memory_space<vmem>>, %arg9: memref<128x128xf32, #tpu.memory_space<vmem>>, %arg10: memref<128x128xf32, #tpu.memory_space<vmem>>) attributes {dimension_semantics = [#tpu.dimension_semantics<parallel>, #tpu.dimension_semantics<arbitrary>], iteration_bounds = array<i64: 1, 1>, scalar_prefetch = 2 : i64, scratch_operands = 1 : i64, tpu.core_type = #tpu.core_type<tc>, window_params = [{transform_indices = @transform_0, window_bounds = array<i64: 128, 128>}, {transform_indices = @transform_1, window_bounds = array<i64: 128, 128>}, {transform_indices = @transform_2, window_bounds = array<i64: 128, 128>}, {transform_indices = @transform_3, window_bounds = array<i64: 128, 4>}, {pipeline_mode = #tpu.pipeline_mode<synchronous>, transform_indices = @transform_4, window_bounds = array<i64: 256, 512>}, {transform_indices = @transform_5, window_bounds = array<i64: 128, 128>}]} {
    %c0_i32 = arith.constant 0 : i32
    %0 = arith.cmpi eq, %arg1, %c0_i32 : i32
    %1 = arith.extui %0 : i1 to i32
    %c0_i32_0 = arith.constant 0 : i32
    %2 = arith.cmpi ne, %1, %c0_i32_0 : i32
    scf.if %2 {
      %cst = arith.constant 0.000000e+00 : f32
      %11 = vector.broadcast %cst : f32 to vector<128x128xf32>
      %c0 = arith.constant 0 : index
      %c0_4 = arith.constant 0 : index
      %12 = vector.load %arg10[%c0, %c0_4] : memref<128x128xf32, #tpu.memory_space<vmem>>, vector<128x128xf32>
      tpu.vector_store %arg10[%c0, %c0_4], %11 {strides = array<i32>} : memref<128x128xf32, #tpu.memory_space<vmem>>, vector<128x128xf32>,
    } else {
    }
    %3 = arith.index_cast %arg0 : i32 to index
    %4 = memref.load %arg3[%3] : memref<1xi32, #tpu.memory_space<smem>>
    %5 = arith.cmpi slt, %arg1, %4 : i32
    %6 = arith.extui %5 : i1 to i32
    %c0_i32_1 = arith.constant 0 : i32
    %7 = arith.cmpi ne, %6, %c0_i32_1 : i32
    scf.if %7 {
      %c0 = arith.constant 0 : index
      %c0_4 = arith.constant 0 : index
      %11 = vector.load %arg10[%c0, %c0_4] : memref<128x128xf32, #tpu.memory_space<vmem>>, vector<128x128xf32>
      %c0_5 = arith.constant 0 : index
      %c0_6 = arith.constant 0 : index
      %12 = vector.load %arg4[%c0_5, %c0_6] : memref<128x128xbf16, #tpu.memory_space<vmem>>, vector<128x128xbf16>
      %c0_7 = arith.constant 0 : index
      %c0_8 = arith.constant 0 : index
      %13 = vector.load %arg5[%c0_7, %c0_8] : memref<128x128xbf16, #tpu.memory_space<vmem>>, vector<128x128xbf16>
      %cst = arith.constant dense<0.000000e+00> : vector<128x128xf32>
      %14 = tpu.matmul %12, %13, %cst {dimension_numbers = #tpu.dot_dimension_numbers<[1], [0], [0], [1], [0, 0, 1, 1], [], []>} : vector<128x128xbf16>, vector<128x128xbf16>, vector<128x128xf32> -> vector<128x128xf32>
      %15 = arith.addf %11, %14 : vector<128x128xf32>
      %c0_9 = arith.constant 0 : index
      %c0_10 = arith.constant 0 : index
      %16 = vector.load %arg10[%c0_9, %c0_10] : memref<128x128xf32, #tpu.memory_space<vmem>>, vector<128x128xf32>
      tpu.vector_store %arg10[%c0_9, %c0_10], %15 {strides = array<i32>} : memref<128x128xf32, #tpu.memory_space<vmem>>, vector<128x128xf32>,
    } else {
    }
    %c0_i32_2 = arith.constant 0 : i32
    %8 = arith.cmpi eq, %arg1, %c0_i32_2 : i32
    %9 = arith.extui %8 : i1 to i32
    %c0_i32_3 = arith.constant 0 : i32
    %10 = arith.cmpi ne, %9, %c0_i32_3 : i32
    scf.if %10 {
      %c0 = arith.constant 0 : index
      %c0_4 = arith.constant 0 : index
      %11 = vector.load %arg6[%c0, %c0_4] : memref<128x128xf32, #tpu.memory_space<vmem>>, vector<128x128xf32>
      %c0_5 = arith.constant 0 : index
      %c0_6 = arith.constant 0 : index
      %12 = vector.load %arg10[%c0_5, %c0_6] : memref<128x128xf32, #tpu.memory_space<vmem>>, vector<128x128xf32>
      %13 = arith.truncf %12 : vector<128x128xf32> to vector<128x128xbf16>
      %14 = arith.truncf %11 : vector<128x128xf32> to vector<128x128xbf16>
      %15 = tpu.concatenate %13, %14 in 1 : vector<128x128xbf16>, vector<128x128xbf16> -> vector<128x256xbf16>
      %c0_7 = arith.constant 0 : index
      %c0_8 = arith.constant 0 : index
      %16 = vector.load %arg8[%c0_7, %c0_8] : memref<256x512xbf16, #tpu.memory_space<vmem>>, vector<256x512xbf16>
      %cst = arith.constant dense<0.000000e+00> : vector<128x512xf32>
      %17 = tpu.matmul %15, %16, %cst {dimension_numbers = #tpu.dot_dimension_numbers<[1], [0], [0], [1], [0, 0, 1, 1], [], []>} : vector<128x256xbf16>, vector<256x512xbf16>, vector<128x512xf32> -> vector<128x512xf32>
      %c0_9 = arith.constant 0 : index
      %c0_10 = arith.constant 0 : index
      %18 = vector.load %arg7[%c0_9, %c0_10] : memref<128x4xf32, #tpu.memory_space<vmem>>, vector<128x4xf32>
      %19 = vector.extract_strided_slice %18 {offsets = [0, 0], sizes = [128, 1], strides = [1, 1]} : vector<128x4xf32> to vector<128x1xf32>
      %20 = vector.extract_strided_slice %17 {offsets = [0, 0], sizes = [128, 128], strides = [1, 1]} : vector<128x512xf32> to vector<128x128xf32>
      %21 = vector.broadcast %19 : vector<128x1xf32> to vector<128x128xf32>
      %22 = arith.mulf %21, %20 : vector<128x128xf32>
      %23 = arith.addf %11, %22 : vector<128x128xf32>
      %24 = vector.extract_strided_slice %18 {offsets = [0, 1], sizes = [128, 1], strides = [1, 1]} : vector<128x4xf32> to vector<128x1xf32>
      %25 = vector.extract_strided_slice %17 {offsets = [0, 128], sizes = [128, 128], strides = [1, 1]} : vector<128x512xf32> to vector<128x128xf32>
      %26 = vector.broadcast %24 : vector<128x1xf32> to vector<128x128xf32>
      %27 = arith.mulf %26, %25 : vector<128x128xf32>
      %28 = arith.addf %23, %27 : vector<128x128xf32>
      %29 = vector.extract_strided_slice %18 {offsets = [0, 2], sizes = [128, 1], strides = [1, 1]} : vector<128x4xf32> to vector<128x1xf32>
      %30 = vector.extract_strided_slice %17 {offsets = [0, 256], sizes = [128, 128], strides = [1, 1]} : vector<128x512xf32> to vector<128x128xf32>
      %31 = vector.broadcast %29 : vector<128x1xf32> to vector<128x128xf32>
      %32 = arith.mulf %31, %30 : vector<128x128xf32>
      %33 = arith.addf %28, %32 : vector<128x128xf32>
      %34 = vector.extract_strided_slice %18 {offsets = [0, 3], sizes = [128, 1], strides = [1, 1]} : vector<128x4xf32> to vector<128x1xf32>
      %35 = vector.extract_strided_slice %17 {offsets = [0, 384], sizes = [128, 128], strides = [1, 1]} : vector<128x512xf32> to vector<128x128xf32>
      %36 = vector.broadcast %34 : vector<128x1xf32> to vector<128x128xf32>
      %37 = arith.mulf %36, %35 : vector<128x128xf32>
      %38 = arith.addf %33, %37 : vector<128x128xf32>
      %c0_11 = arith.constant 0 : index
      %c0_12 = arith.constant 0 : index
      %39 = vector.load %arg9[%c0_11, %c0_12] : memref<128x128xf32, #tpu.memory_space<vmem>>, vector<128x128xf32>
      tpu.vector_store %arg9[%c0_11, %c0_12], %38 {strides = array<i32>} : memref<128x128xf32, #tpu.memory_space<vmem>>, vector<128x128xf32>,
    } else {
    }
    return
  }
  func.func @transform_0(%arg0: i32, %arg1: i32, %arg2: memref<1xi32, #tpu.memory_space<smem>>, %arg3: memref<1xi32, #tpu.memory_space<smem>>) -> (i32, i32) {
    %c1_i32 = arith.constant 1 : i32
    %0 = arith.muli %arg0, %c1_i32 : i32
    %1 = arith.addi %0, %arg1 : i32
    %2 = arith.index_cast %1 : i32 to index
    %3 = memref.load %arg2[%2] : memref<1xi32, #tpu.memory_space<smem>>
    %c0_i32 = arith.constant 0 : i32
    return %arg0, %3 : i32, i32
  }
  func.func @transform_1(%arg0: i32, %arg1: i32, %arg2: memref<1xi32, #tpu.memory_space<smem>>, %arg3: memref<1xi32, #tpu.memory_space<smem>>) -> (i32, i32) {
    %c1_i32 = arith.constant 1 : i32
    %0 = arith.muli %arg0, %c1_i32 : i32
    %1 = arith.addi %0, %arg1 : i32
    %2 = arith.index_cast %1 : i32 to index
    %3 = memref.load %arg2[%2] : memref<1xi32, #tpu.memory_space<smem>>
    %c0_i32 = arith.constant 0 : i32
    %c0_i32_0 = arith.constant 0 : i32
    return %3, %c0_i32 : i32, i32
  }
  func.func @transform_2(%arg0: i32, %arg1: i32, %arg2: memref<1xi32, #tpu.memory_space<smem>>, %arg3: memref<1xi32, #tpu.memory_space<smem>>) -> (i32, i32) {
    %c0_i32 = arith.constant 0 : i32
    %c0_i32_0 = arith.constant 0 : i32
    return %arg0, %c0_i32 : i32, i32
  }
  func.func @transform_3(%arg0: i32, %arg1: i32, %arg2: memref<1xi32, #tpu.memory_space<smem>>, %arg3: memref<1xi32, #tpu.memory_space<smem>>) -> (i32, i32) {
    %c0_i32 = arith.constant 0 : i32
    %c0_i32_0 = arith.constant 0 : i32
    return %arg0, %c0_i32 : i32, i32
  }
  func.func @transform_4(%arg0: i32, %arg1: i32, %arg2: memref<1xi32, #tpu.memory_space<smem>>, %arg3: memref<1xi32, #tpu.memory_space<smem>>) -> (i32, i32) {
    %c0_i32 = arith.constant 0 : i32
    %c0_i32_0 = arith.constant 0 : i32
    %c0_i32_1 = arith.constant 0 : i32
    return %c0_i32, %c0_i32_0 : i32, i32
  }
  func.func @transform_5(%arg0: i32, %arg1: i32, %arg2: memref<1xi32, #tpu.memory_space<smem>>, %arg3: memref<1xi32, #tpu.memory_space<smem>>) -> (i32, i32) {
    %c0_i32 = arith.constant 0 : i32
    %c0_i32_0 = arith.constant 0 : i32
    return %arg0, %c0_i32 : i32, i32
  }
}

</mosaic_0001>

<llo_original>
// kernel: tpu_custom_call.1
$region0: #{tpu_custom_call.1}
  #allocation0 [shape = 'u32[]', space=smem, size = 0x4, offset = 0x4, fixed_abs, tag = 'smem constant byte address 0x4 - core index']
  #allocation1 [shape = 'u32[72,128]{1,0:T(1,128)}', space=vmem, size = 0x9000, scoped, tag = 'internal scratch']
  #allocation2 [shape = 'f32[128,128]{1,0:T(8,128)}', space=vmem, size = 0x10000, scoped, tag = 'scratch operand']
  #allocation3 [shape = 's32[1]{0}', space=sflag, size = 0x4, scoped, tag = 'scoped memory for tpu_custom_call.1']
  #allocation4 [shape = 's32[1]{0:T(128)S(6)}', space=smem, size = 0x200, scoped, tag = 'prefetched SMEM operand 0']
  #allocation5 [shape = 's32[1]{0:T(128)S(6)}', space=smem, size = 0x200, scoped, tag = 'prefetched SMEM operand 1']
  %s0 = inlined_call_operand.<no memory space> [shape: s32[1], index: 0, kind: input, shape index: {}]
  %s1 = inlined_call_operand.<no memory space> [shape: s32[1], index: 1, kind: input, shape index: {}]
  %s2 = inlined_call_operand.hbm [shape: bf16[128,128], index: 2, kind: input, shape index: {}]
  %s3 = inlined_call_operand.hbm [shape: bf16[128,128], index: 3, kind: input, shape index: {}]
  %s4 = inlined_call_operand.vmem [shape: f32[128,128], index: 4, kind: input, shape index: {}]
  %s5 = inlined_call_operand.vmem [shape: f32[128,4], index: 5, kind: input, shape index: {}]
  %s6 = inlined_call_operand.hbm [shape: bf16[256,512], index: 6, kind: input, shape index: {}]
  %s7 = inlined_call_operand.hbm [shape: f32[128,128], index: 7, kind: output, shape index: {}]
  %s8 = sld [smem:[#allocation0]]
  $region54: #{tpu_custom_call.1} parent=0
    _
  %s10 = ssub.s32 1, %s8
  %s11 = scalar_select 0, %s10, %s8
  %12 = sst [smem:[#allocation4]] %s0
  %13 = sst [smem:[#allocation5]] %s1
  $region1: #{tpu_custom_call.1} parent=0
    #allocation6 [shape = 'u8[32768]{0}', space=vmem, size = 0x8000, scoped, tag = 'input window, operand 2, single buffered']
    #allocation7 [shape = 's32[1]{0}', space=sflag, size = 0x4, scoped, tag = 'scoped memory for tpu_custom_call.1']
    #allocation8 [shape = 's32[1]{0}', space=sflag, size = 0x4, scoped, tag = 'scoped memory for tpu_custom_call.1']
    #allocation9 [shape = 'u8[32768]{0}', space=vmem, size = 0x8000, scoped, tag = 'input window, operand 3, single buffered']
    #allocation10 [shape = 's32[1]{0}', space=sflag, size = 0x4, scoped, tag = 'scoped memory for tpu_custom_call.1']
    #allocation11 [shape = 'u8[262144]{0}', space=vmem, size = 0x40000, scoped, tag = 'input window, operand 6, single buffered']
    #allocation12 [shape = 'u8[65536]{0}', space=vmem, size = 0x10000, scoped, tag = 'output window, operand 0, single buffered']
    %14 = vsyncpa [#allocation7], 0
    %15 = vsyncpa [#allocation10], 0
    %16 = vsyncpa [#allocation8], 0
    // Predicated region
    $region2: #{tpu_custom_call.1} parent=1 // pred_check
      _
    $region3: #{tpu_custom_call.1} parent=1 // pred_check_branch
      %18 = sbr.rel (0) target = $region5
    $region4: #{tpu_custom_call.1} parent=1 // pred_region
      %s19 = sadd.s32 0, 0
      %s20 = sld [smem:[#allocation4 + %s19]]
      %22 = vsyncadd [#allocation7], 0
      %s23 = smul.addr %s20, 4
      %s24 = scalar_lea.hbm %s2, %s23
      %s25 = sshll.u32 %s24, 4
      %s26 = int_to_ptr.hbm [resolvable:$true] %s25
      %s27 = sshll.u32 [#allocation6], 4
      %s28 = int_to_ptr.vmem [resolvable:$true] %s27
      %33 = dma.hbm_to_vmem [thread:$0]  %s26, 1024, %s28, [#allocation7], 64, 64, 4
    $region5: #{tpu_custom_call.1} parent=1 // pred_fallthru
      _
    // Predicated region
    $region6: #{tpu_custom_call.1} parent=1 // pred_check
      _
    $region7: #{tpu_custom_call.1} parent=1 // pred_check_branch
      %35 = sbr.rel (0) target = $region9
    $region8: #{tpu_custom_call.1} parent=1 // pred_region
      %s36 = sadd.s32 0, 0
      %s37 = sld [smem:[#allocation4 + %s36]]
      %s38 = smul.u32 16, %s37
      %40 = vsyncadd [#allocation10], 0
      %s41 = smul.addr %s38, 4
      %s42 = scalar_lea.hbm %s3, %s41
      %s43 = sshll.u32 %s42, 4
      %s44 = int_to_ptr.hbm [resolvable:$true] %s43
      %s45 = sshll.u32 [#allocation9], 4
      %s46 = int_to_ptr.vmem [resolvable:$true] %s45
      %51 = dma.hbm_to_vmem [thread:$0]  %s44, 1024, %s46, [#allocation10], 64, 64, 4
    $region9: #{tpu_custom_call.1} parent=1 // pred_fallthru
      _
    // Predicated region
    $region10: #{tpu_custom_call.1} parent=1 // pred_check
      _
    $region11: #{tpu_custom_call.1} parent=1 // pred_check_branch
      %53 = sbr.rel (0) target = $region13
    $region12: #{tpu_custom_call.1} parent=1 // pred_region
      _
    $region13: #{tpu_custom_call.1} parent=1 // pred_fallthru
      _
    // Predicated region
    $region14: #{tpu_custom_call.1} parent=1 // pred_check
      _
    $region15: #{tpu_custom_call.1} parent=1 // pred_check_branch
      %55 = sbr.rel (0) target = $region17
    $region16: #{tpu_custom_call.1} parent=1 // pred_region
      _
    $region17: #{tpu_custom_call.1} parent=1 // pred_fallthru
      _
    // Predicated region
    $region18: #{tpu_custom_call.1} parent=1 // pred_check
      _
    $region19: #{tpu_custom_call.1} parent=1 // pred_check_branch
      %57 = sbr.rel (0) target = $region21
    $region20: #{tpu_custom_call.1} parent=1 // pred_region
      %59 = vsyncadd [#allocation10], 0
      %s60 = sshll.u32 %s6, 4
      %s61 = int_to_ptr.hbm [resolvable:$true] %s60
      %s62 = sshll.u32 [#allocation11], 4
      %s63 = int_to_ptr.vmem [resolvable:$true] %s62
      %68 = dma.hbm_to_vmem [thread:$0]  %s61, 8192, %s63, [#allocation10], 256, 256, 16
    $region21: #{tpu_custom_call.1} parent=1 // pred_fallthru
      _
    // Predicated region
    $region22: #{tpu_custom_call.1} parent=1 // pred_check
      _
    $region23: #{tpu_custom_call.1} parent=1 // pred_check_branch
      %70 = sbr.rel (0) target = $region25
    $region24: #{tpu_custom_call.1} parent=1 // pred_region
      %72 = dma.done [#allocation7], 1024
    $region25: #{tpu_custom_call.1} parent=1 // pred_fallthru
      _
    // Predicated region
    $region26: #{tpu_custom_call.1} parent=1 // pred_check
      _
    $region27: #{tpu_custom_call.1} parent=1 // pred_check_branch
      %74 = sbr.rel (0) target = $region29
    $region28: #{tpu_custom_call.1} parent=1 // pred_region
      %76 = dma.done [#allocation10], 1024
    $region29: #{tpu_custom_call.1} parent=1 // pred_fallthru
      _
    // Predicated region
    $region30: #{tpu_custom_call.1} parent=1 // pred_check
      _
    $region31: #{tpu_custom_call.1} parent=1 // pred_check_branch
      %78 = sbr.rel (0) target = $region33
    $region32: #{tpu_custom_call.1} parent=1 // pred_region
      %80 = dma.done [#allocation10], 8192
    $region33: #{tpu_custom_call.1} parent=1 // pred_fallthru
      _
    %s81 = sadd.s32 0, 0
    %s82 = sld [smem:[#allocation4 + %s81]]
    %s83 = sadd.s32 0, 0
    %s84 = sld [smem:[#allocation4 + %s83]]
    %s85 = smul.u32 16, %s84
    %p86 = scmp.eq.s32.totalorder 0, 0
    // Predicated region
    $region34: #{tpu_custom_call.1} parent=1 // pred_check
      %p87 = pneg %p86
    $region35: #{tpu_custom_call.1} parent=1 // pred_check_branch
      %89 = sbr.rel (%p87) target = $region37
    $region36: #{tpu_custom_call.1} parent=1 // pred_region
      %90 = vst [vmem:[#allocation2] sm:$0xff] 0.0
      %91 = vst [vmem:[#allocation2 + $0x8] sm:$0xff] 0.0
      %92 = vst [vmem:[#allocation2 + $0x10] sm:$0xff] 0.0
      %93 = vst [vmem:[#allocation2 + $0x18] sm:$0xff] 0.0
      %94 = vst [vmem:[#allocation2 + $0x20] sm:$0xff] 0.0
      %95 = vst [vmem:[#allocation2 + $0x28] sm:$0xff] 0.0
      %96 = vst [vmem:[#allocation2 + $0x30] sm:$0xff] 0.0
      %97 = vst [vmem:[#allocation2 + $0x38] sm:$0xff] 0.0
      %98 = vst [vmem:[#allocation2 + $0x40] sm:$0xff] 0.0
      %99 = vst [vmem:[#allocation2 + $0x48] sm:$0xff] 0.0
      %100 = vst [vmem:[#allocation2 + $0x50] sm:$0xff] 0.0
      %101 = vst [vmem:[#allocation2 + $0x58] sm:$0xff] 0.0
      %102 = vst [vmem:[#allocation2 + $0x60] sm:$0xff] 0.0
      %103 = vst [vmem:[#allocation2 + $0x68] sm:$0xff] 0.0
      %104 = vst [vmem:[#allocation2 + $0x70] sm:$0xff] 0.0
      %105 = vst [vmem:[#allocation2 + $0x78] sm:$0xff] 0.0
    $region37: #{tpu_custom_call.1} parent=1 // pred_fallthru
      _
    %s106 = sld [smem:[#allocation5]]
    %p107 = scmp.lt.s32.totalorder 0, %s106
    // Predicated region
    $region38: #{tpu_custom_call.1} parent=1 // pred_check
      %p108 = pneg %p107
    $region39: #{tpu_custom_call.1} parent=1 // pred_check_branch
      %110 = sbr.rel (%p108) target = $region41
    $region40: #{tpu_custom_call.1} parent=1 // pred_region
      %v111 = vld [vmem:[#allocation2] sm:$0xff]
      %v112 = vld [vmem:[#allocation2 + $0x8] sm:$0xff]
      %v113 = vld [vmem:[#allocation2 + $0x10] sm:$0xff]
      %v114 = vld [vmem:[#allocation2 + $0x18] sm:$0xff]
      %v115 = vld [vmem:[#allocation2 + $0x20] sm:$0xff]
      %v116 = vld [vmem:[#allocation2 + $0x28] sm:$0xff]
      %v117 = vld [vmem:[#allocation2 + $0x30] sm:$0xff]
      %v118 = vld [vmem:[#allocation2 + $0x38] sm:$0xff]
      %v119 = vld [vmem:[#allocation2 + $0x40] sm:$0xff]
      %v120 = vld [vmem:[#allocation2 + $0x48] sm:$0xff]
      %v121 = vld [vmem:[#allocation2 + $0x50] sm:$0xff]
      %v122 = vld [vmem:[#allocation2 + $0x58] sm:$0xff]
      %v123 = vld [vmem:[#allocation2 + $0x60] sm:$0xff]
      %v124 = vld [vmem:[#allocation2 + $0x68] sm:$0xff]
      %v125 = vld [vmem:[#allocation2 + $0x70] sm:$0xff]
      %v126 = vld [vmem:[#allocation2 + $0x78] sm:$0xff]
      %v127 = vld [vmem:[#allocation6] sm:$0xf]
      %v128 = vld [vmem:[#allocation6 + $0x4] sm:$0xf]
      %v129 = vld [vmem:[#allocation6 + $0x8] sm:$0xf]
      %v130 = vld [vmem:[#allocation6 + $0xc] sm:$0xf]
      %v131 = vld [vmem:[#allocation6 + $0x10] sm:$0xf]
      %v132 = vld [vmem:[#allocation6 + $0x14] sm:$0xf]
      %v133 = vld [vmem:[#allocation6 + $0x18] sm:$0xf]
      %v134 = vld [vmem:[#allocation6 + $0x1c] sm:$0xf]
      %v135 = vld [vmem:[#allocation6 + $0x20] sm:$0xf]
      %v136 = vld [vmem:[#allocation6 + $0x24] sm:$0xf]
      %v137 = vld [vmem:[#allocation6 + $0x28] sm:$0xf]
      %v138 = vld [vmem:[#allocation6 + $0x2c] sm:$0xf]
      %v139 = vld [vmem:[#allocation6 + $0x30] sm:$0xf]
      %v140 = vld [vmem:[#allocation6 + $0x34] sm:$0xf]
      %v141 = vld [vmem:[#allocation6 + $0x38] sm:$0xf]
      %v142 = vld [vmem:[#allocation6 + $0x3c] sm:$0xf]
      %v143 = vld [vmem:[#allocation9] sm:$0xf]
      %v144 = vld [vmem:[#allocation9 + $0x4] sm:$0xf]
      %v145 = vld [vmem:[#allocation9 + $0x8] sm:$0xf]
      %v146 = vld [vmem:[#allocation9 + $0xc] sm:$0xf]
      %v147 = vld [vmem:[#allocation9 + $0x10] sm:$0xf]
      %v148 = vld [vmem:[#allocation9 + $0x14] sm:$0xf]
      %v149 = vld [vmem:[#allocation9 + $0x18] sm:$0xf]
      %v150 = vld [vmem:[#allocation9 + $0x1c] sm:$0xf]
      %v151 = vld [vmem:[#allocation9 + $0x20] sm:$0xf]
      %v152 = vld [vmem:[#allocation9 + $0x24] sm:$0xf]
      %v153 = vld [vmem:[#allocation9 + $0x28] sm:$0xf]
      %v154 = vld [vmem:[#allocation9 + $0x2c] sm:$0xf]
      %v155 = vld [vmem:[#allocation9 + $0x30] sm:$0xf]
      %v156 = vld [vmem:[#allocation9 + $0x34] sm:$0xf]
      %v157 = vld [vmem:[#allocation9 + $0x38] sm:$0xf]
      %v158 = vld [vmem:[#allocation9 + $0x3c] sm:$0xf]
      %v175 = vunpack.c.l.b16 %v127
      %v176 = vunpack.c.l.b16 %v128
      %v177 = vunpack.c.l.b16 %v129
      %v178 = vunpack.c.l.b16 %v130
      %v179 = vunpack.c.l.b16 %v131
      %v180 = vunpack.c.l.b16 %v132
      %v181 = vunpack.c.l.b16 %v133
      %v182 = vunpack.c.l.b16 %v134
      %v183 = vunpack.c.l.b16 %v135
      %v184 = vunpack.c.l.b16 %v136
      %v185 = vunpack.c.l.b16 %v137
      %v186 = vunpack.c.l.b16 %v138
      %v187 = vunpack.c.l.b16 %v139
      %v188 = vunpack.c.l.b16 %v140
      %v189 = vunpack.c.l.b16 %v141
      %v190 = vunpack.c.l.b16 %v142
      %v191 = vpack.c.b16 %v176, %v175
      %v192 = vpack.c.b16 %v178, %v177
      %v193 = vpack.c.b16 %v180, %v179
      %v194 = vpack.c.b16 %v182, %v181
      %v195 = vpack.c.b16 %v184, %v183
      %v196 = vpack.c.b16 %v186, %v185
      %v197 = vpack.c.b16 %v188, %v187
      %v198 = vpack.c.b16 %v190, %v189
      %v223 = vunpack.c.l.b16 %v143
      %v224 = vunpack.c.l.b16 %v144
      %v225 = vunpack.c.l.b16 %v145
      %v226 = vunpack.c.l.b16 %v146
      %v227 = vunpack.c.l.b16 %v147
      %v228 = vunpack.c.l.b16 %v148
      %v229 = vunpack.c.l.b16 %v149
      %v230 = vunpack.c.l.b16 %v150
      %v231 = vunpack.c.l.b16 %v151
      %v232 = vunpack.c.l.b16 %v152
      %v233 = vunpack.c.l.b16 %v153
      %v234 = vunpack.c.l.b16 %v154
      %v235 = vunpack.c.l.b16 %v155
      %v236 = vunpack.c.l.b16 %v156
      %v237 = vunpack.c.l.b16 %v157
      %v238 = vunpack.c.l.b16 %v158
      %v239 = vpack.c.b16 %v224, %v223
      %v240 = vpack.c.b16 %v226, %v225
      %v241 = vpack.c.b16 %v228, %v227
      %v242 = vpack.c.b16 %v230, %v229
      %v243 = vpack.c.b16 %v232, %v231
      %v244 = vpack.c.b16 %v234, %v233
      %v245 = vpack.c.b16 %v236, %v235
      %v246 = vpack.c.b16 %v238, %v237
      %255 = vmatpush.bf16.msra.mxu0 %v246
      %256 = vmatpush.bf16.msra.mxu0 %v245
      %257 = vmatpush.bf16.msra.mxu0 %v244
      %258 = vmatpush.bf16.msra.mxu0 %v243
      %259 = vmatpush.bf16.msra.mxu0 %v242
      %260 = vmatpush.bf16.msra.mxu0 %v241
      %261 = vmatpush.bf16.msra.mxu0 %v240
      %262 = vmatpush.bf16.msra.mxu0 %v239
      %263 = vmatmul.bf16.gmra.mxu0 %v191
      %v264 = vpop.f32.mrf.mxu0
      %v265 = vadd.f32 0.0, %v264
      %v266 = vpop.f32.mrf.mxu0
      %v267 = vadd.f32 0.0, %v266
      %268 = vmatmul.bf16.gmra.mxu0 %v192
      %v269 = vpop.f32.mrf.mxu0
      %v270 = vadd.f32 0.0, %v269
      %v271 = vpop.f32.mrf.mxu0
      %v272 = vadd.f32 0.0, %v271
      %273 = vmatmul.bf16.gmra.mxu0 %v193
      %v274 = vpop.f32.mrf.mxu0
      %v275 = vadd.f32 0.0, %v274
      %v276 = vpop.f32.mrf.mxu0
      %v277 = vadd.f32 0.0, %v276
      %278 = vmatmul.bf16.gmra.mxu0 %v194
      %v279 = vpop.f32.mrf.mxu0
      %v280 = vadd.f32 0.0, %v279
      %v281 = vpop.f32.mrf.mxu0
      %v282 = vadd.f32 0.0, %v281
      %283 = vmatmul.bf16.gmra.mxu0 %v195
      %v284 = vpop.f32.mrf.mxu0
      %v285 = vadd.f32 0.0, %v284
      %v286 = vpop.f32.mrf.mxu0
      %v287 = vadd.f32 0.0, %v286
      %288 = vmatmul.bf16.gmra.mxu0 %v196
      %v289 = vpop.f32.mrf.mxu0
      %v290 = vadd.f32 0.0, %v289
      %v291 = vpop.f32.mrf.mxu0
      %v292 = vadd.f32 0.0, %v291
      %293 = vmatmul.bf16.gmra.mxu0 %v197
      %v294 = vpop.f32.mrf.mxu0
      %v295 = vadd.f32 0.0, %v294
      %v296 = vpop.f32.mrf.mxu0
      %v297 = vadd.f32 0.0, %v296
      %298 = vmatmul.bf16.gmra.mxu0 %v198
      %v299 = vpop.f32.mrf.mxu0
      %v300 = vadd.f32 0.0, %v299
      %v301 = vpop.f32.mrf.mxu0
      %v302 = vadd.f32 0.0, %v301
      %303 = vdwg.mxu0
      %v304 = vadd.f32 %v111, %v265
      %v305 = vadd.f32 %v112, %v267
      %v306 = vadd.f32 %v113, %v270
      %v307 = vadd.f32 %v114, %v272
      %v308 = vadd.f32 %v115, %v275
      %v309 = vadd.f32 %v116, %v277
      %v310 = vadd.f32 %v117, %v280
      %v311 = vadd.f32 %v118, %v282
      %v312 = vadd.f32 %v119, %v285
      %v313 = vadd.f32 %v120, %v287
      %v314 = vadd.f32 %v121, %v290
      %v315 = vadd.f32 %v122, %v292
      %v316 = vadd.f32 %v123, %v295
      %v317 = vadd.f32 %v124, %v297
      %v318 = vadd.f32 %v125, %v300
      %v319 = vadd.f32 %v126, %v302
      %320 = vst [vmem:[#allocation2] sm:$0xff] %v304
      %321 = vst [vmem:[#allocation2 + $0x8] sm:$0xff] %v305
      %322 = vst [vmem:[#allocation2 + $0x10] sm:$0xff] %v306
      %323 = vst [vmem:[#allocation2 + $0x18] sm:$0xff] %v307
      %324 = vst [vmem:[#allocation2 + $0x20] sm:$0xff] %v308
      %325 = vst [vmem:[#allocation2 + $0x28] sm:$0xff] %v309
      %326 = vst [vmem:[#allocation2 + $0x30] sm:$0xff] %v310
      %327 = vst [vmem:[#allocation2 + $0x38] sm:$0xff] %v311
      %328 = vst [vmem:[#allocation2 + $0x40] sm:$0xff] %v312
      %329 = vst [vmem:[#allocation2 + $0x48] sm:$0xff] %v313
      %330 = vst [vmem:[#allocation2 + $0x50] sm:$0xff] %v314
      %331 = vst [vmem:[#allocation2 + $0x58] sm:$0xff] %v315
      %332 = vst [vmem:[#allocation2 + $0x60] sm:$0xff] %v316
      %333 = vst [vmem:[#allocation2 + $0x68] sm:$0xff] %v317
      %334 = vst [vmem:[#allocation2 + $0x70] sm:$0xff] %v318
      %335 = vst [vmem:[#allocation2 + $0x78] sm:$0xff] %v319
    $region41: #{tpu_custom_call.1} parent=1 // pred_fallthru
      _
    // Predicated region
    $region42: #{tpu_custom_call.1} parent=1 // pred_check
      %p336 = pneg %p86
    $region43: #{tpu_custom_call.1} parent=1 // pred_check_branch
      %338 = sbr.rel (%p336) target = $region45
    $region44: #{tpu_custom_call.1} parent=1 // pred_region
      %v339 = vld [vmem:[%s4] sm:$0xff]
      %v340 = vld [vmem:[%s4 + $0x8] sm:$0xff]
      %v341 = vld [vmem:[%s4 + $0x10] sm:$0xff]
      %v342 = vld [vmem:[%s4 + $0x18] sm:$0xff]
      %v343 = vld [vmem:[%s4 + $0x20] sm:$0xff]
      %v344 = vld [vmem:[%s4 + $0x28] sm:$0xff]
      %v345 = vld [vmem:[%s4 + $0x30] sm:$0xff]
      %v346 = vld [vmem:[%s4 + $0x38] sm:$0xff]
      %v347 = vld [vmem:[%s4 + $0x40] sm:$0xff]
      %v348 = vld [vmem:[%s4 + $0x48] sm:$0xff]
      %v349 = vld [vmem:[%s4 + $0x50] sm:$0xff]
      %v350 = vld [vmem:[%s4 + $0x58] sm:$0xff]
      %v351 = vld [vmem:[%s4 + $0x60] sm:$0xff]
      %v352 = vld [vmem:[%s4 + $0x68] sm:$0xff]
      %v353 = vld [vmem:[%s4 + $0x70] sm:$0xff]
      %v354 = vld [vmem:[%s4 + $0x78] sm:$0xff]
      %v355 = vld [vmem:[#allocation2] sm:$0xff]
      %v356 = vld [vmem:[#allocation2 + $0x8] sm:$0xff]
      %v357 = vld [vmem:[#allocation2 + $0x10] sm:$0xff]
      %v358 = vld [vmem:[#allocation2 + $0x18] sm:$0xff]
      %v359 = vld [vmem:[#allocation2 + $0x20] sm:$0xff]
      %v360 = vld [vmem:[#allocation2 + $0x28] sm:$0xff]
      %v361 = vld [vmem:[#allocation2 + $0x30] sm:$0xff]
      %v362 = vld [vmem:[#allocation2 + $0x38] sm:$0xff]
      %v363 = vld [vmem:[#allocation2 + $0x40] sm:$0xff]
      %v364 = vld [vmem:[#allocation2 + $0x48] sm:$0xff]
      %v365 = vld [vmem:[#allocation2 + $0x50] sm:$0xff]
      %v366 = vld [vmem:[#allocation2 + $0x58] sm:$0xff]
      %v367 = vld [vmem:[#allocation2 + $0x60] sm:$0xff]
      %v368 = vld [vmem:[#allocation2 + $0x68] sm:$0xff]
      %v369 = vld [vmem:[#allocation2 + $0x70] sm:$0xff]
      %v370 = vld [vmem:[#allocation2 + $0x78] sm:$0xff]
      %v371 = vpack.c.bf16 %v355, %v355
      %v372 = vpack.c.bf16 %v356, %v356
      %v373 = vpack.c.bf16 %v357, %v357
      %v374 = vpack.c.bf16 %v358, %v358
      %v375 = vpack.c.bf16 %v359, %v359
      %v376 = vpack.c.bf16 %v360, %v360
      %v377 = vpack.c.bf16 %v361, %v361
      %v378 = vpack.c.bf16 %v362, %v362
      %v379 = vpack.c.bf16 %v363, %v363
      %v380 = vpack.c.bf16 %v364, %v364
      %v381 = vpack.c.bf16 %v365, %v365
      %v382 = vpack.c.bf16 %v366, %v366
      %v383 = vpack.c.bf16 %v367, %v367
      %v384 = vpack.c.bf16 %v368, %v368
      %v385 = vpack.c.bf16 %v369, %v369
      %v386 = vpack.c.bf16 %v370, %v370
      %v387 = vpack.c.bf16 %v339, %v339
      %v388 = vpack.c.bf16 %v340, %v340
      %v389 = vpack.c.bf16 %v341, %v341
      %v390 = vpack.c.bf16 %v342, %v342
      %v391 = vpack.c.bf16 %v343, %v343
      %v392 = vpack.c.bf16 %v344, %v344
      %v393 = vpack.c.bf16 %v345, %v345
      %v394 = vpack.c.bf16 %v346, %v346
      %v395 = vpack.c.bf16 %v347, %v347
      %v396 = vpack.c.bf16 %v348, %v348
      %v397 = vpack.c.bf16 %v349, %v349
      %v398 = vpack.c.bf16 %v350, %v350
      %v399 = vpack.c.bf16 %v351, %v351
      %v400 = vpack.c.bf16 %v352, %v352
      %v401 = vpack.c.bf16 %v353, %v353
      %v402 = vpack.c.bf16 %v354, %v354
      %v419 = vunpack.c.l.b16 %v371
      %v420 = vunpack.c.l.b16 %v372
      %v421 = vunpack.c.l.b16 %v373
      %v422 = vunpack.c.l.b16 %v374
      %v423 = vunpack.c.l.b16 %v375
      %v424 = vunpack.c.l.b16 %v376
      %v425 = vunpack.c.l.b16 %v377
      %v426 = vunpack.c.l.b16 %v378
      %v427 = vunpack.c.l.b16 %v379
      %v428 = vunpack.c.l.b16 %v380
      %v429 = vunpack.c.l.b16 %v381
      %v430 = vunpack.c.l.b16 %v382
      %v431 = vunpack.c.l.b16 %v383
      %v432 = vunpack.c.l.b16 %v384
      %v433 = vunpack.c.l.b16 %v385
      %v434 = vunpack.c.l.b16 %v386
      %v435 = vpack.c.b16 %v420, %v419
      %v436 = vpack.c.b16 %v422, %v421
      %v437 = vpack.c.b16 %v424, %v423
      %v438 = vpack.c.b16 %v426, %v425
      %v439 = vpack.c.b16 %v428, %v427
      %v440 = vpack.c.b16 %v430, %v429
      %v441 = vpack.c.b16 %v432, %v431
      %v442 = vpack.c.b16 %v434, %v433
      %v467 = vunpack.c.l.b16 %v387
      %v468 = vunpack.c.l.b16 %v388
      %v469 = vunpack.c.l.b16 %v389
      %v470 = vunpack.c.l.b16 %v390
      %v471 = vunpack.c.l.b16 %v391
      %v472 = vunpack.c.l.b16 %v392
      %v473 = vunpack.c.l.b16 %v393
      %v474 = vunpack.c.l.b16 %v394
      %v475 = vunpack.c.l.b16 %v395
      %v476 = vunpack.c.l.b16 %v396
      %v477 = vunpack.c.l.b16 %v397
      %v478 = vunpack.c.l.b16 %v398
      %v479 = vunpack.c.l.b16 %v399
      %v480 = vunpack.c.l.b16 %v400
      %v481 = vunpack.c.l.b16 %v401
      %v482 = vunpack.c.l.b16 %v402
      %v483 = vpack.c.b16 %v468, %v467
      %v484 = vpack.c.b16 %v470, %v469
      %v485 = vpack.c.b16 %v472, %v471
      %v486 = vpack.c.b16 %v474, %v473
      %v487 = vpack.c.b16 %v476, %v475
      %v488 = vpack.c.b16 %v478, %v477
      %v489 = vpack.c.b16 %v480, %v479
      %v490 = vpack.c.b16 %v482, %v481
      %v499 = vld [vmem:[#allocation11] sm:$0xff]
      %v500 = vld [vmem:[#allocation11 + $0x8] sm:$0xff]
      %v501 = vld [vmem:[#allocation11 + $0x10] sm:$0xff]
      %v502 = vld [vmem:[#allocation11 + $0x18] sm:$0xff]
      %v503 = vld [vmem:[#allocation11 + $0x20] sm:$0xff]
      %v504 = vld [vmem:[#allocation11 + $0x28] sm:$0xff]
      %v505 = vld [vmem:[#allocation11 + $0x30] sm:$0xff]
      %v506 = vld [vmem:[#allocation11 + $0x38] sm:$0xff]
      %v507 = vld [vmem:[#allocation11 + $0x40] sm:$0xff]
      %v508 = vld [vmem:[#allocation11 + $0x48] sm:$0xff]
      %v509 = vld [vmem:[#allocation11 + $0x50] sm:$0xff]
      %v510 = vld [vmem:[#allocation11 + $0x58] sm:$0xff]
      %v511 = vld [vmem:[#allocation11 + $0x60] sm:$0xff]
      %v512 = vld [vmem:[#allocation11 + $0x68] sm:$0xff]
      %v513 = vld [vmem:[#allocation11 + $0x70] sm:$0xff]
      %v514 = vld [vmem:[#allocation11 + $0x78] sm:$0xff]
      %v515 = vld [vmem:[#allocation11 + $0x80] sm:$0xff]
      %v516 = vld [vmem:[#allocation11 + $0x88] sm:$0xff]
      %v517 = vld [vmem:[#allocation11 + $0x90] sm:$0xff]
      %v518 = vld [vmem:[#allocation11 + $0x98] sm:$0xff]
      %v519 = vld [vmem:[#allocation11 + $0xa0] sm:$0xff]
      %v520 = vld [vmem:[#allocation11 + $0xa8] sm:$0xff]
      %v521 = vld [vmem:[#allocation11 + $0xb0] sm:$0xff]
      %v522 = vld [vmem:[#allocation11 + $0xb8] sm:$0xff]
      %v523 = vld [vmem:[#allocation11 + $0xc0] sm:$0xff]
      %v524 = vld [vmem:[#allocation11 + $0xc8] sm:$0xff]
      %v525 = vld [vmem:[#allocation11 + $0xd0] sm:$0xff]
      %v526 = vld [vmem:[#allocation11 + $0xd8] sm:$0xff]
      %v527 = vld [vmem:[#allocation11 + $0xe0] sm:$0xff]
      %v528 = vld [vmem:[#allocation11 + $0xe8] sm:$0xff]
      %v529 = vld [vmem:[#allocation11 + $0xf0] sm:$0xff]
      %v530 = vld [vmem:[#allocation11 + $0xf8] sm:$0xff]
      %v531 = vld [vmem:[#allocation11 + $0x100] sm:$0xff]
      %v532 = vld [vmem:[#allocation11 + $0x108] sm:$0xff]
      %v533 = vld [vmem:[#allocation11 + $0x110] sm:$0xff]
      %v534 = vld [vmem:[#allocation11 + $0x118] sm:$0xff]
      %v535 = vld [vmem:[#allocation11 + $0x120] sm:$0xff]
      %v536 = vld [vmem:[#allocation11 + $0x128] sm:$0xff]
      %v537 = vld [vmem:[#allocation11 + $0x130] sm:$0xff]
      %v538 = vld [vmem:[#allocation11 + $0x138] sm:$0xff]
      %v539 = vld [vmem:[#allocation11 + $0x140] sm:$0xff]
      %v540 = vld [vmem:[#allocation11 + $0x148] sm:$0xff]
      %v541 = vld [vmem:[#allocation11 + $0x150] sm:$0xff]
      %v542 = vld [vmem:[#allocation11 + $0x158] sm:$0xff]
      %v543 = vld [vmem:[#allocation11 + $0x160] sm:$0xff]
      %v544 = vld [vmem:[#allocation11 + $0x168] sm:$0xff]
      %v545 = vld [vmem:[#allocation11 + $0x170] sm:$0xff]
      %v546 = vld [vmem:[#allocation11 + $0x178] sm:$0xff]
      %v547 = vld [vmem:[#allocation11 + $0x180] sm:$0xff]
      %v548 = vld [vmem:[#allocation11 + $0x188] sm:$0xff]
      %v549 = vld [vmem:[#allocation11 + $0x190] sm:$0xff]
      %v550 = vld [vmem:[#allocation11 + $0x198] sm:$0xff]
      %v551 = vld [vmem:[#allocation11 + $0x1a0] sm:$0xff]
      %v552 = vld [vmem:[#allocation11 + $0x1a8] sm:$0xff]
      %v553 = vld [vmem:[#allocation11 + $0x1b0] sm:$0xff]
      %v554 = vld [vmem:[#allocation11 + $0x1b8] sm:$0xff]
      %v555 = vld [vmem:[#allocation11 + $0x1c0] sm:$0xff]
      %v556 = vld [vmem:[#allocation11 + $0x1c8] sm:$0xff]
      %v557 = vld [vmem:[#allocation11 + $0x1d0] sm:$0xff]
      %v558 = vld [vmem:[#allocation11 + $0x1d8] sm:$0xff]
      %v559 = vld [vmem:[#allocation11 + $0x1e0] sm:$0xff]
      %v560 = vld [vmem:[#allocation11 + $0x1e8] sm:$0xff]
      %v561 = vld [vmem:[#allocation11 + $0x1f0] sm:$0xff]
      %v562 = vld [vmem:[#allocation11 + $0x1f8] sm:$0xff]
      %v627 = vunpack.c.l.b16 %v499
      %v628 = vunpack.c.h.b16 %v499
      %v629 = vunpack.c.l.b16 %v500
      %v630 = vunpack.c.h.b16 %v500
      %v631 = vunpack.c.l.b16 %v501
      %v632 = vunpack.c.h.b16 %v501
      %v633 = vunpack.c.l.b16 %v502
      %v634 = vunpack.c.h.b16 %v502
      %v635 = vunpack.c.l.b16 %v503
      %v636 = vunpack.c.h.b16 %v503
      %v637 = vunpack.c.l.b16 %v504
      %v638 = vunpack.c.h.b16 %v504
      %v639 = vunpack.c.l.b16 %v505
      %v640 = vunpack.c.h.b16 %v505
      %v641 = vunpack.c.l.b16 %v506
      %v642 = vunpack.c.h.b16 %v506
      %v643 = vunpack.c.l.b16 %v507
      %v644 = vunpack.c.h.b16 %v507
      %v645 = vunpack.c.l.b16 %v508
      %v646 = vunpack.c.h.b16 %v508
      %v647 = vunpack.c.l.b16 %v509
      %v648 = vunpack.c.h.b16 %v509
      %v649 = vunpack.c.l.b16 %v510
      %v650 = vunpack.c.h.b16 %v510
      %v651 = vunpack.c.l.b16 %v511
      %v652 = vunpack.c.h.b16 %v511
      %v653 = vunpack.c.l.b16 %v512
      %v654 = vunpack.c.h.b16 %v512
      %v655 = vunpack.c.l.b16 %v513
      %v656 = vunpack.c.h.b16 %v513
      %v657 = vunpack.c.l.b16 %v514
      %v658 = vunpack.c.h.b16 %v514
      %v659 = vunpack.c.l.b16 %v515
      %v660 = vunpack.c.h.b16 %v515
      %v661 = vunpack.c.l.b16 %v516
      %v662 = vunpack.c.h.b16 %v516
      %v663 = vunpack.c.l.b16 %v517
      %v664 = vunpack.c.h.b16 %v517
      %v665 = vunpack.c.l.b16 %v518
      %v666 = vunpack.c.h.b16 %v518
      %v667 = vunpack.c.l.b16 %v519
      %v668 = vunpack.c.h.b16 %v519
      %v669 = vunpack.c.l.b16 %v520
      %v670 = vunpack.c.h.b16 %v520
      %v671 = vunpack.c.l.b16 %v521
      %v672 = vunpack.c.h.b16 %v521
      %v673 = vunpack.c.l.b16 %v522
      %v674 = vunpack.c.h.b16 %v522
      %v675 = vunpack.c.l.b16 %v523
      %v676 = vunpack.c.h.b16 %v523
      %v677 = vunpack.c.l.b16 %v524
      %v678 = vunpack.c.h.b16 %v524
      %v679 = vunpack.c.l.b16 %v525
      %v680 = vunpack.c.h.b16 %v525
      %v681 = vunpack.c.l.b16 %v526
      %v682 = vunpack.c.h.b16 %v526
      %v683 = vunpack.c.l.b16 %v527
      %v684 = vunpack.c.h.b16 %v527
      %v685 = vunpack.c.l.b16 %v528
      %v686 = vunpack.c.h.b16 %v528
      %v687 = vunpack.c.l.b16 %v529
      %v688 = vunpack.c.h.b16 %v529
      %v689 = vunpack.c.l.b16 %v530
      %v690 = vunpack.c.h.b16 %v530
      %v691 = vunpack.c.l.b16 %v531
      %v692 = vunpack.c.h.b16 %v531
      %v693 = vunpack.c.l.b16 %v532
      %v694 = vunpack.c.h.b16 %v532
      %v695 = vunpack.c.l.b16 %v533
      %v696 = vunpack.c.h.b16 %v533
      %v697 = vunpack.c.l.b16 %v534
      %v698 = vunpack.c.h.b16 %v534
      %v699 = vunpack.c.l.b16 %v535
      %v700 = vunpack.c.h.b16 %v535
      %v701 = vunpack.c.l.b16 %v536
      %v702 = vunpack.c.h.b16 %v536
      %v703 = vunpack.c.l.b16 %v537
      %v704 = vunpack.c.h.b16 %v537
      %v705 = vunpack.c.l.b16 %v538
      %v706 = vunpack.c.h.b16 %v538
      %v707 = vunpack.c.l.b16 %v539
      %v708 = vunpack.c.h.b16 %v539
      %v709 = vunpack.c.l.b16 %v540
      %v710 = vunpack.c.h.b16 %v540
      %v711 = vunpack.c.l.b16 %v541
      %v712 = vunpack.c.h.b16 %v541
      %v713 = vunpack.c.l.b16 %v542
      %v714 = vunpack.c.h.b16 %v542
      %v715 = vunpack.c.l.b16 %v543
      %v716 = vunpack.c.h.b16 %v543
      %v717 = vunpack.c.l.b16 %v544
      %v718 = vunpack.c.h.b16 %v544
      %v719 = vunpack.c.l.b16 %v545
      %v720 = vunpack.c.h.b16 %v545
      %v721 = vunpack.c.l.b16 %v546
      %v722 = vunpack.c.h.b16 %v546
      %v723 = vunpack.c.l.b16 %v547
      %v724 = vunpack.c.h.b16 %v547
      %v725 = vunpack.c.l.b16 %v548
      %v726 = vunpack.c.h.b16 %v548
      %v727 = vunpack.c.l.b16 %v549
      %v728 = vunpack.c.h.b16 %v549
      %v729 = vunpack.c.l.b16 %v550
      %v730 = vunpack.c.h.b16 %v550
      %v731 = vunpack.c.l.b16 %v551
      %v732 = vunpack.c.h.b16 %v551
      %v733 = vunpack.c.l.b16 %v552
      %v734 = vunpack.c.h.b16 %v552
      %v735 = vunpack.c.l.b16 %v553
      %v736 = vunpack.c.h.b16 %v553
      %v737 = vunpack.c.l.b16 %v554
      %v738 = vunpack.c.h.b16 %v554
      %v739 = vunpack.c.l.b16 %v555
      %v740 = vunpack.c.h.b16 %v555
      %v741 = vunpack.c.l.b16 %v556
      %v742 = vunpack.c.h.b16 %v556
      %v743 = vunpack.c.l.b16 %v557
      %v744 = vunpack.c.h.b16 %v557
      %v745 = vunpack.c.l.b16 %v558
      %v746 = vunpack.c.h.b16 %v558
      %v747 = vunpack.c.l.b16 %v559
      %v748 = vunpack.c.h.b16 %v559
      %v749 = vunpack.c.l.b16 %v560
      %v750 = vunpack.c.h.b16 %v560
      %v751 = vunpack.c.l.b16 %v561
      %v752 = vunpack.c.h.b16 %v561
      %v753 = vunpack.c.l.b16 %v562
      %v754 = vunpack.c.h.b16 %v562
      %v755 = vpack.c.b16 %v631, %v627
      %v756 = vpack.c.b16 %v632, %v628
      %v757 = vpack.c.b16 %v633, %v629
      %v758 = vpack.c.b16 %v634, %v630
      %v759 = vpack.c.b16 %v639, %v635
      %v760 = vpack.c.b16 %v640, %v636
      %v761 = vpack.c.b16 %v641, %v637
      %v762 = vpack.c.b16 %v642, %v638
      %v763 = vpack.c.b16 %v647, %v643
      %v764 = vpack.c.b16 %v648, %v644
      %v765 = vpack.c.b16 %v649, %v645
      %v766 = vpack.c.b16 %v650, %v646
      %v767 = vpack.c.b16 %v655, %v651
      %v768 = vpack.c.b16 %v656, %v652
      %v769 = vpack.c.b16 %v657, %v653
      %v770 = vpack.c.b16 %v658, %v654
      %v771 = vpack.c.b16 %v663, %v659
      %v772 = vpack.c.b16 %v664, %v660
      %v773 = vpack.c.b16 %v665, %v661
      %v774 = vpack.c.b16 %v666, %v662
      %v775 = vpack.c.b16 %v671, %v667
      %v776 = vpack.c.b16 %v672, %v668
      %v777 = vpack.c.b16 %v673, %v669
      %v778 = vpack.c.b16 %v674, %v670
      %v779 = vpack.c.b16 %v679, %v675
      %v780 = vpack.c.b16 %v680, %v676
      %v781 = vpack.c.b16 %v681, %v677
      %v782 = vpack.c.b16 %v682, %v678
      %v783 = vpack.c.b16 %v687, %v683
      %v784 = vpack.c.b16 %v688, %v684
      %v785 = vpack.c.b16 %v689, %v685
      %v786 = vpack.c.b16 %v690, %v686
      %v787 = vpack.c.b16 %v695, %v691
      %v788 = vpack.c.b16 %v696, %v692
      %v789 = vpack.c.b16 %v697, %v693
      %v790 = vpack.c.b16 %v698, %v694
      %v791 = vpack.c.b16 %v703, %v699
      %v792 = vpack.c.b16 %v704, %v700
      %v793 = vpack.c.b16 %v705, %v701
      %v794 = vpack.c.b16 %v706, %v702
      %v795 = vpack.c.b16 %v711, %v707
      %v796 = vpack.c.b16 %v712, %v708
      %v797 = vpack.c.b16 %v713, %v709
      %v798 = vpack.c.b16 %v714, %v710
      %v799 = vpack.c.b16 %v719, %v715
      %v800 = vpack.c.b16 %v720, %v716
      %v801 = vpack.c.b16 %v721, %v717
      %v802 = vpack.c.b16 %v722, %v718
      %v803 = vpack.c.b16 %v727, %v723
      %v804 = vpack.c.b16 %v728, %v724
      %v805 = vpack.c.b16 %v729, %v725
      %v806 = vpack.c.b16 %v730, %v726
      %v807 = vpack.c.b16 %v735, %v731
      %v808 = vpack.c.b16 %v736, %v732
      %v809 = vpack.c.b16 %v737, %v733
      %v810 = vpack.c.b16 %v738, %v734
      %v811 = vpack.c.b16 %v743, %v739
      %v812 = vpack.c.b16 %v744, %v740
      %v813 = vpack.c.b16 %v745, %v741
      %v814 = vpack.c.b16 %v746, %v742
      %v815 = vpack.c.b16 %v751, %v747
      %v816 = vpack.c.b16 %v752, %v748
      %v817 = vpack.c.b16 %v753, %v749
      %v818 = vpack.c.b16 %v754, %v750
      %883 = vmatpush.bf16.msra.mxu0 %v783
      %884 = vmatpush.bf16.msra.mxu0 %v779
      %885 = vmatpush.bf16.msra.mxu0 %v775
      %886 = vmatpush.bf16.msra.mxu0 %v771
      %887 = vmatpush.bf16.msra.mxu0 %v767
      %888 = vmatpush.bf16.msra.mxu0 %v763
      %889 = vmatpush.bf16.msra.mxu0 %v759
      %890 = vmatpush.bf16.msra.mxu0 %v755
      %891 = vmatmul.bf16.gmra.mxu0 %v435
      %v892 = vpop.f32.mrf.mxu0
      %v893 = vadd.f32 0.0, %v892
      %v894 = vpop.f32.mrf.mxu0
      %v895 = vadd.f32 0.0, %v894
      %896 = vmatmul.bf16.gmra.mxu0 %v436
      %v897 = vpop.f32.mrf.mxu0
      %v898 = vadd.f32 0.0, %v897
      %v899 = vpop.f32.mrf.mxu0
      %v900 = vadd.f32 0.0, %v899
      %901 = vmatmul.bf16.gmra.mxu0 %v437
      %v902 = vpop.f32.mrf.mxu0
      %v903 = vadd.f32 0.0, %v902
      %v904 = vpop.f32.mrf.mxu0
      %v905 = vadd.f32 0.0, %v904
      %906 = vmatmul.bf16.gmra.mxu0 %v438
      %v907 = vpop.f32.mrf.mxu0
      %v908 = vadd.f32 0.0, %v907
      %v909 = vpop.f32.mrf.mxu0
      %v910 = vadd.f32 0.0, %v909
      %911 = vmatmul.bf16.gmra.mxu0 %v439
      %v912 = vpop.f32.mrf.mxu0
      %v913 = vadd.f32 0.0, %v912
      %v914 = vpop.f32.mrf.mxu0
      %v915 = vadd.f32 0.0, %v914
      %916 = vmatmul.bf16.gmra.mxu0 %v440
      %v917 = vpop.f32.mrf.mxu0
      %v918 = vadd.f32 0.0, %v917
      %v919 = vpop.f32.mrf.mxu0
      %v920 = vadd.f32 0.0, %v919
      %921 = vmatmul.bf16.gmra.mxu0 %v441
      %v922 = vpop.f32.mrf.mxu0
      %v923 = vadd.f32 0.0, %v922
      %v924 = vpop.f32.mrf.mxu0
      %v925 = vadd.f32 0.0, %v924
      %926 = vmatmul.bf16.gmra.mxu0 %v442
      %v927 = vpop.f32.mrf.mxu0
      %v928 = vadd.f32 0.0, %v927
      %v929 = vpop.f32.mrf.mxu0
      %v930 = vadd.f32 0.0, %v929
      %931 = vdwg.mxu0
      %932 = vmatpush.bf16.msra.mxu0 %v815
      %933 = vmatpush.bf16.msra.mxu0 %v811
      %934 = vmatpush.bf16.msra.mxu0 %v807
      %935 = vmatpush.bf16.msra.mxu0 %v803
      %936 = vmatpush.bf16.msra.mxu0 %v799
      %937 = vmatpush.bf16.msra.mxu0 %v795
      %938 = vmatpush.bf16.msra.mxu0 %v791
      %939 = vmatpush.bf16.msra.mxu0 %v787
      %940 = vmatmul.bf16.gmra.mxu0 %v483
      %v941 = vpop.f32.mrf.mxu0
      %v942 = vadd.f32 %v893, %v941
      %v943 = vpop.f32.mrf.mxu0
      %v944 = vadd.f32 %v895, %v943
      %945 = vmatmul.bf16.gmra.mxu0 %v484
      %v946 = vpop.f32.mrf.mxu0
      %v947 = vadd.f32 %v898, %v946
      %v948 = vpop.f32.mrf.mxu0
      %v949 = vadd.f32 %v900, %v948
      %950 = vmatmul.bf16.gmra.mxu0 %v485
      %v951 = vpop.f32.mrf.mxu0
      %v952 = vadd.f32 %v903, %v951
      %v953 = vpop.f32.mrf.mxu0
      %v954 = vadd.f32 %v905, %v953
      %955 = vmatmul.bf16.gmra.mxu0 %v486
      %v956 = vpop.f32.mrf.mxu0
      %v957 = vadd.f32 %v908, %v956
      %v958 = vpop.f32.mrf.mxu0
      %v959 = vadd.f32 %v910, %v958
      %960 = vmatmul.bf16.gmra.mxu0 %v487
      %v961 = vpop.f32.mrf.mxu0
      %v962 = vadd.f32 %v913, %v961
      %v963 = vpop.f32.mrf.mxu0
      %v964 = vadd.f32 %v915, %v963
      %965 = vmatmul.bf16.gmra.mxu0 %v488
      %v966 = vpop.f32.mrf.mxu0
      %v967 = vadd.f32 %v918, %v966
      %v968 = vpop.f32.mrf.mxu0
      %v969 = vadd.f32 %v920, %v968
      %970 = vmatmul.bf16.gmra.mxu0 %v489
      %v971 = vpop.f32.mrf.mxu0
      %v972 = vadd.f32 %v923, %v971
      %v973 = vpop.f32.mrf.mxu0
      %v974 = vadd.f32 %v925, %v973
      %975 = vmatmul.bf16.gmra.mxu0 %v490
      %v976 = vpop.f32.mrf.mxu0
      %v977 = vadd.f32 %v928, %v976
      %v978 = vpop.f32.mrf.mxu0
      %v979 = vadd.f32 %v930, %v978
      %980 = vdwg.mxu0
      %981 = vmatpush.bf16.msra.mxu0 %v784
      %982 = vmatpush.bf16.msra.mxu0 %v780
      %983 = vmatpush.bf16.msra.mxu0 %v776
      %984 = vmatpush.bf16.msra.mxu0 %v772
      %985 = vmatpush.bf16.msra.mxu0 %v768
      %986 = vmatpush.bf16.msra.mxu0 %v764
      %987 = vmatpush.bf16.msra.mxu0 %v760
      %988 = vmatpush.bf16.msra.mxu0 %v756
      %989 = vmatmul.bf16.gmra.mxu0 %v435
      %v990 = vpop.f32.mrf.mxu0
      %v991 = vadd.f32 0.0, %v990
      %v992 = vpop.f32.mrf.mxu0
      %v993 = vadd.f32 0.0, %v992
      %994 = vmatmul.bf16.gmra.mxu0 %v436
      %v995 = vpop.f32.mrf.mxu0
      %v996 = vadd.f32 0.0, %v995
      %v997 = vpop.f32.mrf.mxu0
      %v998 = vadd.f32 0.0, %v997
      %999 = vmatmul.bf16.gmra.mxu0 %v437
      %v1000 = vpop.f32.mrf.mxu0
      %v1001 = vadd.f32 0.0, %v1000
      %v1002 = vpop.f32.mrf.mxu0
      %v1003 = vadd.f32 0.0, %v1002
      %1004 = vmatmul.bf16.gmra.mxu0 %v438
      %v1005 = vpop.f32.mrf.mxu0
      %v1006 = vadd.f32 0.0, %v1005
      %v1007 = vpop.f32.mrf.mxu0
      %v1008 = vadd.f32 0.0, %v1007
      %1009 = vmatmul.bf16.gmra.mxu0 %v439
      %v1010 = vpop.f32.mrf.mxu0
      %v1011 = vadd.f32 0.0, %v1010
      %v1012 = vpop.f32.mrf.mxu0
      %v1013 = vadd.f32 0.0, %v1012
      %1014 = vmatmul.bf16.gmra.mxu0 %v440
      %v1015 = vpop.f32.mrf.mxu0
      %v1016 = vadd.f32 0.0, %v1015
      %v1017 = vpop.f32.mrf.mxu0
      %v1018 = vadd.f32 0.0, %v1017
      %1019 = vmatmul.bf16.gmra.mxu0 %v441
      %v1020 = vpop.f32.mrf.mxu0
      %v1021 = vadd.f32 0.0, %v1020
      %v1022 = vpop.f32.mrf.mxu0
      %v1023 = vadd.f32 0.0, %v1022
      %1024 = vmatmul.bf16.gmra.mxu0 %v442
      %v1025 = vpop.f32.mrf.mxu0
      %v1026 = vadd.f32 0.0, %v1025
      %v1027 = vpop.f32.mrf.mxu0
      %v1028 = vadd.f32 0.0, %v1027
      %1029 = vdwg.mxu0
      %1030 = vmatpush.bf16.msra.mxu0 %v816
      %1031 = vmatpush.bf16.msra.mxu0 %v812
      %1032 = vmatpush.bf16.msra.mxu0 %v808
      %1033 = vmatpush.bf16.msra.mxu0 %v804
      %1034 = vmatpush.bf16.msra.mxu0 %v800
      %1035 = vmatpush.bf16.msra.mxu0 %v796
      %1036 = vmatpush.bf16.msra.mxu0 %v792
      %1037 = vmatpush.bf16.msra.mxu0 %v788
      %1038 = vmatmul.bf16.gmra.mxu0 %v483
      %v1039 = vpop.f32.mrf.mxu0
      %v1040 = vadd.f32 %v991, %v1039
      %v1041 = vpop.f32.mrf.mxu0
      %v1042 = vadd.f32 %v993, %v1041
      %1043 = vmatmul.bf16.gmra.mxu0 %v484
      %v1044 = vpop.f32.mrf.mxu0
      %v1045 = vadd.f32 %v996, %v1044
      %v1046 = vpop.f32.mrf.mxu0
      %v1047 = vadd.f32 %v998, %v1046
      %1048 = vmatmul.bf16.gmra.mxu0 %v485
      %v1049 = vpop.f32.mrf.mxu0
      %v1050 = vadd.f32 %v1001, %v1049
      %v1051 = vpop.f32.mrf.mxu0
      %v1052 = vadd.f32 %v1003, %v1051
      %1053 = vmatmul.bf16.gmra.mxu0 %v486
      %v1054 = vpop.f32.mrf.mxu0
      %v1055 = vadd.f32 %v1006, %v1054
      %v1056 = vpop.f32.mrf.mxu0
      %v1057 = vadd.f32 %v1008, %v1056
      %1058 = vmatmul.bf16.gmra.mxu0 %v487
      %v1059 = vpop.f32.mrf.mxu0
      %v1060 = vadd.f32 %v1011, %v1059
      %v1061 = vpop.f32.mrf.mxu0
      %v1062 = vadd.f32 %v1013, %v1061
      %1063 = vmatmul.bf16.gmra.mxu0 %v488
      %v1064 = vpop.f32.mrf.mxu0
      %v1065 = vadd.f32 %v1016, %v1064
      %v1066 = vpop.f32.mrf.mxu0
      %v1067 = vadd.f32 %v1018, %v1066
      %1068 = vmatmul.bf16.gmra.mxu0 %v489
      %v1069 = vpop.f32.mrf.mxu0
      %v1070 = vadd.f32 %v1021, %v1069
      %v1071 = vpop.f32.mrf.mxu0
      %v1072 = vadd.f32 %v1023, %v1071
      %1073 = vmatmul.bf16.gmra.mxu0 %v490
      %v1074 = vpop.f32.mrf.mxu0
      %v1075 = vadd.f32 %v1026, %v1074
      %v1076 = vpop.f32.mrf.mxu0
      %v1077 = vadd.f32 %v1028, %v1076
      %1078 = vdwg.mxu0
      %1079 = vmatpush.bf16.msra.mxu0 %v785
      %1080 = vmatpush.bf16.msra.mxu0 %v781
      %1081 = vmatpush.bf16.msra.mxu0 %v777
      %1082 = vmatpush.bf16.msra.mxu0 %v773
      %1083 = vmatpush.bf16.msra.mxu0 %v769
      %1084 = vmatpush.bf16.msra.mxu0 %v765
      %1085 = vmatpush.bf16.msra.mxu0 %v761
      %1086 = vmatpush.bf16.msra.mxu0 %v757
      %1087 = vmatmul.bf16.gmra.mxu0 %v435
      %v1088 = vpop.f32.mrf.mxu0
      %v1089 = vadd.f32 0.0, %v1088
      %v1090 = vpop.f32.mrf.mxu0
      %v1091 = vadd.f32 0.0, %v1090
      %1092 = vmatmul.bf16.gmra.mxu0 %v436
      %v1093 = vpop.f32.mrf.mxu0
      %v1094 = vadd.f32 0.0, %v1093
      %v1095 = vpop.f32.mrf.mxu0
      %v1096 = vadd.f32 0.0, %v1095
      %1097 = vmatmul.bf16.gmra.mxu0 %v437
      %v1098 = vpop.f32.mrf.mxu0
      %v1099 = vadd.f32 0.0, %v1098
      %v1100 = vpop.f32.mrf.mxu0
      %v1101 = vadd.f32 0.0, %v1100
      %1102 = vmatmul.bf16.gmra.mxu0 %v438
      %v1103 = vpop.f32.mrf.mxu0
      %v1104 = vadd.f32 0.0, %v1103
      %v1105 = vpop.f32.mrf.mxu0
      %v1106 = vadd.f32 0.0, %v1105
      %1107 = vmatmul.bf16.gmra.mxu0 %v439
      %v1108 = vpop.f32.mrf.mxu0
      %v1109 = vadd.f32 0.0, %v1108
      %v1110 = vpop.f32.mrf.mxu0
      %v1111 = vadd.f32 0.0, %v1110
      %1112 = vmatmul.bf16.gmra.mxu0 %v440
      %v1113 = vpop.f32.mrf.mxu0
      %v1114 = vadd.f32 0.0, %v1113
      %v1115 = vpop.f32.mrf.mxu0
      %v1116 = vadd.f32 0.0, %v1115
      %1117 = vmatmul.bf16.gmra.mxu0 %v441
      %v1118 = vpop.f32.mrf.mxu0
      %v1119 = vadd.f32 0.0, %v1118
      %v1120 = vpop.f32.mrf.mxu0
      %v1121 = vadd.f32 0.0, %v1120
      %1122 = vmatmul.bf16.gmra.mxu0 %v442
      %v1123 = vpop.f32.mrf.mxu0
      %v1124 = vadd.f32 0.0, %v1123
      %v1125 = vpop.f32.mrf.mxu0
      %v1126 = vadd.f32 0.0, %v1125
      %1127 = vdwg.mxu0
      %1128 = vmatpush.bf16.msra.mxu0 %v817
      %1129 = vmatpush.bf16.msra.mxu0 %v813
      %1130 = vmatpush.bf16.msra.mxu0 %v809
      %1131 = vmatpush.bf16.msra.mxu0 %v805
      %1132 = vmatpush.bf16.msra.mxu0 %v801
      %1133 = vmatpush.bf16.msra.mxu0 %v797
      %1134 = vmatpush.bf16.msra.mxu0 %v793
      %1135 = vmatpush.bf16.msra.mxu0 %v789
      %1136 = vmatmul.bf16.gmra.mxu0 %v483
      %v1137 = vpop.f32.mrf.mxu0
      %v1138 = vadd.f32 %v1089, %v1137
      %v1139 = vpop.f32.mrf.mxu0
      %v1140 = vadd.f32 %v1091, %v1139
      %1141 = vmatmul.bf16.gmra.mxu0 %v484
      %v1142 = vpop.f32.mrf.mxu0
      %v1143 = vadd.f32 %v1094, %v1142
      %v1144 = vpop.f32.mrf.mxu0
      %v1145 = vadd.f32 %v1096, %v1144
      %1146 = vmatmul.bf16.gmra.mxu0 %v485
      %v1147 = vpop.f32.mrf.mxu0
      %v1148 = vadd.f32 %v1099, %v1147
      %v1149 = vpop.f32.mrf.mxu0
      %v1150 = vadd.f32 %v1101, %v1149
      %1151 = vmatmul.bf16.gmra.mxu0 %v486
      %v1152 = vpop.f32.mrf.mxu0
      %v1153 = vadd.f32 %v1104, %v1152
      %v1154 = vpop.f32.mrf.mxu0
      %v1155 = vadd.f32 %v1106, %v1154
      %1156 = vmatmul.bf16.gmra.mxu0 %v487
      %v1157 = vpop.f32.mrf.mxu0
      %v1158 = vadd.f32 %v1109, %v1157
      %v1159 = vpop.f32.mrf.mxu0
      %v1160 = vadd.f32 %v1111, %v1159
      %1161 = vmatmul.bf16.gmra.mxu0 %v488
      %v1162 = vpop.f32.mrf.mxu0
      %v1163 = vadd.f32 %v1114, %v1162
      %v1164 = vpop.f32.mrf.mxu0
      %v1165 = vadd.f32 %v1116, %v1164
      %1166 = vmatmul.bf16.gmra.mxu0 %v489
      %v1167 = vpop.f32.mrf.mxu0
      %v1168 = vadd.f32 %v1119, %v1167
      %v1169 = vpop.f32.mrf.mxu0
      %v1170 = vadd.f32 %v1121, %v1169
      %1171 = vmatmul.bf16.gmra.mxu0 %v490
      %v1172 = vpop.f32.mrf.mxu0
      %v1173 = vadd.f32 %v1124, %v1172
      %v1174 = vpop.f32.mrf.mxu0
      %v1175 = vadd.f32 %v1126, %v1174
      %1176 = vdwg.mxu0
      %1177 = vmatpush.bf16.msra.mxu0 %v786
      %1178 = vmatpush.bf16.msra.mxu0 %v782
      %1179 = vmatpush.bf16.msra.mxu0 %v778
      %1180 = vmatpush.bf16.msra.mxu0 %v774
      %1181 = vmatpush.bf16.msra.mxu0 %v770
      %1182 = vmatpush.bf16.msra.mxu0 %v766
      %1183 = vmatpush.bf16.msra.mxu0 %v762
      %1184 = vmatpush.bf16.msra.mxu0 %v758
      %1185 = vmatmul.bf16.gmra.mxu0 %v435
      %v1186 = vpop.f32.mrf.mxu0
      %v1187 = vadd.f32 0.0, %v1186
      %v1188 = vpop.f32.mrf.mxu0
      %v1189 = vadd.f32 0.0, %v1188
      %1190 = vmatmul.bf16.gmra.mxu0 %v436
      %v1191 = vpop.f32.mrf.mxu0
      %v1192 = vadd.f32 0.0, %v1191
      %v1193 = vpop.f32.mrf.mxu0
      %v1194 = vadd.f32 0.0, %v1193
      %1195 = vmatmul.bf16.gmra.mxu0 %v437
      %v1196 = vpop.f32.mrf.mxu0
      %v1197 = vadd.f32 0.0, %v1196
      %v1198 = vpop.f32.mrf.mxu0
      %v1199 = vadd.f32 0.0, %v1198
      %1200 = vmatmul.bf16.gmra.mxu0 %v438
      %v1201 = vpop.f32.mrf.mxu0
      %v1202 = vadd.f32 0.0, %v1201
      %v1203 = vpop.f32.mrf.mxu0
      %v1204 = vadd.f32 0.0, %v1203
      %1205 = vmatmul.bf16.gmra.mxu0 %v439
      %v1206 = vpop.f32.mrf.mxu0
      %v1207 = vadd.f32 0.0, %v1206
      %v1208 = vpop.f32.mrf.mxu0
      %v1209 = vadd.f32 0.0, %v1208
      %1210 = vmatmul.bf16.gmra.mxu0 %v440
      %v1211 = vpop.f32.mrf.mxu0
      %v1212 = vadd.f32 0.0, %v1211
      %v1213 = vpop.f32.mrf.mxu0
      %v1214 = vadd.f32 0.0, %v1213
      %1215 = vmatmul.bf16.gmra.mxu0 %v441
      %v1216 = vpop.f32.mrf.mxu0
      %v1217 = vadd.f32 0.0, %v1216
      %v1218 = vpop.f32.mrf.mxu0
      %v1219 = vadd.f32 0.0, %v1218
      %1220 = vmatmul.bf16.gmra.mxu0 %v442
      %v1221 = vpop.f32.mrf.mxu0
      %v1222 = vadd.f32 0.0, %v1221
      %v1223 = vpop.f32.mrf.mxu0
      %v1224 = vadd.f32 0.0, %v1223
      %1225 = vdwg.mxu0
      %1226 = vmatpush.bf16.msra.mxu0 %v818
      %1227 = vmatpush.bf16.msra.mxu0 %v814
      %1228 = vmatpush.bf16.msra.mxu0 %v810
      %1229 = vmatpush.bf16.msra.mxu0 %v806
      %1230 = vmatpush.bf16.msra.mxu0 %v802
      %1231 = vmatpush.bf16.msra.mxu0 %v798
      %1232 = vmatpush.bf16.msra.mxu0 %v794
      %1233 = vmatpush.bf16.msra.mxu0 %v790
      %1234 = vmatmul.bf16.gmra.mxu0 %v483
      %v1235 = vpop.f32.mrf.mxu0
      %v1236 = vadd.f32 %v1187, %v1235
      %v1237 = vpop.f32.mrf.mxu0
      %v1238 = vadd.f32 %v1189, %v1237
      %1239 = vmatmul.bf16.gmra.mxu0 %v484
      %v1240 = vpop.f32.mrf.mxu0
      %v1241 = vadd.f32 %v1192, %v1240
      %v1242 = vpop.f32.mrf.mxu0
      %v1243 = vadd.f32 %v1194, %v1242
      %1244 = vmatmul.bf16.gmra.mxu0 %v485
      %v1245 = vpop.f32.mrf.mxu0
      %v1246 = vadd.f32 %v1197, %v1245
      %v1247 = vpop.f32.mrf.mxu0
      %v1248 = vadd.f32 %v1199, %v1247
      %1249 = vmatmul.bf16.gmra.mxu0 %v486
      %v1250 = vpop.f32.mrf.mxu0
      %v1251 = vadd.f32 %v1202, %v1250
      %v1252 = vpop.f32.mrf.mxu0
      %v1253 = vadd.f32 %v1204, %v1252
      %1254 = vmatmul.bf16.gmra.mxu0 %v487
      %v1255 = vpop.f32.mrf.mxu0
      %v1256 = vadd.f32 %v1207, %v1255
      %v1257 = vpop.f32.mrf.mxu0
      %v1258 = vadd.f32 %v1209, %v1257
      %1259 = vmatmul.bf16.gmra.mxu0 %v488
      %v1260 = vpop.f32.mrf.mxu0
      %v1261 = vadd.f32 %v1212, %v1260
      %v1262 = vpop.f32.mrf.mxu0
      %v1263 = vadd.f32 %v1214, %v1262
      %1264 = vmatmul.bf16.gmra.mxu0 %v489
      %v1265 = vpop.f32.mrf.mxu0
      %v1266 = vadd.f32 %v1217, %v1265
      %v1267 = vpop.f32.mrf.mxu0
      %v1268 = vadd.f32 %v1219, %v1267
      %1269 = vmatmul.bf16.gmra.mxu0 %v490
      %v1270 = vpop.f32.mrf.mxu0
      %v1271 = vadd.f32 %v1222, %v1270
      %v1272 = vpop.f32.mrf.mxu0
      %v1273 = vadd.f32 %v1224, %v1272
      %1274 = vdwg.mxu0
      %v1275 = vld [vmem:[%s5] sm:$0xff]
      %v1276 = vld [vmem:[%s5 + $0x8] sm:$0xff]
      %v1277 = vld [vmem:[%s5 + $0x10] sm:$0xff]
      %v1278 = vld [vmem:[%s5 + $0x18] sm:$0xff]
      %v1279 = vld [vmem:[%s5 + $0x20] sm:$0xff]
      %v1280 = vld [vmem:[%s5 + $0x28] sm:$0xff]
      %v1281 = vld [vmem:[%s5 + $0x30] sm:$0xff]
      %v1282 = vld [vmem:[%s5 + $0x38] sm:$0xff]
      %v1283 = vld [vmem:[%s5 + $0x40] sm:$0xff]
      %v1284 = vld [vmem:[%s5 + $0x48] sm:$0xff]
      %v1285 = vld [vmem:[%s5 + $0x50] sm:$0xff]
      %v1286 = vld [vmem:[%s5 + $0x58] sm:$0xff]
      %v1287 = vld [vmem:[%s5 + $0x60] sm:$0xff]
      %v1288 = vld [vmem:[%s5 + $0x68] sm:$0xff]
      %v1289 = vld [vmem:[%s5 + $0x70] sm:$0xff]
      %v1290 = vld [vmem:[%s5 + $0x78] sm:$0xff]
      %1292 = vset.pattern.permute.xlu0 0
      %1293 = vperm.xlu0 %1292, %v1275
      %v1294 = vpop.permute.xlu0 %1293
      %1297 = vset.pattern.permute.xlu0 0
      %1298 = vperm.xlu0 %1297, %v1276
      %v1299 = vpop.permute.xlu0 %1298
      %1302 = vset.pattern.permute.xlu0 0
      %1303 = vperm.xlu0 %1302, %v1277
      %v1304 = vpop.permute.xlu0 %1303
      %1307 = vset.pattern.permute.xlu0 0
      %1308 = vperm.xlu0 %1307, %v1278
      %v1309 = vpop.permute.xlu0 %1308
      %1312 = vset.pattern.permute.xlu0 0
      %1313 = vperm.xlu0 %1312, %v1279
      %v1314 = vpop.permute.xlu0 %1313
      %1317 = vset.pattern.permute.xlu0 0
      %1318 = vperm.xlu0 %1317, %v1280
      %v1319 = vpop.permute.xlu0 %1318
      %1322 = vset.pattern.permute.xlu0 0
      %1323 = vperm.xlu0 %1322, %v1281
      %v1324 = vpop.permute.xlu0 %1323
      %1327 = vset.pattern.permute.xlu0 0
      %1328 = vperm.xlu0 %1327, %v1282
      %v1329 = vpop.permute.xlu0 %1328
      %1332 = vset.pattern.permute.xlu0 0
      %1333 = vperm.xlu0 %1332, %v1283
      %v1334 = vpop.permute.xlu0 %1333
      %1337 = vset.pattern.permute.xlu0 0
      %1338 = vperm.xlu0 %1337, %v1284
      %v1339 = vpop.permute.xlu0 %1338
      %1342 = vset.pattern.permute.xlu0 0
      %1343 = vperm.xlu0 %1342, %v1285
      %v1344 = vpop.permute.xlu0 %1343
      %1347 = vset.pattern.permute.xlu0 0
      %1348 = vperm.xlu0 %1347, %v1286
      %v1349 = vpop.permute.xlu0 %1348
      %1352 = vset.pattern.permute.xlu0 0
      %1353 = vperm.xlu0 %1352, %v1287
      %v1354 = vpop.permute.xlu0 %1353
      %1357 = vset.pattern.permute.xlu0 0
      %1358 = vperm.xlu0 %1357, %v1288
      %v1359 = vpop.permute.xlu0 %1358
      %1362 = vset.pattern.permute.xlu0 0
      %1363 = vperm.xlu0 %1362, %v1289
      %v1364 = vpop.permute.xlu0 %1363
      %1367 = vset.pattern.permute.xlu0 0
      %1368 = vperm.xlu0 %1367, %v1290
      %v1369 = vpop.permute.xlu0 %1368
      %v1371 = vmul.f32 %v1294, %v942
      %v1372 = vmul.f32 %v1299, %v944
      %v1373 = vmul.f32 %v1304, %v947
      %v1374 = vmul.f32 %v1309, %v949
      %v1375 = vmul.f32 %v1314, %v952
      %v1376 = vmul.f32 %v1319, %v954
      %v1377 = vmul.f32 %v1324, %v957
      %v1378 = vmul.f32 %v1329, %v959
      %v1379 = vmul.f32 %v1334, %v962
      %v1380 = vmul.f32 %v1339, %v964
      %v1381 = vmul.f32 %v1344, %v967
      %v1382 = vmul.f32 %v1349, %v969
      %v1383 = vmul.f32 %v1354, %v972
      %v1384 = vmul.f32 %v1359, %v974
      %v1385 = vmul.f32 %v1364, %v977
      %v1386 = vmul.f32 %v1369, %v979
      %v1387 = vadd.f32 %v339, %v1371
      %v1388 = vadd.f32 %v340, %v1372
      %v1389 = vadd.f32 %v341, %v1373
      %v1390 = vadd.f32 %v342, %v1374
      %v1391 = vadd.f32 %v343, %v1375
      %v1392 = vadd.f32 %v344, %v1376
      %v1393 = vadd.f32 %v345, %v1377
      %v1394 = vadd.f32 %v346, %v1378
      %v1395 = vadd.f32 %v347, %v1379
      %v1396 = vadd.f32 %v348, %v1380
      %v1397 = vadd.f32 %v349, %v1381
      %v1398 = vadd.f32 %v350, %v1382
      %v1399 = vadd.f32 %v351, %v1383
      %v1400 = vadd.f32 %v352, %v1384
      %v1401 = vadd.f32 %v353, %v1385
      %v1402 = vadd.f32 %v354, %v1386
      %1403 = vset.pattern.permute.xlu0 1
      %1404 = vperm.xlu0 %1403, %v1275
      %v1405 = vpop.permute.xlu0 %1404
      %1407 = vset.pattern.permute.xlu0 1
      %1408 = vperm.xlu0 %1407, %v1276
      %v1409 = vpop.permute.xlu0 %1408
      %1411 = vset.pattern.permute.xlu0 1
      %1412 = vperm.xlu0 %1411, %v1277
      %v1413 = vpop.permute.xlu0 %1412
      %1415 = vset.pattern.permute.xlu0 1
      %1416 = vperm.xlu0 %1415, %v1278
      %v1417 = vpop.permute.xlu0 %1416
      %1419 = vset.pattern.permute.xlu0 1
      %1420 = vperm.xlu0 %1419, %v1279
      %v1421 = vpop.permute.xlu0 %1420
      %1423 = vset.pattern.permute.xlu0 1
      %1424 = vperm.xlu0 %1423, %v1280
      %v1425 = vpop.permute.xlu0 %1424
      %1427 = vset.pattern.permute.xlu0 1
      %1428 = vperm.xlu0 %1427, %v1281
      %v1429 = vpop.permute.xlu0 %1428
      %1431 = vset.pattern.permute.xlu0 1
      %1432 = vperm.xlu0 %1431, %v1282
      %v1433 = vpop.permute.xlu0 %1432
      %1435 = vset.pattern.permute.xlu0 1
      %1436 = vperm.xlu0 %1435, %v1283
      %v1437 = vpop.permute.xlu0 %1436
      %1439 = vset.pattern.permute.xlu0 1
      %1440 = vperm.xlu0 %1439, %v1284
      %v1441 = vpop.permute.xlu0 %1440
      %1443 = vset.pattern.permute.xlu0 1
      %1444 = vperm.xlu0 %1443, %v1285
      %v1445 = vpop.permute.xlu0 %1444
      %1447 = vset.pattern.permute.xlu0 1
      %1448 = vperm.xlu0 %1447, %v1286
      %v1449 = vpop.permute.xlu0 %1448
      %1451 = vset.pattern.permute.xlu0 1
      %1452 = vperm.xlu0 %1451, %v1287
      %v1453 = vpop.permute.xlu0 %1452
      %1455 = vset.pattern.permute.xlu0 1
      %1456 = vperm.xlu0 %1455, %v1288
      %v1457 = vpop.permute.xlu0 %1456
      %1459 = vset.pattern.permute.xlu0 1
      %1460 = vperm.xlu0 %1459, %v1289
      %v1461 = vpop.permute.xlu0 %1460
      %1463 = vset.pattern.permute.xlu0 1
      %1464 = vperm.xlu0 %1463, %v1290
      %v1465 = vpop.permute.xlu0 %1464
      %v1467 = vmul.f32 %v1405, %v1040
      %v1468 = vmul.f32 %v1409, %v1042
      %v1469 = vmul.f32 %v1413, %v1045
      %v1470 = vmul.f32 %v1417, %v1047
      %v1471 = vmul.f32 %v1421, %v1050
      %v1472 = vmul.f32 %v1425, %v1052
      %v1473 = vmul.f32 %v1429, %v1055
      %v1474 = vmul.f32 %v1433, %v1057
      %v1475 = vmul.f32 %v1437, %v1060
      %v1476 = vmul.f32 %v1441, %v1062
      %v1477 = vmul.f32 %v1445, %v1065
      %v1478 = vmul.f32 %v1449, %v1067
      %v1479 = vmul.f32 %v1453, %v1070
      %v1480 = vmul.f32 %v1457, %v1072
      %v1481 = vmul.f32 %v1461, %v1075
      %v1482 = vmul.f32 %v1465, %v1077
      %v1483 = vadd.f32 %v1387, %v1467
      %v1484 = vadd.f32 %v1388, %v1468
      %v1485 = vadd.f32 %v1389, %v1469
      %v1486 = vadd.f32 %v1390, %v1470
      %v1487 = vadd.f32 %v1391, %v1471
      %v1488 = vadd.f32 %v1392, %v1472
      %v1489 = vadd.f32 %v1393, %v1473
      %v1490 = vadd.f32 %v1394, %v1474
      %v1491 = vadd.f32 %v1395, %v1475
      %v1492 = vadd.f32 %v1396, %v1476
      %v1493 = vadd.f32 %v1397, %v1477
      %v1494 = vadd.f32 %v1398, %v1478
      %v1495 = vadd.f32 %v1399, %v1479
      %v1496 = vadd.f32 %v1400, %v1480
      %v1497 = vadd.f32 %v1401, %v1481
      %v1498 = vadd.f32 %v1402, %v1482
      %1499 = vset.pattern.permute.xlu0 2
      %1500 = vperm.xlu0 %1499, %v1275
      %v1501 = vpop.permute.xlu0 %1500
      %1503 = vset.pattern.permute.xlu0 2
      %1504 = vperm.xlu0 %1503, %v1276
      %v1505 = vpop.permute.xlu0 %1504
      %1507 = vset.pattern.permute.xlu0 2
      %1508 = vperm.xlu0 %1507, %v1277
      %v1509 = vpop.permute.xlu0 %1508
      %1511 = vset.pattern.permute.xlu0 2
      %1512 = vperm.xlu0 %1511, %v1278
      %v1513 = vpop.permute.xlu0 %1512
      %1515 = vset.pattern.permute.xlu0 2
      %1516 = vperm.xlu0 %1515, %v1279
      %v1517 = vpop.permute.xlu0 %1516
      %1519 = vset.pattern.permute.xlu0 2
      %1520 = vperm.xlu0 %1519, %v1280
      %v1521 = vpop.permute.xlu0 %1520
      %1523 = vset.pattern.permute.xlu0 2
      %1524 = vperm.xlu0 %1523, %v1281
      %v1525 = vpop.permute.xlu0 %1524
      %1527 = vset.pattern.permute.xlu0 2
      %1528 = vperm.xlu0 %1527, %v1282
      %v1529 = vpop.permute.xlu0 %1528
      %1531 = vset.pattern.permute.xlu0 2
      %1532 = vperm.xlu0 %1531, %v1283
      %v1533 = vpop.permute.xlu0 %1532
      %1535 = vset.pattern.permute.xlu0 2
      %1536 = vperm.xlu0 %1535, %v1284
      %v1537 = vpop.permute.xlu0 %1536
      %1539 = vset.pattern.permute.xlu0 2
      %1540 = vperm.xlu0 %1539, %v1285
      %v1541 = vpop.permute.xlu0 %1540
      %1543 = vset.pattern.permute.xlu0 2
      %1544 = vperm.xlu0 %1543, %v1286
      %v1545 = vpop.permute.xlu0 %1544
      %1547 = vset.pattern.permute.xlu0 2
      %1548 = vperm.xlu0 %1547, %v1287
      %v1549 = vpop.permute.xlu0 %1548
      %1551 = vset.pattern.permute.xlu0 2
      %1552 = vperm.xlu0 %1551, %v1288
      %v1553 = vpop.permute.xlu0 %1552
      %1555 = vset.pattern.permute.xlu0 2
      %1556 = vperm.xlu0 %1555, %v1289
      %v1557 = vpop.permute.xlu0 %1556
      %1559 = vset.pattern.permute.xlu0 2
      %1560 = vperm.xlu0 %1559, %v1290
      %v1561 = vpop.permute.xlu0 %1560
      %v1563 = vmul.f32 %v1501, %v1138
      %v1564 = vmul.f32 %v1505, %v1140
      %v1565 = vmul.f32 %v1509, %v1143
      %v1566 = vmul.f32 %v1513, %v1145
      %v1567 = vmul.f32 %v1517, %v1148
      %v1568 = vmul.f32 %v1521, %v1150
      %v1569 = vmul.f32 %v1525, %v1153
      %v1570 = vmul.f32 %v1529, %v1155
      %v1571 = vmul.f32 %v1533, %v1158
      %v1572 = vmul.f32 %v1537, %v1160
      %v1573 = vmul.f32 %v1541, %v1163
      %v1574 = vmul.f32 %v1545, %v1165
      %v1575 = vmul.f32 %v1549, %v1168
      %v1576 = vmul.f32 %v1553, %v1170
      %v1577 = vmul.f32 %v1557, %v1173
      %v1578 = vmul.f32 %v1561, %v1175
      %v1579 = vadd.f32 %v1483, %v1563
      %v1580 = vadd.f32 %v1484, %v1564
      %v1581 = vadd.f32 %v1485, %v1565
      %v1582 = vadd.f32 %v1486, %v1566
      %v1583 = vadd.f32 %v1487, %v1567
      %v1584 = vadd.f32 %v1488, %v1568
      %v1585 = vadd.f32 %v1489, %v1569
      %v1586 = vadd.f32 %v1490, %v1570
      %v1587 = vadd.f32 %v1491, %v1571
      %v1588 = vadd.f32 %v1492, %v1572
      %v1589 = vadd.f32 %v1493, %v1573
      %v1590 = vadd.f32 %v1494, %v1574
      %v1591 = vadd.f32 %v1495, %v1575
      %v1592 = vadd.f32 %v1496, %v1576
      %v1593 = vadd.f32 %v1497, %v1577
      %v1594 = vadd.f32 %v1498, %v1578
      %1595 = vset.pattern.permute.xlu0 3
      %1596 = vperm.xlu0 %1595, %v1275
      %v1597 = vpop.permute.xlu0 %1596
      %1599 = vset.pattern.permute.xlu0 3
      %1600 = vperm.xlu0 %1599, %v1276
      %v1601 = vpop.permute.xlu0 %1600
      %1603 = vset.pattern.permute.xlu0 3
      %1604 = vperm.xlu0 %1603, %v1277
      %v1605 = vpop.permute.xlu0 %1604
      %1607 = vset.pattern.permute.xlu0 3
      %1608 = vperm.xlu0 %1607, %v1278
      %v1609 = vpop.permute.xlu0 %1608
      %1611 = vset.pattern.permute.xlu0 3
      %1612 = vperm.xlu0 %1611, %v1279
      %v1613 = vpop.permute.xlu0 %1612
      %1615 = vset.pattern.permute.xlu0 3
      %1616 = vperm.xlu0 %1615, %v1280
      %v1617 = vpop.permute.xlu0 %1616
      %1619 = vset.pattern.permute.xlu0 3
      %1620 = vperm.xlu0 %1619, %v1281
      %v1621 = vpop.permute.xlu0 %1620
      %1623 = vset.pattern.permute.xlu0 3
      %1624 = vperm.xlu0 %1623, %v1282
      %v1625 = vpop.permute.xlu0 %1624
      %1627 = vset.pattern.permute.xlu0 3
      %1628 = vperm.xlu0 %1627, %v1283
      %v1629 = vpop.permute.xlu0 %1628
      %1631 = vset.pattern.permute.xlu0 3
      %1632 = vperm.xlu0 %1631, %v1284
      %v1633 = vpop.permute.xlu0 %1632
      %1635 = vset.pattern.permute.xlu0 3
      %1636 = vperm.xlu0 %1635, %v1285
      %v1637 = vpop.permute.xlu0 %1636
      %1639 = vset.pattern.permute.xlu0 3
      %1640 = vperm.xlu0 %1639, %v1286
      %v1641 = vpop.permute.xlu0 %1640
      %1643 = vset.pattern.permute.xlu0 3
      %1644 = vperm.xlu0 %1643, %v1287
      %v1645 = vpop.permute.xlu0 %1644
      %1647 = vset.pattern.permute.xlu0 3
      %1648 = vperm.xlu0 %1647, %v1288
      %v1649 = vpop.permute.xlu0 %1648
      %1651 = vset.pattern.permute.xlu0 3
      %1652 = vperm.xlu0 %1651, %v1289
      %v1653 = vpop.permute.xlu0 %1652
      %1655 = vset.pattern.permute.xlu0 3
      %1656 = vperm.xlu0 %1655, %v1290
      %v1657 = vpop.permute.xlu0 %1656
      %v1659 = vmul.f32 %v1597, %v1236
      %v1660 = vmul.f32 %v1601, %v1238
      %v1661 = vmul.f32 %v1605, %v1241
      %v1662 = vmul.f32 %v1609, %v1243
      %v1663 = vmul.f32 %v1613, %v1246
      %v1664 = vmul.f32 %v1617, %v1248
      %v1665 = vmul.f32 %v1621, %v1251
      %v1666 = vmul.f32 %v1625, %v1253
      %v1667 = vmul.f32 %v1629, %v1256
      %v1668 = vmul.f32 %v1633, %v1258
      %v1669 = vmul.f32 %v1637, %v1261
      %v1670 = vmul.f32 %v1641, %v1263
      %v1671 = vmul.f32 %v1645, %v1266
      %v1672 = vmul.f32 %v1649, %v1268
      %v1673 = vmul.f32 %v1653, %v1271
      %v1674 = vmul.f32 %v1657, %v1273
      %v1675 = vadd.f32 %v1579, %v1659
      %v1676 = vadd.f32 %v1580, %v1660
      %v1677 = vadd.f32 %v1581, %v1661
      %v1678 = vadd.f32 %v1582, %v1662
      %v1679 = vadd.f32 %v1583, %v1663
      %v1680 = vadd.f32 %v1584, %v1664
      %v1681 = vadd.f32 %v1585, %v1665
      %v1682 = vadd.f32 %v1586, %v1666
      %v1683 = vadd.f32 %v1587, %v1667
      %v1684 = vadd.f32 %v1588, %v1668
      %v1685 = vadd.f32 %v1589, %v1669
      %v1686 = vadd.f32 %v1590, %v1670
      %v1687 = vadd.f32 %v1591, %v1671
      %v1688 = vadd.f32 %v1592, %v1672
      %v1689 = vadd.f32 %v1593, %v1673
      %v1690 = vadd.f32 %v1594, %v1674
      %1691 = vst [vmem:[#allocation12] sm:$0xff] %v1675
      %1692 = vst [vmem:[#allocation12 + $0x8] sm:$0xff] %v1676
      %1693 = vst [vmem:[#allocation12 + $0x10] sm:$0xff] %v1677
      %1694 = vst [vmem:[#allocation12 + $0x18] sm:$0xff] %v1678
      %1695 = vst [vmem:[#allocation12 + $0x20] sm:$0xff] %v1679
      %1696 = vst [vmem:[#allocation12 + $0x28] sm:$0xff] %v1680
      %1697 = vst [vmem:[#allocation12 + $0x30] sm:$0xff] %v1681
      %1698 = vst [vmem:[#allocation12 + $0x38] sm:$0xff] %v1682
      %1699 = vst [vmem:[#allocation12 + $0x40] sm:$0xff] %v1683
      %1700 = vst [vmem:[#allocation12 + $0x48] sm:$0xff] %v1684
      %1701 = vst [vmem:[#allocation12 + $0x50] sm:$0xff] %v1685
      %1702 = vst [vmem:[#allocation12 + $0x58] sm:$0xff] %v1686
      %1703 = vst [vmem:[#allocation12 + $0x60] sm:$0xff] %v1687
      %1704 = vst [vmem:[#allocation12 + $0x68] sm:$0xff] %v1688
      %1705 = vst [vmem:[#allocation12 + $0x70] sm:$0xff] %v1689
      %1706 = vst [vmem:[#allocation12 + $0x78] sm:$0xff] %v1690
    $region45: #{tpu_custom_call.1} parent=1 // pred_fallthru
      _
    // Predicated region
    $region46: #{tpu_custom_call.1} parent=1 // pred_check
      _
    $region47: #{tpu_custom_call.1} parent=1 // pred_check_branch
      %1708 = sbr.rel (0) target = $region49
    $region48: #{tpu_custom_call.1} parent=1 // pred_region
      %1710 = vsyncadd [#allocation8], 0
      %s1711 = sshll.u32 [#allocation12], 4
      %s1712 = int_to_ptr.vmem [resolvable:$true] %s1711
      %s1713 = sshll.u32 %s7, 4
      %s1714 = int_to_ptr.hbm [resolvable:$true] %s1713
      %1719 = dma.vmem_to_hbm [thread:$0]  %s1712, 2048, %s1714, [#allocation8], 128, 128, 8
    $region49: #{tpu_custom_call.1} parent=1 // pred_fallthru
      _
    // Predicated region
    $region50: #{tpu_custom_call.1} parent=1 // pred_check
      _
    $region51: #{tpu_custom_call.1} parent=1 // pred_check_branch
      %1721 = sbr.rel (0) target = $region53
    $region52: #{tpu_custom_call.1} parent=1 // pred_region
      %1723 = dma.done [#allocation8], 2048
    $region53: #{tpu_custom_call.1} parent=1 // pred_fallthru
      _
    %1724 = vsyncpa [#allocation7], 1
    %1725 = vsyncpa [#allocation10], 1
    %1726 = vsyncpa [#allocation8], 1

// kernel: tpu_custom_call.1
$region0: #{tpu_custom_call.1}
  #allocation0 [shape = 'u32[]', space=smem, size = 0x4, offset = 0x4, fixed_abs, tag = 'smem constant byte address 0x4 - core index']
  #allocation1 [shape = 'u32[72,128]{1,0:T(1,128)}', space=vmem, size = 0x9000, scoped, tag = 'internal scratch']
  #allocation2 [shape = 'f32[128,128]{1,0:T(8,128)}', space=vmem, size = 0x10000, scoped, tag = 'scratch operand']
  #allocation3 [shape = 's32[1]{0}', space=sflag, size = 0x4, scoped, tag = 'scoped memory for tpu_custom_call.1']
  #allocation4 [shape = 's32[1]{0:T(128)S(6)}', space=smem, size = 0x200, scoped, tag = 'prefetched SMEM operand 0']
  #allocation5 [shape = 's32[1]{0:T(128)S(6)}', space=smem, size = 0x200, scoped, tag = 'prefetched SMEM operand 1']
  %s0 = inlined_call_operand.<no memory space> [shape: s32[1], index: 0, kind: input, shape index: {}]
  %s1 = inlined_call_operand.<no memory space> [shape: s32[1], index: 1, kind: input, shape index: {}]
  %s2 = inlined_call_operand.hbm [shape: bf16[128,128], index: 2, kind: input, shape index: {}]
  %s3 = inlined_call_operand.hbm [shape: bf16[128,128], index: 3, kind: input, shape index: {}]
  %s4 = inlined_call_operand.vmem [shape: f32[128,128], index: 4, kind: input, shape index: {}]
  %s5 = inlined_call_operand.vmem [shape: f32[128,4], index: 5, kind: input, shape index: {}]
  %s6 = inlined_call_operand.hbm [shape: bf16[256,512], index: 6, kind: input, shape index: {}]
  %s7 = inlined_call_operand.hbm [shape: f32[128,128], index: 7, kind: output, shape index: {}]
  %s8 = sld [smem:[#allocation0]]
  $region54: #{tpu_custom_call.1} parent=0
    _
  %s10 = ssub.s32 1, %s8
  %s11 = scalar_select 0, %s10, %s8
  %12 = sst [smem:[#allocation4]] %s0
  %13 = sst [smem:[#allocation5]] %s1
  $region1: #{tpu_custom_call.1} parent=0
    #allocation6 [shape = 'u8[32768]{0}', space=vmem, size = 0x8000, scoped, tag = 'input window, operand 2, single buffered']
    #allocation7 [shape = 's32[1]{0}', space=sflag, size = 0x4, scoped, tag = 'scoped memory for tpu_custom_call.1']
    #allocation8 [shape = 's32[1]{0}', space=sflag, size = 0x4, scoped, tag = 'scoped memory for tpu_custom_call.1']
    #allocation9 [shape = 'u8[32768]{0}', space=vmem, size = 0x8000, scoped, tag = 'input window, operand 3, single buffered']
    #allocation10 [shape = 's32[1]{0}', space=sflag, size = 0x4, scoped, tag = 'scoped memory for tpu_custom_call.1']
    #allocation11 [shape = 'u8[262144]{0}', space=vmem, size = 0x40000, scoped, tag = 'input window, operand 6, single buffered']
    #allocation12 [shape = 'u8[65536]{0}', space=vmem, size = 0x10000, scoped, tag = 'output window, operand 0, single buffered']
    %14 = vsyncpa [#allocation7], 0
    %15 = vsyncpa [#allocation10], 0
    %16 = vsyncpa [#allocation8], 0
    // Predicated region
    $region2: #{tpu_custom_call.1} parent=1 // pred_check
      _
    $region3: #{tpu_custom_call.1} parent=1 // pred_check_branch
      %18 = sbr.rel (0) target = $region5
    $region4: #{tpu_custom_call.1} parent=1 // pred_region
      %s19 = sadd.s32 0, 0
      %s20 = sld [smem:[#allocation4 + %s19]]
      %22 = vsyncadd [#allocation7], 0
      %s23 = smul.addr %s20, 4
      %s24 = scalar_lea.hbm %s2, %s23
      %s25 = sshll.u32 %s24, 4
      %s26 = int_to_ptr.hbm [resolvable:$true] %s25
      %s27 = sshll.u32 [#allocation6], 4
      %s28 = int_to_ptr.vmem [resolvable:$true] %s27
      %33 = dma.hbm_to_vmem [thread:$0]  %s26, 1024, %s28, [#allocation7], 64, 64, 4
    $region5: #{tpu_custom_call.1} parent=1 // pred_fallthru
      _
    // Predicated region
    $region6: #{tpu_custom_call.1} parent=1 // pred_check
      _
    $region7: #{tpu_custom_call.1} parent=1 // pred_check_branch
      %35 = sbr.rel (0) target = $region9
    $region8: #{tpu_custom_call.1} parent=1 // pred_region
      %s36 = sadd.s32 0, 0
      %s37 = sld [smem:[#allocation4 + %s36]]
      %s38 = smul.u32 16, %s37
      %40 = vsyncadd [#allocation10], 0
      %s41 = smul.addr %s38, 4
      %s42 = scalar_lea.hbm %s3, %s41
      %s43 = sshll.u32 %s42, 4
      %s44 = int_to_ptr.hbm [resolvable:$true] %s43
      %s45 = sshll.u32 [#allocation9], 4
      %s46 = int_to_ptr.vmem [resolvable:$true] %s45
      %51 = dma.hbm_to_vmem [thread:$0]  %s44, 1024, %s46, [#allocation10], 64, 64, 4
    $region9: #{tpu_custom_call.1} parent=1 // pred_fallthru
      _
    // Predicated region
    $region10: #{tpu_custom_call.1} parent=1 // pred_check
      _
    $region11: #{tpu_custom_call.1} parent=1 // pred_check_branch
      %53 = sbr.rel (0) target = $region13
    $region12: #{tpu_custom_call.1} parent=1 // pred_region
      _
    $region13: #{tpu_custom_call.1} parent=1 // pred_fallthru
      _
    // Predicated region
    $region14: #{tpu_custom_call.1} parent=1 // pred_check
      _
    $region15: #{tpu_custom_call.1} parent=1 // pred_check_branch
      %55 = sbr.rel (0) target = $region17
    $region16: #{tpu_custom_call.1} parent=1 // pred_region
      _
    $region17: #{tpu_custom_call.1} parent=1 // pred_fallthru
      _
    // Predicated region
    $region18: #{tpu_custom_call.1} parent=1 // pred_check
      _
    $region19: #{tpu_custom_call.1} parent=1 // pred_check_branch
      %57 = sbr.rel (0) target = $region21
    $region20: #{tpu_custom_call.1} parent=1 // pred_region
      %59 = vsyncadd [#allocation10], 0
      %s60 = sshll.u32 %s6, 4
      %s61 = int_to_ptr.hbm [resolvable:$true] %s60
      %s62 = sshll.u32 [#allocation11], 4
      %s63 = int_to_ptr.vmem [resolvable:$true] %s62
      %68 = dma.hbm_to_vmem [thread:$0]  %s61, 8192, %s63, [#allocation10], 256, 256, 16
    $region21: #{tpu_custom_call.1} parent=1 // pred_fallthru
      _
    // Predicated region
    $region22: #{tpu_custom_call.1} parent=1 // pred_check
      _
    $region23: #{tpu_custom_call.1} parent=1 // pred_check_branch
      %70 = sbr.rel (0) target = $region25
    $region24: #{tpu_custom_call.1} parent=1 // pred_region
      %72 = dma.done [#allocation7], 1024
    $region25: #{tpu_custom_call.1} parent=1 // pred_fallthru
      _
    // Predicated region
    $region26: #{tpu_custom_call.1} parent=1 // pred_check
      _
    $region27: #{tpu_custom_call.1} parent=1 // pred_check_branch
      %74 = sbr.rel (0) target = $region29
    $region28: #{tpu_custom_call.1} parent=1 // pred_region
      %76 = dma.done [#allocation10], 1024
    $region29: #{tpu_custom_call.1} parent=1 // pred_fallthru
      _
    // Predicated region
    $region30: #{tpu_custom_call.1} parent=1 // pred_check
      _
    $region31: #{tpu_custom_call.1} parent=1 // pred_check_branch
      %78 = sbr.rel (0) target = $region33
    $region32: #{tpu_custom_call.1} parent=1 // pred_region
      %80 = dma.done [#allocation10], 8192
    $region33: #{tpu_custom_call.1} parent=1 // pred_fallthru
      _
    %s81 = sadd.s32 0, 0
    %s82 = sld [smem:[#allocation4 + %s81]]
    %s83 = sadd.s32 0, 0
    %s84 = sld [smem:[#allocation4 + %s83]]
    %s85 = smul.u32 16, %s84
    %p86 = scmp.eq.s32.totalorder 0, 0
    // Predicated region
    $region34: #{tpu_custom_call.1} parent=1 // pred_check
      %p87 = pneg %p86
    $region35: #{tpu_custom_call.1} parent=1 // pred_check_branch
      %89 = sbr.rel (%p87) target = $region37
    $region36: #{tpu_custom_call.1} parent=1 // pred_region
      %90 = vst [vmem:[#allocation2] sm:$0xff] 0.0
      %91 = vst [vmem:[#allocation2 + $0x8] sm:$0xff] 0.0
      %92 = vst [vmem:[#allocation2 + $0x10] sm:$0xff] 0.0
      %93 = vst [vmem:[#allocation2 + $0x18] sm:$0xff] 0.0
      %94 = vst [vmem:[#allocation2 + $0x20] sm:$0xff] 0.0
      %95 = vst [vmem:[#allocation2 + $0x28] sm:$0xff] 0.0
      %96 = vst [vmem:[#allocation2 + $0x30] sm:$0xff] 0.0
      %97 = vst [vmem:[#allocation2 + $0x38] sm:$0xff] 0.0
      %98 = vst [vmem:[#allocation2 + $0x40] sm:$0xff] 0.0
      %99 = vst [vmem:[#allocation2 + $0x48] sm:$0xff] 0.0
      %100 = vst [vmem:[#allocation2 + $0x50] sm:$0xff] 0.0
      %101 = vst [vmem:[#allocation2 + $0x58] sm:$0xff] 0.0
      %102 = vst [vmem:[#allocation2 + $0x60] sm:$0xff] 0.0
      %103 = vst [vmem:[#allocation2 + $0x68] sm:$0xff] 0.0
      %104 = vst [vmem:[#allocation2 + $0x70] sm:$0xff] 0.0
      %105 = vst [vmem:[#allocation2 + $0x78] sm:$0xff] 0.0
    $region37: #{tpu_custom_call.1} parent=1 // pred_fallthru
      _
    %s106 = sld [smem:[#allocation5]]
    %p107 = scmp.lt.s32.totalorder 0, %s106
    // Predicated region
    $region38: #{tpu_custom_call.1} parent=1 // pred_check
      %p108 = pneg %p107
    $region39: #{tpu_custom_call.1} parent=1 // pred_check_branch
      %110 = sbr.rel (%p108) target = $region41
    $region40: #{tpu_custom_call.1} parent=1 // pred_region
      %v111 = vld [vmem:[#allocation2] sm:$0xff]
      %v112 = vld [vmem:[#allocation2 + $0x8] sm:$0xff]
      %v113 = vld [vmem:[#allocation2 + $0x10] sm:$0xff]
      %v114 = vld [vmem:[#allocation2 + $0x18] sm:$0xff]
      %v115 = vld [vmem:[#allocation2 + $0x20] sm:$0xff]
      %v116 = vld [vmem:[#allocation2 + $0x28] sm:$0xff]
      %v117 = vld [vmem:[#allocation2 + $0x30] sm:$0xff]
      %v118 = vld [vmem:[#allocation2 + $0x38] sm:$0xff]
      %v119 = vld [vmem:[#allocation2 + $0x40] sm:$0xff]
      %v120 = vld [vmem:[#allocation2 + $0x48] sm:$0xff]
      %v121 = vld [vmem:[#allocation2 + $0x50] sm:$0xff]
      %v122 = vld [vmem:[#allocation2 + $0x58] sm:$0xff]
      %v123 = vld [vmem:[#allocation2 + $0x60] sm:$0xff]
      %v124 = vld [vmem:[#allocation2 + $0x68] sm:$0xff]
      %v125 = vld [vmem:[#allocation2 + $0x70] sm:$0xff]
      %v126 = vld [vmem:[#allocation2 + $0x78] sm:$0xff]
      %v127 = vld [vmem:[#allocation6] sm:$0xf]
      %v128 = vld [vmem:[#allocation6 + $0x4] sm:$0xf]
      %v129 = vld [vmem:[#allocation6 + $0x8] sm:$0xf]
      %v130 = vld [vmem:[#allocation6 + $0xc] sm:$0xf]
      %v131 = vld [vmem:[#allocation6 + $0x10] sm:$0xf]
      %v132 = vld [vmem:[#allocation6 + $0x14] sm:$0xf]
      %v133 = vld [vmem:[#allocation6 + $0x18] sm:$0xf]
      %v134 = vld [vmem:[#allocation6 + $0x1c] sm:$0xf]
      %v135 = vld [vmem:[#allocation6 + $0x20] sm:$0xf]
      %v136 = vld [vmem:[#allocation6 + $0x24] sm:$0xf]
      %v137 = vld [vmem:[#allocation6 + $0x28] sm:$0xf]
      %v138 = vld [vmem:[#allocation6 + $0x2c] sm:$0xf]
      %v139 = vld [vmem:[#allocation6 + $0x30] sm:$0xf]
      %v140 = vld [vmem:[#allocation6 + $0x34] sm:$0xf]
      %v141 = vld [vmem:[#allocation6 + $0x38] sm:$0xf]
      %v142 = vld [vmem:[#allocation6 + $0x3c] sm:$0xf]
      %v143 = vld [vmem:[#allocation9] sm:$0xf]
      %v144 = vld [vmem:[#allocation9 + $0x4] sm:$0xf]
      %v145 = vld [vmem:[#allocation9 + $0x8] sm:$0xf]
      %v146 = vld [vmem:[#allocation9 + $0xc] sm:$0xf]
      %v147 = vld [vmem:[#allocation9 + $0x10] sm:$0xf]
      %v148 = vld [vmem:[#allocation9 + $0x14] sm:$0xf]
      %v149 = vld [vmem:[#allocation9 + $0x18] sm:$0xf]
      %v150 = vld [vmem:[#allocation9 + $0x1c] sm:$0xf]
      %v151 = vld [vmem:[#allocation9 + $0x20] sm:$0xf]
      %v152 = vld [vmem:[#allocation9 + $0x24] sm:$0xf]
      %v153 = vld [vmem:[#allocation9 + $0x28] sm:$0xf]
      %v154 = vld [vmem:[#allocation9 + $0x2c] sm:$0xf]
      %v155 = vld [vmem:[#allocation9 + $0x30] sm:$0xf]
      %v156 = vld [vmem:[#allocation9 + $0x34] sm:$0xf]
      %v157 = vld [vmem:[#allocation9 + $0x38] sm:$0xf]
      %v158 = vld [vmem:[#allocation9 + $0x3c] sm:$0xf]
      %v175 = vunpack.c.l.b16 %v127
      %v176 = vunpack.c.l.b16 %v128
      %v177 = vunpack.c.l.b16 %v129
      %v178 = vunpack.c.l.b16 %v130
      %v179 = vunpack.c.l.b16 %v131
      %v180 = vunpack.c.l.b16 %v132
      %v181 = vunpack.c.l.b16 %v133
      %v182 = vunpack.c.l.b16 %v134
      %v183 = vunpack.c.l.b16 %v135
      %v184 = vunpack.c.l.b16 %v136
      %v185 = vunpack.c.l.b16 %v137
      %v186 = vunpack.c.l.b16 %v138
      %v187 = vunpack.c.l.b16 %v139
      %v188 = vunpack.c.l.b16 %v140
      %v189 = vunpack.c.l.b16 %v141
      %v190 = vunpack.c.l.b16 %v142
      %v191 = vpack.c.b16 %v176, %v175
      %v192 = vpack.c.b16 %v178, %v177
      %v193 = vpack.c.b16 %v180, %v179
      %v194 = vpack.c.b16 %v182, %v181
      %v195 = vpack.c.b16 %v184, %v183
      %v196 = vpack.c.b16 %v186, %v185
      %v197 = vpack.c.b16 %v188, %v187
      %v198 = vpack.c.b16 %v190, %v189
      %v223 = vunpack.c.l.b16 %v143
      %v224 = vunpack.c.l.b16 %v144
      %v225 = vunpack.c.l.b16 %v145
      %v226 = vunpack.c.l.b16 %v146
      %v227 = vunpack.c.l.b16 %v147
      %v228 = vunpack.c.l.b16 %v148
      %v229 = vunpack.c.l.b16 %v149
      %v230 = vunpack.c.l.b16 %v150
      %v231 = vunpack.c.l.b16 %v151
      %v232 = vunpack.c.l.b16 %v152
      %v233 = vunpack.c.l.b16 %v153
      %v234 = vunpack.c.l.b16 %v154
      %v235 = vunpack.c.l.b16 %v155
      %v236 = vunpack.c.l.b16 %v156
      %v237 = vunpack.c.l.b16 %v157
      %v238 = vunpack.c.l.b16 %v158
      %v239 = vpack.c.b16 %v224, %v223
      %v240 = vpack.c.b16 %v226, %v225
      %v241 = vpack.c.b16 %v228, %v227
      %v242 = vpack.c.b16 %v230, %v229
      %v243 = vpack.c.b16 %v232, %v231
      %v244 = vpack.c.b16 %v234, %v233
      %v245 = vpack.c.b16 %v236, %v235
      %v246 = vpack.c.b16 %v238, %v237
      %255 = vmatpush.bf16.msra.mxu0 %v246
      %256 = vmatpush.bf16.msra.mxu0 %v245
      %257 = vmatpush.bf16.msra.mxu0 %v244
      %258 = vmatpush.bf16.msra.mxu0 %v243
      %259 = vmatpush.bf16.msra.mxu0 %v242
      %260 = vmatpush.bf16.msra.mxu0 %v241
      %261 = vmatpush.bf16.msra.mxu0 %v240
      %262 = vmatpush.bf16.msra.mxu0 %v239
      %263 = vmatmul.bf16.gmra.mxu0 %v191
      %v264 = vpop.f32.mrf.mxu0
      %v265 = vadd.f32 0.0, %v264
      %v266 = vpop.f32.mrf.mxu0
      %v267 = vadd.f32 0.0, %v266
      %268 = vmatmul.bf16.gmra.mxu0 %v192
      %v269 = vpop.f32.mrf.mxu0
      %v270 = vadd.f32 0.0, %v269
      %v271 = vpop.f32.mrf.mxu0
      %v272 = vadd.f32 0.0, %v271
      %273 = vmatmul.bf16.gmra.mxu0 %v193
      %v274 = vpop.f32.mrf.mxu0
      %v275 = vadd.f32 0.0, %v274
      %v276 = vpop.f32.mrf.mxu0
      %v277 = vadd.f32 0.0, %v276
      %278 = vmatmul.bf16.gmra.mxu0 %v194
      %v279 = vpop.f32.mrf.mxu0
      %v280 = vadd.f32 0.0, %v279
      %v281 = vpop.f32.mrf.mxu0
      %v282 = vadd.f32 0.0, %v281
      %283 = vmatmul.bf16.gmra.mxu0 %v195
      %v284 = vpop.f32.mrf.mxu0
      %v285 = vadd.f32 0.0, %v284
      %v286 = vpop.f32.mrf.mxu0
      %v287 = vadd.f32 0.0, %v286
      %288 = vmatmul.bf16.gmra.mxu0 %v196
      %v289 = vpop.f32.mrf.mxu0
      %v290 = vadd.f32 0.0, %v289
      %v291 = vpop.f32.mrf.mxu0
      %v292 = vadd.f32 0.0, %v291
      %293 = vmatmul.bf16.gmra.mxu0 %v197
      %v294 = vpop.f32.mrf.mxu0
      %v295 = vadd.f32 0.0, %v294
      %v296 = vpop.f32.mrf.mxu0
      %v297 = vadd.f32 0.0, %v296
      %298 = vmatmul.bf16.gmra.mxu0 %v198
      %v299 = vpop.f32.mrf.mxu0
      %v300 = vadd.f32 0.0, %v299
      %v301 = vpop.f32.mrf.mxu0
      %v302 = vadd.f32 0.0, %v301
      %303 = vdwg.mxu0
      %v304 = vadd.f32 %v111, %v265
      %v305 = vadd.f32 %v112, %v267
      %v306 = vadd.f32 %v113, %v270
      %v307 = vadd.f32 %v114, %v272
      %v308 = vadd.f32 %v115, %v275
      %v309 = vadd.f32 %v116, %v277
      %v310 = vadd.f32 %v117, %v280
      %v311 = vadd.f32 %v118, %v282
      %v312 = vadd.f32 %v119, %v285
      %v313 = vadd.f32 %v120, %v287
      %v314 = vadd.f32 %v121, %v290
      %v315 = vadd.f32 %v122, %v292
      %v316 = vadd.f32 %v123, %v295
      %v317 = vadd.f32 %v124, %v297
      %v318 = vadd.f32 %v125, %v300
      %v319 = vadd.f32 %v126, %v302
      %320 = vst [vmem:[#allocation2] sm:$0xff] %v304
      %321 = vst [vmem:[#allocation2 + $0x8] sm:$0xff] %v305
      %322 = vst [vmem:[#allocation2 + $0x10] sm:$0xff] %v306
      %323 = vst [vmem:[#allocation2 + $0x18] sm:$0xff] %v307
      %324 = vst [vmem:[#allocation2 + $0x20] sm:$0xff] %v308
      %325 = vst [vmem:[#allocation2 + $0x28] sm:$0xff] %v309
      %326 = vst [vmem:[#allocation2 + $0x30] sm:$0xff] %v310
      %327 = vst [vmem:[#allocation2 + $0x38] sm:$0xff] %v311
      %328 = vst [vmem:[#allocation2 + $0x40] sm:$0xff] %v312
      %329 = vst [vmem:[#allocation2 + $0x48] sm:$0xff] %v313
      %330 = vst [vmem:[#allocation2 + $0x50] sm:$0xff] %v314
      %331 = vst [vmem:[#allocation2 + $0x58] sm:$0xff] %v315
      %332 = vst [vmem:[#allocation2 + $0x60] sm:$0xff] %v316
      %333 = vst [vmem:[#allocation2 + $0x68] sm:$0xff] %v317
      %334 = vst [vmem:[#allocation2 + $0x70] sm:$0xff] %v318
      %335 = vst [vmem:[#allocation2 + $0x78] sm:$0xff] %v319
    $region41: #{tpu_custom_call.1} parent=1 // pred_fallthru
      _
    // Predicated region
    $region42: #{tpu_custom_call.1} parent=1 // pred_check
      %p336 = pneg %p86
    $region43: #{tpu_custom_call.1} parent=1 // pred_check_branch
      %338 = sbr.rel (%p336) target = $region45
    $region44: #{tpu_custom_call.1} parent=1 // pred_region
      %v339 = vld [vmem:[%s4] sm:$0xff]
      %v340 = vld [vmem:[%s4 + $0x8] sm:$0xff]
      %v341 = vld [vmem:[%s4 + $0x10] sm:$0xff]
      %v342 = vld [vmem:[%s4 + $0x18] sm:$0xff]
      %v343 = vld [vmem:[%s4 + $0x20] sm:$0xff]
      %v344 = vld [vmem:[%s4 + $0x28] sm:$0xff]
      %v345 = vld [vmem:[%s4 + $0x30] sm:$0xff]
      %v346 = vld [vmem:[%s4 + $0x38] sm:$0xff]
      %v347 = vld [vmem:[%s4 + $0x40] sm:$0xff]
      %v348 = vld [vmem:[%s4 + $0x48] sm:$0xff]
      %v349 = vld [vmem:[%s4 + $0x50] sm:$0xff]
      %v350 = vld [vmem:[%s4 + $0x58] sm:$0xff]
      %v351 = vld [vmem:[%s4 + $0x60] sm:$0xff]
      %v352 = vld [vmem:[%s4 + $0x68] sm:$0xff]
      %v353 = vld [vmem:[%s4 + $0x70] sm:$0xff]
      %v354 = vld [vmem:[%s4 + $0x78] sm:$0xff]
      %v355 = vld [vmem:[#allocation2] sm:$0xff]
      %v356 = vld [vmem:[#allocation2 + $0x8] sm:$0xff]
      %v357 = vld [vmem:[#allocation2 + $0x10] sm:$0xff]
      %v358 = vld [vmem:[#allocation2 + $0x18] sm:$0xff]
      %v359 = vld [vmem:[#allocation2 + $0x20] sm:$0xff]
      %v360 = vld [vmem:[#allocation2 + $0x28] sm:$0xff]
      %v361 = vld [vmem:[#allocation2 + $0x30] sm:$0xff]
      %v362 = vld [vmem:[#allocation2 + $0x38] sm:$0xff]
      %v363 = vld [vmem:[#allocation2 + $0x40] sm:$0xff]
      %v364 = vld [vmem:[#allocation2 + $0x48] sm:$0xff]
      %v365 = vld [vmem:[#allocation2 + $0x50] sm:$0xff]
      %v366 = vld [vmem:[#allocation2 + $0x58] sm:$0xff]
      %v367 = vld [vmem:[#allocation2 + $0x60] sm:$0xff]
      %v368 = vld [vmem:[#allocation2 + $0x68] sm:$0xff]
      %v369 = vld [vmem:[#allocation2 + $0x70] sm:$0xff]
      %v370 = vld [vmem:[#allocation2 + $0x78] sm:$0xff]
      %v371 = vpack.c.bf16 %v355, %v355
      %v372 = vpack.c.bf16 %v356, %v356
      %v373 = vpack.c.bf16 %v357, %v357
      %v374 = vpack.c.bf16 %v358, %v358
      %v375 = vpack.c.bf16 %v359, %v359
      %v376 = vpack.c.bf16 %v360, %v360
      %v377 = vpack.c.bf16 %v361, %v361
      %v378 = vpack.c.bf16 %v362, %v362
      %v379 = vpack.c.bf16 %v363, %v363
      %v380 = vpack.c.bf16 %v364, %v364
      %v381 = vpack.c.bf16 %v365, %v365
      %v382 = vpack.c.bf16 %v366, %v366
      %v383 = vpack.c.bf16 %v367, %v367
      %v384 = vpack.c.bf16 %v368, %v368
      %v385 = vpack.c.bf16 %v369, %v369
      %v386 = vpack.c.bf16 %v370, %v370
      %v387 = vpack.c.bf16 %v339, %v339
      %v388 = vpack.c.bf16 %v340, %v340
      %v389 = vpack.c.bf16 %v341, %v341
      %v390 = vpack.c.bf16 %v342, %v342
      %v391 = vpack.c.bf16 %v343, %v343
      %v392 = vpack.c.bf16 %v344, %v344
      %v393 = vpack.c.bf16 %v345, %v345
      %v394 = vpack.c.bf16 %v346, %v346
      %v395 = vpack.c.bf16 %v347, %v347
      %v396 = vpack.c.bf16 %v348, %v348
      %v397 = vpack.c.bf16 %v349, %v349
      %v398 = vpack.c.bf16 %v350, %v350
      %v399 = vpack.c.bf16 %v351, %v351
      %v400 = vpack.c.bf16 %v352, %v352
      %v401 = vpack.c.bf16 %v353, %v353
      %v402 = vpack.c.bf16 %v354, %v354
      %v419 = vunpack.c.l.b16 %v371
      %v420 = vunpack.c.l.b16 %v372
      %v421 = vunpack.c.l.b16 %v373
      %v422 = vunpack.c.l.b16 %v374
      %v423 = vunpack.c.l.b16 %v375
      %v424 = vunpack.c.l.b16 %v376
      %v425 = vunpack.c.l.b16 %v377
      %v426 = vunpack.c.l.b16 %v378
      %v427 = vunpack.c.l.b16 %v379
      %v428 = vunpack.c.l.b16 %v380
      %v429 = vunpack.c.l.b16 %v381
      %v430 = vunpack.c.l.b16 %v382
      %v431 = vunpack.c.l.b16 %v383
      %v432 = vunpack.c.l.b16 %v384
      %v433 = vunpack.c.l.b16 %v385
      %v434 = vunpack.c.l.b16 %v386
      %v435 = vpack.c.b16 %v420, %v419
      %v436 = vpack.c.b16 %v422, %v421
      %v437 = vpack.c.b16 %v424, %v423
      %v438 = vpack.c.b16 %v426, %v425
      %v439 = vpack.c.b16 %v428, %v427
      %v440 = vpack.c.b16 %v430, %v429
      %v441 = vpack.c.b16 %v432, %v431
      %v442 = vpack.c.b16 %v434, %v433
      %v467 = vunpack.c.l.b16 %v387
      %v468 = vunpack.c.l.b16 %v388
      %v469 = vunpack.c.l.b16 %v389
      %v470 = vunpack.c.l.b16 %v390
      %v471 = vunpack.c.l.b16 %v391
      %v472 = vunpack.c.l.b16 %v392
      %v473 = vunpack.c.l.b16 %v393
      %v474 = vunpack.c.l.b16 %v394
      %v475 = vunpack.c.l.b16 %v395
      %v476 = vunpack.c.l.b16 %v396
      %v477 = vunpack.c.l.b16 %v397
      %v478 = vunpack.c.l.b16 %v398
      %v479 = vunpack.c.l.b16 %v399
      %v480 = vunpack.c.l.b16 %v400
      %v481 = vunpack.c.l.b16 %v401
      %v482 = vunpack.c.l.b16 %v402
      %v483 = vpack.c.b16 %v468, %v467
      %v484 = vpack.c.b16 %v470, %v469
      %v485 = vpack.c.b16 %v472, %v471
      %v486 = vpack.c.b16 %v474, %v473
      %v487 = vpack.c.b16 %v476, %v475
      %v488 = vpack.c.b16 %v478, %v477
      %v489 = vpack.c.b16 %v480, %v479
      %v490 = vpack.c.b16 %v482, %v481
      %v499 = vld [vmem:[#allocation11] sm:$0xff]
      %v500 = vld [vmem:[#allocation11 + $0x8] sm:$0xff]
      %v501 = vld [vmem:[#allocation11 + $0x10] sm:$0xff]
      %v502 = vld [vmem:[#allocation11 + $0x18] sm:$0xff]
      %v503 = vld [vmem:[#allocation11 + $0x20] sm:$0xff]
      %v504 = vld [vmem:[#allocation11 + $0x28] sm:$0xff]
      %v505 = vld [vmem:[#allocation11 + $0x30] sm:$0xff]
      %v506 = vld [vmem:[#allocation11 + $0x38] sm:$0xff]
      %v507 = vld [vmem:[#allocation11 + $0x40] sm:$0xff]
      %v508 = vld [vmem:[#allocation11 + $0x48] sm:$0xff]
      %v509 = vld [vmem:[#allocation11 + $0x50] sm:$0xff]
      %v510 = vld [vmem:[#allocation11 + $0x58] sm:$0xff]
      %v511 = vld [vmem:[#allocation11 + $0x60] sm:$0xff]
      %v512 = vld [vmem:[#allocation11 + $0x68] sm:$0xff]
      %v513 = vld [vmem:[#allocation11 + $0x70] sm:$0xff]
      %v514 = vld [vmem:[#allocation11 + $0x78] sm:$0xff]
      %v515 = vld [vmem:[#allocation11 + $0x80] sm:$0xff]
      %v516 = vld [vmem:[#allocation11 + $0x88] sm:$0xff]
      %v517 = vld [vmem:[#allocation11 + $0x90] sm:$0xff]
      %v518 = vld [vmem:[#allocation11 + $0x98] sm:$0xff]
      %v519 = vld [vmem:[#allocation11 + $0xa0] sm:$0xff]
      %v520 = vld [vmem:[#allocation11 + $0xa8] sm:$0xff]
      %v521 = vld [vmem:[#allocation11 + $0xb0] sm:$0xff]
      %v522 = vld [vmem:[#allocation11 + $0xb8] sm:$0xff]
      %v523 = vld [vmem:[#allocation11 + $0xc0] sm:$0xff]
      %v524 = vld [vmem:[#allocation11 + $0xc8] sm:$0xff]
      %v525 = vld [vmem:[#allocation11 + $0xd0] sm:$0xff]
      %v526 = vld [vmem:[#allocation11 + $0xd8] sm:$0xff]
      %v527 = vld [vmem:[#allocation11 + $0xe0] sm:$0xff]
      %v528 = vld [vmem:[#allocation11 + $0xe8] sm:$0xff]
      %v529 = vld [vmem:[#allocation11 + $0xf0] sm:$0xff]
      %v530 = vld [vmem:[#allocation11 + $0xf8] sm:$0xff]
      %v531 = vld [vmem:[#allocation11 + $0x100] sm:$0xff]
      %v532 = vld [vmem:[#allocation11 + $0x108] sm:$0xff]
      %v533 = vld [vmem:[#allocation11 + $0x110] sm:$0xff]
      %v534 = vld [vmem:[#allocation11 + $0x118] sm:$0xff]
      %v535 = vld [vmem:[#allocation11 + $0x120] sm:$0xff]
      %v536 = vld [vmem:[#allocation11 + $0x128] sm:$0xff]
      %v537 = vld [vmem:[#allocation11 + $0x130] sm:$0xff]
      %v538 = vld [vmem:[#allocation11 + $0x138] sm:$0xff]
      %v539 = vld [vmem:[#allocation11 + $0x140] sm:$0xff]
      %v540 = vld [vmem:[#allocation11 + $0x148] sm:$0xff]
      %v541 = vld [vmem:[#allocation11 + $0x150] sm:$0xff]
      %v542 = vld [vmem:[#allocation11 + $0x158] sm:$0xff]
      %v543 = vld [vmem:[#allocation11 + $0x160] sm:$0xff]
      %v544 = vld [vmem:[#allocation11 + $0x168] sm:$0xff]
      %v545 = vld [vmem:[#allocation11 + $0x170] sm:$0xff]
      %v546 = vld [vmem:[#allocation11 + $0x178] sm:$0xff]
      %v547 = vld [vmem:[#allocation11 + $0x180] sm:$0xff]
      %v548 = vld [vmem:[#allocation11 + $0x188] sm:$0xff]
      %v549 = vld [vmem:[#allocation11 + $0x190] sm:$0xff]
      %v550 = vld [vmem:[#allocation11 + $0x198] sm:$0xff]
      %v551 = vld [vmem:[#allocation11 + $0x1a0] sm:$0xff]
      %v552 = vld [vmem:[#allocation11 + $0x1a8] sm:$0xff]
      %v553 = vld [vmem:[#allocation11 + $0x1b0] sm:$0xff]
      %v554 = vld [vmem:[#allocation11 + $0x1b8] sm:$0xff]
      %v555 = vld [vmem:[#allocation11 + $0x1c0] sm:$0xff]
      %v556 = vld [vmem:[#allocation11 + $0x1c8] sm:$0xff]
      %v557 = vld [vmem:[#allocation11 + $0x1d0] sm:$0xff]
      %v558 = vld [vmem:[#allocation11 + $0x1d8] sm:$0xff]
      %v559 = vld [vmem:[#allocation11 + $0x1e0] sm:$0xff]
      %v560 = vld [vmem:[#allocation11 + $0x1e8] sm:$0xff]
      %v561 = vld [vmem:[#allocation11 + $0x1f0] sm:$0xff]
      %v562 = vld [vmem:[#allocation11 + $0x1f8] sm:$0xff]
      %v627 = vunpack.c.l.b16 %v499
      %v628 = vunpack.c.h.b16 %v499
      %v629 = vunpack.c.l.b16 %v500
      %v630 = vunpack.c.h.b16 %v500
      %v631 = vunpack.c.l.b16 %v501
      %v632 = vunpack.c.h.b16 %v501
      %v633 = vunpack.c.l.b16 %v502
      %v634 = vunpack.c.h.b16 %v502
      %v635 = vunpack.c.l.b16 %v503
      %v636 = vunpack.c.h.b16 %v503
      %v637 = vunpack.c.l.b16 %v504
      %v638 = vunpack.c.h.b16 %v504
      %v639 = vunpack.c.l.b16 %v505
      %v640 = vunpack.c.h.b16 %v505
      %v641 = vunpack.c.l.b16 %v506
      %v642 = vunpack.c.h.b16 %v506
      %v643 = vunpack.c.l.b16 %v507
      %v644 = vunpack.c.h.b16 %v507
      %v645 = vunpack.c.l.b16 %v508
      %v646 = vunpack.c.h.b16 %v508
      %v647 = vunpack.c.l.b16 %v509
      %v648 = vunpack.c.h.b16 %v509
      %v649 = vunpack.c.l.b16 %v510
      %v650 = vunpack.c.h.b16 %v510
      %v651 = vunpack.c.l.b16 %v511
      %v652 = vunpack.c.h.b16 %v511
      %v653 = vunpack.c.l.b16 %v512
      %v654 = vunpack.c.h.b16 %v512
      %v655 = vunpack.c.l.b16 %v513
      %v656 = vunpack.c.h.b16 %v513
      %v657 = vunpack.c.l.b16 %v514
      %v658 = vunpack.c.h.b16 %v514
      %v659 = vunpack.c.l.b16 %v515
      %v660 = vunpack.c.h.b16 %v515
      %v661 = vunpack.c.l.b16 %v516
      %v662 = vunpack.c.h.b16 %v516
      %v663 = vunpack.c.l.b16 %v517
      %v664 = vunpack.c.h.b16 %v517
      %v665 = vunpack.c.l.b16 %v518
      %v666 = vunpack.c.h.b16 %v518
      %v667 = vunpack.c.l.b16 %v519
      %v668 = vunpack.c.h.b16 %v519
      %v669 = vunpack.c.l.b16 %v520
      %v670 = vunpack.c.h.b16 %v520
      %v671 = vunpack.c.l.b16 %v521
      %v672 = vunpack.c.h.b16 %v521
      %v673 = vunpack.c.l.b16 %v522
      %v674 = vunpack.c.h.b16 %v522
      %v675 = vunpack.c.l.b16 %v523
      %v676 = vunpack.c.h.b16 %v523
      %v677 = vunpack.c.l.b16 %v524
      %v678 = vunpack.c.h.b16 %v524
      %v679 = vunpack.c.l.b16 %v525
      %v680 = vunpack.c.h.b16 %v525
      %v681 = vunpack.c.l.b16 %v526
      %v682 = vunpack.c.h.b16 %v526
      %v683 = vunpack.c.l.b16 %v527
      %v684 = vunpack.c.h.b16 %v527
      %v685 = vunpack.c.l.b16 %v528
      %v686 = vunpack.c.h.b16 %v528
      %v687 = vunpack.c.l.b16 %v529
      %v688 = vunpack.c.h.b16 %v529
      %v689 = vunpack.c.l.b16 %v530
      %v690 = vunpack.c.h.b16 %v530
      %v691 = vunpack.c.l.b16 %v531
      %v692 = vunpack.c.h.b16 %v531
      %v693 = vunpack.c.l.b16 %v532
      %v694 = vunpack.c.h.b16 %v532
      %v695 = vunpack.c.l.b16 %v533
      %v696 = vunpack.c.h.b16 %v533
      %v697 = vunpack.c.l.b16 %v534
      %v698 = vunpack.c.h.b16 %v534
      %v699 = vunpack.c.l.b16 %v535
      %v700 = vunpack.c.h.b16 %v535
      %v701 = vunpack.c.l.b16 %v536
      %v702 = vunpack.c.h.b16 %v536
      %v703 = vunpack.c.l.b16 %v537
      %v704 = vunpack.c.h.b16 %v537
      %v705 = vunpack.c.l.b16 %v538
      %v706 = vunpack.c.h.b16 %v538
      %v707 = vunpack.c.l.b16 %v539
      %v708 = vunpack.c.h.b16 %v539
      %v709 = vunpack.c.l.b16 %v540
      %v710 = vunpack.c.h.b16 %v540
      %v711 = vunpack.c.l.b16 %v541
      %v712 = vunpack.c.h.b16 %v541
      %v713 = vunpack.c.l.b16 %v542
      %v714 = vunpack.c.h.b16 %v542
      %v715 = vunpack.c.l.b16 %v543
      %v716 = vunpack.c.h.b16 %v543
      %v717 = vunpack.c.l.b16 %v544
      %v718 = vunpack.c.h.b16 %v544
      %v719 = vunpack.c.l.b16 %v545
      %v720 = vunpack.c.h.b16 %v545
      %v721 = vunpack.c.l.b16 %v546
      %v722 = vunpack.c.h.b16 %v546
      %v723 = vunpack.c.l.b16 %v547
      %v724 = vunpack.c.h.b16 %v547
      %v725 = vunpack.c.l.b16 %v548
      %v726 = vunpack.c.h.b16 %v548
      %v727 = vunpack.c.l.b16 %v549
      %v728 = vunpack.c.h.b16 %v549
      %v729 = vunpack.c.l.b16 %v550
      %v730 = vunpack.c.h.b16 %v550
      %v731 = vunpack.c.l.b16 %v551
      %v732 = vunpack.c.h.b16 %v551
      %v733 = vunpack.c.l.b16 %v552
      %v734 = vunpack.c.h.b16 %v552
      %v735 = vunpack.c.l.b16 %v553
      %v736 = vunpack.c.h.b16 %v553
      %v737 = vunpack.c.l.b16 %v554
      %v738 = vunpack.c.h.b16 %v554
      %v739 = vunpack.c.l.b16 %v555
      %v740 = vunpack.c.h.b16 %v555
      %v741 = vunpack.c.l.b16 %v556
      %v742 = vunpack.c.h.b16 %v556
      %v743 = vunpack.c.l.b16 %v557
      %v744 = vunpack.c.h.b16 %v557
      %v745 = vunpack.c.l.b16 %v558
      %v746 = vunpack.c.h.b16 %v558
      %v747 = vunpack.c.l.b16 %v559
      %v748 = vunpack.c.h.b16 %v559
      %v749 = vunpack.c.l.b16 %v560
      %v750 = vunpack.c.h.b16 %v560
      %v751 = vunpack.c.l.b16 %v561
      %v752 = vunpack.c.h.b16 %v561
      %v753 = vunpack.c.l.b16 %v562
      %v754 = vunpack.c.h.b16 %v562
      %v755 = vpack.c.b16 %v631, %v627
      %v756 = vpack.c.b16 %v632, %v628
      %v757 = vpack.c.b16 %v633, %v629
      %v758 = vpack.c.b16 %v634, %v630
      %v759 = vpack.c.b16 %v639, %v635
      %v760 = vpack.c.b16 %v640, %v636
      %v761 = vpack.c.b16 %v641, %v637
      %v762 = vpack.c.b16 %v642, %v638
      %v763 = vpack.c.b16 %v647, %v643
      %v764 = vpack.c.b16 %v648, %v644
      %v765 = vpack.c.b16 %v649, %v645
      %v766 = vpack.c.b16 %v650, %v646
      %v767 = vpack.c.b16 %v655, %v651
      %v768 = vpack.c.b16 %v656, %v652
      %v769 = vpack.c.b16 %v657, %v653
      %v770 = vpack.c.b16 %v658, %v654
      %v771 = vpack.c.b16 %v663, %v659
      %v772 = vpack.c.b16 %v664, %v660
      %v773 = vpack.c.b16 %v665, %v661
      %v774 = vpack.c.b16 %v666, %v662
      %v775 = vpack.c.b16 %v671, %v667
      %v776 = vpack.c.b16 %v672, %v668
      %v777 = vpack.c.b16 %v673, %v669
      %v778 = vpack.c.b16 %v674, %v670
      %v779 = vpack.c.b16 %v679, %v675
      %v780 = vpack.c.b16 %v680, %v676
      %v781 = vpack.c.b16 %v681, %v677
      %v782 = vpack.c.b16 %v682, %v678
      %v783 = vpack.c.b16 %v687, %v683
      %v784 = vpack.c.b16 %v688, %v684
      %v785 = vpack.c.b16 %v689, %v685
      %v786 = vpack.c.b16 %v690, %v686
      %v787 = vpack.c.b16 %v695, %v691
      %v788 = vpack.c.b16 %v696, %v692
      %v789 = vpack.c.b16 %v697, %v693
      %v790 = vpack.c.b16 %v698, %v694
      %v791 = vpack.c.b16 %v703, %v699
      %v792 = vpack.c.b16 %v704, %v700
      %v793 = vpack.c.b16 %v705, %v701
      %v794 = vpack.c.b16 %v706, %v702
      %v795 = vpack.c.b16 %v711, %v707
      %v796 = vpack.c.b16 %v712, %v708
      %v797 = vpack.c.b16 %v713, %v709
      %v798 = vpack.c.b16 %v714, %v710
      %v799 = vpack.c.b16 %v719, %v715
      %v800 = vpack.c.b16 %v720, %v716
      %v801 = vpack.c.b16 %v721, %v717
      %v802 = vpack.c.b16 %v722, %v718
      %v803 = vpack.c.b16 %v727, %v723
      %v804 = vpack.c.b16 %v728, %v724
      %v805 = vpack.c.b16 %v729, %v725
      %v806 = vpack.c.b16 %v730, %v726
      %v807 = vpack.c.b16 %v735, %v731
      %v808 = vpack.c.b16 %v736, %v732
      %v809 = vpack.c.b16 %v737, %v733
      %v810 = vpack.c.b16 %v738, %v734
      %v811 = vpack.c.b16 %v743, %v739
      %v812 = vpack.c.b16 %v744, %v740
      %v813 = vpack.c.b16 %v745, %v741
      %v814 = vpack.c.b16 %v746, %v742
      %v815 = vpack.c.b16 %v751, %v747
      %v816 = vpack.c.b16 %v752, %v748
      %v817 = vpack.c.b16 %v753, %v749
      %v818 = vpack.c.b16 %v754, %v750
      %883 = vmatpush.bf16.msra.mxu0 %v783
      %884 = vmatpush.bf16.msra.mxu0 %v779
      %885 = vmatpush.bf16.msra.mxu0 %v775
      %886 = vmatpush.bf16.msra.mxu0 %v771
      %887 = vmatpush.bf16.msra.mxu0 %v767
      %888 = vmatpush.bf16.msra.mxu0 %v763
      %889 = vmatpush.bf16.msra.mxu0 %v759
      %890 = vmatpush.bf16.msra.mxu0 %v755
      %891 = vmatmul.bf16.gmra.mxu0 %v435
      %v892 = vpop.f32.mrf.mxu0
      %v893 = vadd.f32 0.0, %v892
      %v894 = vpop.f32.mrf.mxu0
      %v895 = vadd.f32 0.0, %v894
      %896 = vmatmul.bf16.gmra.mxu0 %v436
      %v897 = vpop.f32.mrf.mxu0
      %v898 = vadd.f32 0.0, %v897
      %v899 = vpop.f32.mrf.mxu0
      %v900 = vadd.f32 0.0, %v899
      %901 = vmatmul.bf16.gmra.mxu0 %v437
      %v902 = vpop.f32.mrf.mxu0
      %v903 = vadd.f32 0.0, %v902
      %v904 = vpop.f32.mrf.mxu0
      %v905 = vadd.f32 0.0, %v904
      %906 = vmatmul.bf16.gmra.mxu0 %v438
      %v907 = vpop.f32.mrf.mxu0
      %v908 = vadd.f32 0.0, %v907
      %v909 = vpop.f32.mrf.mxu0
      %v910 = vadd.f32 0.0, %v909
      %911 = vmatmul.bf16.gmra.mxu0 %v439
      %v912 = vpop.f32.mrf.mxu0
      %v913 = vadd.f32 0.0, %v912
      %v914 = vpop.f32.mrf.mxu0
      %v915 = vadd.f32 0.0, %v914
      %916 = vmatmul.bf16.gmra.mxu0 %v440
      %v917 = vpop.f32.mrf.mxu0
      %v918 = vadd.f32 0.0, %v917
      %v919 = vpop.f32.mrf.mxu0
      %v920 = vadd.f32 0.0, %v919
      %921 = vmatmul.bf16.gmra.mxu0 %v441
      %v922 = vpop.f32.mrf.mxu0
      %v923 = vadd.f32 0.0, %v922
      %v924 = vpop.f32.mrf.mxu0
      %v925 = vadd.f32 0.0, %v924
      %926 = vmatmul.bf16.gmra.mxu0 %v442
      %v927 = vpop.f32.mrf.mxu0
      %v928 = vadd.f32 0.0, %v927
      %v929 = vpop.f32.mrf.mxu0
      %v930 = vadd.f32 0.0, %v929
      %931 = vdwg.mxu0
      %932 = vmatpush.bf16.msra.mxu0 %v815
      %933 = vmatpush.bf16.msra.mxu0 %v811
      %934 = vmatpush.bf16.msra.mxu0 %v807
      %935 = vmatpush.bf16.msra.mxu0 %v803
      %936 = vmatpush.bf16.msra.mxu0 %v799
      %937 = vmatpush.bf16.msra.mxu0 %v795
      %938 = vmatpush.bf16.msra.mxu0 %v791
      %939 = vmatpush.bf16.msra.mxu0 %v787
      %940 = vmatmul.bf16.gmra.mxu0 %v483
      %v941 = vpop.f32.mrf.mxu0
      %v942 = vadd.f32 %v893, %v941
      %v943 = vpop.f32.mrf.mxu0
      %v944 = vadd.f32 %v895, %v943
      %945 = vmatmul.bf16.gmra.mxu0 %v484
      %v946 = vpop.f32.mrf.mxu0
      %v947 = vadd.f32 %v898, %v946
      %v948 = vpop.f32.mrf.mxu0
      %v949 = vadd.f32 %v900, %v948
      %950 = vmatmul.bf16.gmra.mxu0 %v485
      %v951 = vpop.f32.mrf.mxu0
      %v952 = vadd.f32 %v903, %v951
      %v953 = vpop.f32.mrf.mxu0
      %v954 = vadd.f32 %v905, %v953
      %955 = vmatmul.bf16.gmra.mxu0 %v486
      %v956 = vpop.f32.mrf.mxu0
      %v957 = vadd.f32 %v908, %v956
      %v958 = vpop.f32.mrf.mxu0
      %v959 = vadd.f32 %v910, %v958
      %960 = vmatmul.bf16.gmra.mxu0 %v487
      %v961 = vpop.f32.mrf.mxu0
      %v962 = vadd.f32 %v913, %v961
      %v963 = vpop.f32.mrf.mxu0
      %v964 = vadd.f32 %v915, %v963
      %965 = vmatmul.bf16.gmra.mxu0 %v488
      %v966 = vpop.f32.mrf.mxu0
      %v967 = vadd.f32 %v918, %v966
      %v968 = vpop.f32.mrf.mxu0
      %v969 = vadd.f32 %v920, %v968
      %970 = vmatmul.bf16.gmra.mxu0 %v489
      %v971 = vpop.f32.mrf.mxu0
      %v972 = vadd.f32 %v923, %v971
      %v973 = vpop.f32.mrf.mxu0
      %v974 = vadd.f32 %v925, %v973
      %975 = vmatmul.bf16.gmra.mxu0 %v490
      %v976 = vpop.f32.mrf.mxu0
      %v977 = vadd.f32 %v928, %v976
      %v978 = vpop.f32.mrf.mxu0
      %v979 = vadd.f32 %v930, %v978
      %980 = vdwg.mxu0
      %981 = vmatpush.bf16.msra.mxu0 %v784
      %982 = vmatpush.bf16.msra.mxu0 %v780
      %983 = vmatpush.bf16.msra.mxu0 %v776
      %984 = vmatpush.bf16.msra.mxu0 %v772
      %985 = vmatpush.bf16.msra.mxu0 %v768
      %986 = vmatpush.bf16.msra.mxu0 %v764
      %987 = vmatpush.bf16.msra.mxu0 %v760
      %988 = vmatpush.bf16.msra.mxu0 %v756
      %989 = vmatmul.bf16.gmra.mxu0 %v435
      %v990 = vpop.f32.mrf.mxu0
      %v991 = vadd.f32 0.0, %v990
      %v992 = vpop.f32.mrf.mxu0
      %v993 = vadd.f32 0.0, %v992
      %994 = vmatmul.bf16.gmra.mxu0 %v436
      %v995 = vpop.f32.mrf.mxu0
      %v996 = vadd.f32 0.0, %v995
      %v997 = vpop.f32.mrf.mxu0
      %v998 = vadd.f32 0.0, %v997
      %999 = vmatmul.bf16.gmra.mxu0 %v437
      %v1000 = vpop.f32.mrf.mxu0
      %v1001 = vadd.f32 0.0, %v1000
      %v1002 = vpop.f32.mrf.mxu0
      %v1003 = vadd.f32 0.0, %v1002
      %1004 = vmatmul.bf16.gmra.mxu0 %v438
      %v1005 = vpop.f32.mrf.mxu0
      %v1006 = vadd.f32 0.0, %v1005
      %v1007 = vpop.f32.mrf.mxu0
      %v1008 = vadd.f32 0.0, %v1007
      %1009 = vmatmul.bf16.gmra.mxu0 %v439
      %v1010 = vpop.f32.mrf.mxu0
      %v1011 = vadd.f32 0.0, %v1010
      %v1012 = vpop.f32.mrf.mxu0
      %v1013 = vadd.f32 0.0, %v1012
      %1014 = vmatmul.bf16.gmra.mxu0 %v440
      %v1015 = vpop.f32.mrf.mxu0
      %v1016 = vadd.f32 0.0, %v1015
      %v1017 = vpop.f32.mrf.mxu0
      %v1018 = vadd.f32 0.0, %v1017
      %1019 = vmatmul.bf16.gmra.mxu0 %v441
      %v1020 = vpop.f32.mrf.mxu0
      %v1021 = vadd.f32 0.0, %v1020
      %v1022 = vpop.f32.mrf.mxu0
      %v1023 = vadd.f32 0.0, %v1022
      %1024 = vmatmul.bf16.gmra.mxu0 %v442
      %v1025 = vpop.f32.mrf.mxu0
      %v1026 = vadd.f32 0.0, %v1025
      %v1027 = vpop.f32.mrf.mxu0
      %v1028 = vadd.f32 0.0, %v1027
      %1029 = vdwg.mxu0
      %1030 = vmatpush.bf16.msra.mxu0 %v816
      %1031 = vmatpush.bf16.msra.mxu0 %v812
      %1032 = vmatpush.bf16.msra.mxu0 %v808
      %1033 = vmatpush.bf16.msra.mxu0 %v804
      %1034 = vmatpush.bf16.msra.mxu0 %v800
      %1035 = vmatpush.bf16.msra.mxu0 %v796
      %1036 = vmatpush.bf16.msra.mxu0 %v792
      %1037 = vmatpush.bf16.msra.mxu0 %v788
      %1038 = vmatmul.bf16.gmra.mxu0 %v483
      %v1039 = vpop.f32.mrf.mxu0
      %v1040 = vadd.f32 %v991, %v1039
      %v1041 = vpop.f32.mrf.mxu0
      %v1042 = vadd.f32 %v993, %v1041
      %1043 = vmatmul.bf16.gmra.mxu0 %v484
      %v1044 = vpop.f32.mrf.mxu0
      %v1045 = vadd.f32 %v996, %v1044
      %v1046 = vpop.f32.mrf.mxu0
      %v1047 = vadd.f32 %v998, %v1046
      %1048 = vmatmul.bf16.gmra.mxu0 %v485
      %v1049 = vpop.f32.mrf.mxu0
      %v1050 = vadd.f32 %v1001, %v1049
      %v1051 = vpop.f32.mrf.mxu0
      %v1052 = vadd.f32 %v1003, %v1051
      %1053 = vmatmul.bf16.gmra.mxu0 %v486
      %v1054 = vpop.f32.mrf.mxu0
      %v1055 = vadd.f32 %v1006, %v1054
      %v1056 = vpop.f32.mrf.mxu0
      %v1057 = vadd.f32 %v1008, %v1056
      %1058 = vmatmul.bf16.gmra.mxu0 %v487
      %v1059 = vpop.f32.mrf.mxu0
      %v1060 = vadd.f32 %v1011, %v1059
      %v1061 = vpop.f32.mrf.mxu0
      %v1062 = vadd.f32 %v1013, %v1061
      %1063 = vmatmul.bf16.gmra.mxu0 %v488
      %v1064 = vpop.f32.mrf.mxu0
      %v1065 = vadd.f32 %v1016, %v1064
      %v1066 = vpop.f32.mrf.mxu0
      %v1067 = vadd.f32 %v1018, %v1066
      %1068 = vmatmul.bf16.gmra.mxu0 %v489
      %v1069 = vpop.f32.mrf.mxu0
      %v1070 = vadd.f32 %v1021, %v1069
      %v1071 = vpop.f32.mrf.mxu0
      %v1072 = vadd.f32 %v1023, %v1071
      %1073 = vmatmul.bf16.gmra.mxu0 %v490
      %v1074 = vpop.f32.mrf.mxu0
      %v1075 = vadd.f32 %v1026, %v1074
      %v1076 = vpop.f32.mrf.mxu0
      %v1077 = vadd.f32 %v1028, %v1076
      %1078 = vdwg.mxu0
      %1079 = vmatpush.bf16.msra.mxu0 %v785
      %1080 = vmatpush.bf16.msra.mxu0 %v781
      %1081 = vmatpush.bf16.msra.mxu0 %v777
      %1082 = vmatpush.bf16.msra.mxu0 %v773
      %1083 = vmatpush.bf16.msra.mxu0 %v769
      %1084 = vmatpush.bf16.msra.mxu0 %v765
      %1085 = vmatpush.bf16.msra.mxu0 %v761
      %1086 = vmatpush.bf16.msra.mxu0 %v757
      %1087 = vmatmul.bf16.gmra.mxu0 %v435
      %v1088 = vpop.f32.mrf.mxu0
      %v1089 = vadd.f32 0.0, %v1088
      %v1090 = vpop.f32.mrf.mxu0
      %v1091 = vadd.f32 0.0, %v1090
      %1092 = vmatmul.bf16.gmra.mxu0 %v436
      %v1093 = vpop.f32.mrf.mxu0
      %v1094 = vadd.f32 0.0, %v1093
      %v1095 = vpop.f32.mrf.mxu0
      %v1096 = vadd.f32 0.0, %v1095
      %1097 = vmatmul.bf16.gmra.mxu0 %v437
      %v1098 = vpop.f32.mrf.mxu0
      %v1099 = vadd.f32 0.0, %v1098
      %v1100 = vpop.f32.mrf.mxu0
      %v1101 = vadd.f32 0.0, %v1100
      %1102 = vmatmul.bf16.gmra.mxu0 %v438
      %v1103 = vpop.f32.mrf.mxu0
      %v1104 = vadd.f32 0.0, %v1103
      %v1105 = vpop.f32.mrf.mxu0
      %v1106 = vadd.f32 0.0, %v1105
      %1107 = vmatmul.bf16.gmra.mxu0 %v439
      %v1108 = vpop.f32.mrf.mxu0
      %v1109 = vadd.f32 0.0, %v1108
      %v1110 = vpop.f32.mrf.mxu0
      %v1111 = vadd.f32 0.0, %v1110
      %1112 = vmatmul.bf16.gmra.mxu0 %v440
      %v1113 = vpop.f32.mrf.mxu0
      %v1114 = vadd.f32 0.0, %v1113
      %v1115 = vpop.f32.mrf.mxu0
      %v1116 = vadd.f32 0.0, %v1115
      %1117 = vmatmul.bf16.gmra.mxu0 %v441
      %v1118 = vpop.f32.mrf.mxu0
      %v1119 = vadd.f32 0.0, %v1118
      %v1120 = vpop.f32.mrf.mxu0
      %v1121 = vadd.f32 0.0, %v1120
      %1122 = vmatmul.bf16.gmra.mxu0 %v442
      %v1123 = vpop.f32.mrf.mxu0
      %v1124 = vadd.f32 0.0, %v1123
      %v1125 = vpop.f32.mrf.mxu0
      %v1126 = vadd.f32 0.0, %v1125
      %1127 = vdwg.mxu0
      %1128 = vmatpush.bf16.msra.mxu0 %v817
      %1129 = vmatpush.bf16.msra.mxu0 %v813
      %1130 = vmatpush.bf16.msra.mxu0 %v809
      %1131 = vmatpush.bf16.msra.mxu0 %v805
      %1132 = vmatpush.bf16.msra.mxu0 %v801
      %1133 = vmatpush.bf16.msra.mxu0 %v797
      %1134 = vmatpush.bf16.msra.mxu0 %v793
      %1135 = vmatpush.bf16.msra.mxu0 %v789
      %1136 = vmatmul.bf16.gmra.mxu0 %v483
      %v1137 = vpop.f32.mrf.mxu0
      %v1138 = vadd.f32 %v1089, %v1137
      %v1139 = vpop.f32.mrf.mxu0
      %v1140 = vadd.f32 %v1091, %v1139
      %1141 = vmatmul.bf16.gmra.mxu0 %v484
      %v1142 = vpop.f32.mrf.mxu0
      %v1143 = vadd.f32 %v1094, %v1142
      %v1144 = vpop.f32.mrf.mxu0
      %v1145 = vadd.f32 %v1096, %v1144
      %1146 = vmatmul.bf16.gmra.mxu0 %v485
      %v1147 = vpop.f32.mrf.mxu0
      %v1148 = vadd.f32 %v1099, %v1147
      %v1149 = vpop.f32.mrf.mxu0
      %v1150 = vadd.f32 %v1101, %v1149
      %1151 = vmatmul.bf16.gmra.mxu0 %v486
      %v1152 = vpop.f32.mrf.mxu0
      %v1153 = vadd.f32 %v1104, %v1152
      %v1154 = vpop.f32.mrf.mxu0
      %v1155 = vadd.f32 %v1106, %v1154
      %1156 = vmatmul.bf16.gmra.mxu0 %v487
      %v1157 = vpop.f32.mrf.mxu0
      %v1158 = vadd.f32 %v1109, %v1157
      %v1159 = vpop.f32.mrf.mxu0
      %v1160 = vadd.f32 %v1111, %v1159
      %1161 = vmatmul.bf16.gmra.mxu0 %v488
      %v1162 = vpop.f32.mrf.mxu0
      %v1163 = vadd.f32 %v1114, %v1162
      %v1164 = vpop.f32.mrf.mxu0
      %v1165 = vadd.f32 %v1116, %v1164
      %1166 = vmatmul.bf16.gmra.mxu0 %v489
      %v1167 = vpop.f32.mrf.mxu0
      %v1168 = vadd.f32 %v1119, %v1167
      %v1169 = vpop.f32.mrf.mxu0
      %v1170 = vadd.f32 %v1121, %v1169
      %1171 = vmatmul.bf16.gmra.mxu0 %v490
      %v1172 = vpop.f32.mrf.mxu0
      %v1173 = vadd.f32 %v1124, %v1172
      %v1174 = vpop.f32.mrf.mxu0
      %v1175 = vadd.f32 %v1126, %v1174
      %1176 = vdwg.mxu0
      %1177 = vmatpush.bf16.msra.mxu0 %v786
      %1178 = vmatpush.bf16.msra.mxu0 %v782
      %1179 = vmatpush.bf16.msra.mxu0 %v778
      %1180 = vmatpush.bf16.msra.mxu0 %v774
      %1181 = vmatpush.bf16.msra.mxu0 %v770
      %1182 = vmatpush.bf16.msra.mxu0 %v766
      %1183 = vmatpush.bf16.msra.mxu0 %v762
      %1184 = vmatpush.bf16.msra.mxu0 %v758
      %1185 = vmatmul.bf16.gmra.mxu0 %v435
      %v1186 = vpop.f32.mrf.mxu0
      %v1187 = vadd.f32 0.0, %v1186
      %v1188 = vpop.f32.mrf.mxu0
      %v1189 = vadd.f32 0.0, %v1188
      %1190 = vmatmul.bf16.gmra.mxu0 %v436
      %v1191 = vpop.f32.mrf.mxu0
      %v1192 = vadd.f32 0.0, %v1191
      %v1193 = vpop.f32.mrf.mxu0
      %v1194 = vadd.f32 0.0, %v1193
      %1195 = vmatmul.bf16.gmra.mxu0 %v437
      %v1196 = vpop.f32.mrf.mxu0
      %v1197 = vadd.f32 0.0, %v1196
      %v1198 = vpop.f32.mrf.mxu0
      %v1199 = vadd.f32 0.0, %v1198
      %1200 = vmatmul.bf16.gmra.mxu0 %v438
      %v1201 = vpop.f32.mrf.mxu0
      %v1202 = vadd.f32 0.0, %v1201
      %v1203 = vpop.f32.mrf.mxu0
      %v1204 = vadd.f32 0.0, %v1203
      %1205 = vmatmul.bf16.gmra.mxu0 %v439
      %v1206 = vpop.f32.mrf.mxu0
      %v1207 = vadd.f32 0.0, %v1206
      %v1208 = vpop.f32.mrf.mxu0
      %v1209 = vadd.f32 0.0, %v1208
      %1210 = vmatmul.bf16.gmra.mxu0 %v440
      %v1211 = vpop.f32.mrf.mxu0
      %v1212 = vadd.f32 0.0, %v1211
      %v1213 = vpop.f32.mrf.mxu0
      %v1214 = vadd.f32 0.0, %v1213
      %1215 = vmatmul.bf16.gmra.mxu0 %v441
      %v1216 = vpop.f32.mrf.mxu0
      %v1217 = vadd.f32 0.0, %v1216
      %v1218 = vpop.f32.mrf.mxu0
      %v1219 = vadd.f32 0.0, %v1218
      %1220 = vmatmul.bf16.gmra.mxu0 %v442
      %v1221 = vpop.f32.mrf.mxu0
      %v1222 = vadd.f32 0.0, %v1221
      %v1223 = vpop.f32.mrf.mxu0
      %v1224 = vadd.f32 0.0, %v1223
      %1225 = vdwg.mxu0
      %1226 = vmatpush.bf16.msra.mxu0 %v818
      %1227 = vmatpush.bf16.msra.mxu0 %v814
      %1228 = vmatpush.bf16.msra.mxu0 %v810
      %1229 = vmatpush.bf16.msra.mxu0 %v806
      %1230 = vmatpush.bf16.msra.mxu0 %v802
      %1231 = vmatpush.bf16.msra.mxu0 %v798
      %1232 = vmatpush.bf16.msra.mxu0 %v794
      %1233 = vmatpush.bf16.msra.mxu0 %v790
      %1234 = vmatmul.bf16.gmra.mxu0 %v483
      %v1235 = vpop.f32.mrf.mxu0
      %v1236 = vadd.f32 %v1187, %v1235
      %v1237 = vpop.f32.mrf.mxu0
      %v1238 = vadd.f32 %v1189, %v1237
      %1239 = vmatmul.bf16.gmra.mxu0 %v484
      %v1240 = vpop.f32.mrf.mxu0
      %v1241 = vadd.f32 %v1192, %v1240
      %v1242 = vpop.f32.mrf.mxu0
      %v1243 = vadd.f32 %v1194, %v1242
      %1244 = vmatmul.bf16.gmra.mxu0 %v485
      %v1245 = vpop.f32.mrf.mxu0
      %v1246 = vadd.f32 %v1197, %v1245
      %v1247 = vpop.f32.mrf.mxu0
      %v1248 = vadd.f32 %v1199, %v1247
      %1249 = vmatmul.bf16.gmra.mxu0 %v486
      %v1250 = vpop.f32.mrf.mxu0
      %v1251 = vadd.f32 %v1202, %v1250
      %v1252 = vpop.f32.mrf.mxu0
      %v1253 = vadd.f32 %v1204, %v1252
      %1254 = vmatmul.bf16.gmra.mxu0 %v487
      %v1255 = vpop.f32.mrf.mxu0
      %v1256 = vadd.f32 %v1207, %v1255
      %v1257 = vpop.f32.mrf.mxu0
      %v1258 = vadd.f32 %v1209, %v1257
      %1259 = vmatmul.bf16.gmra.mxu0 %v488
      %v1260 = vpop.f32.mrf.mxu0
      %v1261 = vadd.f32 %v1212, %v1260
      %v1262 = vpop.f32.mrf.mxu0
      %v1263 = vadd.f32 %v1214, %v1262
      %1264 = vmatmul.bf16.gmra.mxu0 %v489
      %v1265 = vpop.f32.mrf.mxu0
      %v1266 = vadd.f32 %v1217, %v1265
      %v1267 = vpop.f32.mrf.mxu0
      %v1268 = vadd.f32 %v1219, %v1267
      %1269 = vmatmul.bf16.gmra.mxu0 %v490
      %v1270 = vpop.f32.mrf.mxu0
      %v1271 = vadd.f32 %v1222, %v1270
      %v1272 = vpop.f32.mrf.mxu0
      %v1273 = vadd.f32 %v1224, %v1272
      %1274 = vdwg.mxu0
      %v1275 = vld [vmem:[%s5] sm:$0xff]
      %v1276 = vld [vmem:[%s5 + $0x8] sm:$0xff]
      %v1277 = vld [vmem:[%s5 + $0x10] sm:$0xff]
      %v1278 = vld [vmem:[%s5 + $0x18] sm:$0xff]
      %v1279 = vld [vmem:[%s5 + $0x20] sm:$0xff]
      %v1280 = vld [vmem:[%s5 + $0x28] sm:$0xff]
      %v1281 = vld [vmem:[%s5 + $0x30] sm:$0xff]
      %v1282 = vld [vmem:[%s5 + $0x38] sm:$0xff]
      %v1283 = vld [vmem:[%s5 + $0x40] sm:$0xff]
      %v1284 = vld [vmem:[%s5 + $0x48] sm:$0xff]
      %v1285 = vld [vmem:[%s5 + $0x50] sm:$0xff]
      %v1286 = vld [vmem:[%s5 + $0x58] sm:$0xff]
      %v1287 = vld [vmem:[%s5 + $0x60] sm:$0xff]
      %v1288 = vld [vmem:[%s5 + $0x68] sm:$0xff]
      %v1289 = vld [vmem:[%s5 + $0x70] sm:$0xff]
      %v1290 = vld [vmem:[%s5 + $0x78] sm:$0xff]
      %1292 = vset.pattern.permute.xlu0 0
      %1293 = vperm.xlu0 %1292, %v1275
      %v1294 = vpop.permute.xlu0 %1293
      %1297 = vset.pattern.permute.xlu0 0
      %1298 = vperm.xlu0 %1297, %v1276
      %v1299 = vpop.permute.xlu0 %1298
      %1302 = vset.pattern.permute.xlu0 0
      %1303 = vperm.xlu0 %1302, %v1277
      %v1304 = vpop.permute.xlu0 %1303
      %1307 = vset.pattern.permute.xlu0 0
      %1308 = vperm.xlu0 %1307, %v1278
      %v1309 = vpop.permute.xlu0 %1308
      %1312 = vset.pattern.permute.xlu0 0
      %1313 = vperm.xlu0 %1312, %v1279
      %v1314 = vpop.permute.xlu0 %1313
      %1317 = vset.pattern.permute.xlu0 0
      %1318 = vperm.xlu0 %1317, %v1280
      %v1319 = vpop.permute.xlu0 %1318
      %1322 = vset.pattern.permute.xlu0 0
      %1323 = vperm.xlu0 %1322, %v1281
      %v1324 = vpop.permute.xlu0 %1323
      %1327 = vset.pattern.permute.xlu0 0
      %1328 = vperm.xlu0 %1327, %v1282
      %v1329 = vpop.permute.xlu0 %1328
      %1332 = vset.pattern.permute.xlu0 0
      %1333 = vperm.xlu0 %1332, %v1283
      %v1334 = vpop.permute.xlu0 %1333
      %1337 = vset.pattern.permute.xlu0 0
      %1338 = vperm.xlu0 %1337, %v1284
      %v1339 = vpop.permute.xlu0 %1338
      %1342 = vset.pattern.permute.xlu0 0
      %1343 = vperm.xlu0 %1342, %v1285
      %v1344 = vpop.permute.xlu0 %1343
      %1347 = vset.pattern.permute.xlu0 0
      %1348 = vperm.xlu0 %1347, %v1286
      %v1349 = vpop.permute.xlu0 %1348
      %1352 = vset.pattern.permute.xlu0 0
      %1353 = vperm.xlu0 %1352, %v1287
      %v1354 = vpop.permute.xlu0 %1353
      %1357 = vset.pattern.permute.xlu0 0
      %1358 = vperm.xlu0 %1357, %v1288
      %v1359 = vpop.permute.xlu0 %1358
      %1362 = vset.pattern.permute.xlu0 0
      %1363 = vperm.xlu0 %1362, %v1289
      %v1364 = vpop.permute.xlu0 %1363
      %1367 = vset.pattern.permute.xlu0 0
      %1368 = vperm.xlu0 %1367, %v1290
      %v1369 = vpop.permute.xlu0 %1368
      %v1371 = vmul.f32 %v1294, %v942
      %v1372 = vmul.f32 %v1299, %v944
      %v1373 = vmul.f32 %v1304, %v947
      %v1374 = vmul.f32 %v1309, %v949
      %v1375 = vmul.f32 %v1314, %v952
      %v1376 = vmul.f32 %v1319, %v954
      %v1377 = vmul.f32 %v1324, %v957
      %v1378 = vmul.f32 %v1329, %v959
      %v1379 = vmul.f32 %v1334, %v962
      %v1380 = vmul.f32 %v1339, %v964
      %v1381 = vmul.f32 %v1344, %v967
      %v1382 = vmul.f32 %v1349, %v969
      %v1383 = vmul.f32 %v1354, %v972
      %v1384 = vmul.f32 %v1359, %v974
      %v1385 = vmul.f32 %v1364, %v977
      %v1386 = vmul.f32 %v1369, %v979
      %v1387 = vadd.f32 %v339, %v1371
      %v1388 = vadd.f32 %v340, %v1372
      %v1389 = vadd.f32 %v341, %v1373
      %v1390 = vadd.f32 %v342, %v1374
      %v1391 = vadd.f32 %v343, %v1375
      %v1392 = vadd.f32 %v344, %v1376
      %v1393 = vadd.f32 %v345, %v1377
      %v1394 = vadd.f32 %v346, %v1378
      %v1395 = vadd.f32 %v347, %v1379
      %v1396 = vadd.f32 %v348, %v1380
      %v1397 = vadd.f32 %v349, %v1381
      %v1398 = vadd.f32 %v350, %v1382
      %v1399 = vadd.f32 %v351, %v1383
      %v1400 = vadd.f32 %v352, %v1384
      %v1401 = vadd.f32 %v353, %v1385
      %v1402 = vadd.f32 %v354, %v1386
      %1403 = vset.pattern.permute.xlu0 1
      %1404 = vperm.xlu0 %1403, %v1275
      %v1405 = vpop.permute.xlu0 %1404
      %1407 = vset.pattern.permute.xlu0 1
      %1408 = vperm.xlu0 %1407, %v1276
      %v1409 = vpop.permute.xlu0 %1408
      %1411 = vset.pattern.permute.xlu0 1
      %1412 = vperm.xlu0 %1411, %v1277
      %v1413 = vpop.permute.xlu0 %1412
      %1415 = vset.pattern.permute.xlu0 1
      %1416 = vperm.xlu0 %1415, %v1278
      %v1417 = vpop.permute.xlu0 %1416
      %1419 = vset.pattern.permute.xlu0 1
      %1420 = vperm.xlu0 %1419, %v1279
      %v1421 = vpop.permute.xlu0 %1420
      %1423 = vset.pattern.permute.xlu0 1
      %1424 = vperm.xlu0 %1423, %v1280
      %v1425 = vpop.permute.xlu0 %1424
      %1427 = vset.pattern.permute.xlu0 1
      %1428 = vperm.xlu0 %1427, %v1281
      %v1429 = vpop.permute.xlu0 %1428
      %1431 = vset.pattern.permute.xlu0 1
      %1432 = vperm.xlu0 %1431, %v1282
      %v1433 = vpop.permute.xlu0 %1432
      %1435 = vset.pattern.permute.xlu0 1
      %1436 = vperm.xlu0 %1435, %v1283
      %v1437 = vpop.permute.xlu0 %1436
      %1439 = vset.pattern.permute.xlu0 1
      %1440 = vperm.xlu0 %1439, %v1284
      %v1441 = vpop.permute.xlu0 %1440
      %1443 = vset.pattern.permute.xlu0 1
      %1444 = vperm.xlu0 %1443, %v1285
      %v1445 = vpop.permute.xlu0 %1444
      %1447 = vset.pattern.permute.xlu0 1
      %1448 = vperm.xlu0 %1447, %v1286
      %v1449 = vpop.permute.xlu0 %1448
      %1451 = vset.pattern.permute.xlu0 1
      %1452 = vperm.xlu0 %1451, %v1287
      %v1453 = vpop.permute.xlu0 %1452
      %1455 = vset.pattern.permute.xlu0 1
      %1456 = vperm.xlu0 %1455, %v1288
      %v1457 = vpop.permute.xlu0 %1456
      %1459 = vset.pattern.permute.xlu0 1
      %1460 = vperm.xlu0 %1459, %v1289
      %v1461 = vpop.permute.xlu0 %1460
      %1463 = vset.pattern.permute.xlu0 1
      %1464 = vperm.xlu0 %1463, %v1290
      %v1465 = vpop.permute.xlu0 %1464
      %v1467 = vmul.f32 %v1405, %v1040
      %v1468 = vmul.f32 %v1409, %v1042
      %v1469 = vmul.f32 %v1413, %v1045
      %v1470 = vmul.f32 %v1417, %v1047
      %v1471 = vmul.f32 %v1421, %v1050
      %v1472 = vmul.f32 %v1425, %v1052
      %v1473 = vmul.f32 %v1429, %v1055
      %v1474 = vmul.f32 %v1433, %v1057
      %v1475 = vmul.f32 %v1437, %v1060
      %v1476 = vmul.f32 %v1441, %v1062
      %v1477 = vmul.f32 %v1445, %v1065
      %v1478 = vmul.f32 %v1449, %v1067
      %v1479 = vmul.f32 %v1453, %v1070
      %v1480 = vmul.f32 %v1457, %v1072
      %v1481 = vmul.f32 %v1461, %v1075
      %v1482 = vmul.f32 %v1465, %v1077
      %v1483 = vadd.f32 %v1387, %v1467
      %v1484 = vadd.f32 %v1388, %v1468
      %v1485 = vadd.f32 %v1389, %v1469
      %v1486 = vadd.f32 %v1390, %v1470
      %v1487 = vadd.f32 %v1391, %v1471
      %v1488 = vadd.f32 %v1392, %v1472
      %v1489 = vadd.f32 %v1393, %v1473
      %v1490 = vadd.f32 %v1394, %v1474
      %v1491 = vadd.f32 %v1395, %v1475
      %v1492 = vadd.f32 %v1396, %v1476
      %v1493 = vadd.f32 %v1397, %v1477
      %v1494 = vadd.f32 %v1398, %v1478
      %v1495 = vadd.f32 %v1399, %v1479
      %v1496 = vadd.f32 %v1400, %v1480
      %v1497 = vadd.f32 %v1401, %v1481
      %v1498 = vadd.f32 %v1402, %v1482
      %1499 = vset.pattern.permute.xlu0 2
      %1500 = vperm.xlu0 %1499, %v1275
      %v1501 = vpop.permute.xlu0 %1500
      %1503 = vset.pattern.permute.xlu0 2
      %1504 = vperm.xlu0 %1503, %v1276
      %v1505 = vpop.permute.xlu0 %1504
      %1507 = vset.pattern.permute.xlu0 2
      %1508 = vperm.xlu0 %1507, %v1277
      %v1509 = vpop.permute.xlu0 %1508
      %1511 = vset.pattern.permute.xlu0 2
      %1512 = vperm.xlu0 %1511, %v1278
      %v1513 = vpop.permute.xlu0 %1512
      %1515 = vset.pattern.permute.xlu0 2
      %1516 = vperm.xlu0 %1515, %v1279
      %v1517 = vpop.permute.xlu0 %1516
      %1519 = vset.pattern.permute.xlu0 2
      %1520 = vperm.xlu0 %1519, %v1280
      %v1521 = vpop.permute.xlu0 %1520
      %1523 = vset.pattern.permute.xlu0 2
      %1524 = vperm.xlu0 %1523, %v1281
      %v1525 = vpop.permute.xlu0 %1524
      %1527 = vset.pattern.permute.xlu0 2
      %1528 = vperm.xlu0 %1527, %v1282
      %v1529 = vpop.permute.xlu0 %1528
      %1531 = vset.pattern.permute.xlu0 2
      %1532 = vperm.xlu0 %1531, %v1283
      %v1533 = vpop.permute.xlu0 %1532
      %1535 = vset.pattern.permute.xlu0 2
      %1536 = vperm.xlu0 %1535, %v1284
      %v1537 = vpop.permute.xlu0 %1536
      %1539 = vset.pattern.permute.xlu0 2
      %1540 = vperm.xlu0 %1539, %v1285
      %v1541 = vpop.permute.xlu0 %1540
      %1543 = vset.pattern.permute.xlu0 2
      %1544 = vperm.xlu0 %1543, %v1286
      %v1545 = vpop.permute.xlu0 %1544
      %1547 = vset.pattern.permute.xlu0 2
      %1548 = vperm.xlu0 %1547, %v1287
      %v1549 = vpop.permute.xlu0 %1548
      %1551 = vset.pattern.permute.xlu0 2
      %1552 = vperm.xlu0 %1551, %v1288
      %v1553 = vpop.permute.xlu0 %1552
      %1555 = vset.pattern.permute.xlu0 2
      %1556 = vperm.xlu0 %1555, %v1289
      %v1557 = vpop.permute.xlu0 %1556
      %1559 = vset.pattern.permute.xlu0 2
      %1560 = vperm.xlu0 %1559, %v1290
      %v1561 = vpop.permute.xlu0 %1560
      %v1563 = vmul.f32 %v1501, %v1138
      %v1564 = vmul.f32 %v1505, %v1140
      %v1565 = vmul.f32 %v1509, %v1143
      %v1566 = vmul.f32 %v1513, %v1145
      %v1567 = vmul.f32 %v1517, %v1148
      %v1568 = vmul.f32 %v1521, %v1150
      %v1569 = vmul.f32 %v1525, %v1153
      %v1570 = vmul.f32 %v1529, %v1155
      %v1571 = vmul.f32 %v1533, %v1158
      %v1572 = vmul.f32 %v1537, %v1160
      %v1573 = vmul.f32 %v1541, %v1163
      %v1574 = vmul.f32 %v1545, %v1165
      %v1575 = vmul.f32 %v1549, %v1168
      %v1576 = vmul.f32 %v1553, %v1170
      %v1577 = vmul.f32 %v1557, %v1173
      %v1578 = vmul.f32 %v1561, %v1175
      %v1579 = vadd.f32 %v1483, %v1563
      %v1580 = vadd.f32 %v1484, %v1564
      %v1581 = vadd.f32 %v1485, %v1565
      %v1582 = vadd.f32 %v1486, %v1566
      %v1583 = vadd.f32 %v1487, %v1567
      %v1584 = vadd.f32 %v1488, %v1568
      %v1585 = vadd.f32 %v1489, %v1569
      %v1586 = vadd.f32 %v1490, %v1570
      %v1587 = vadd.f32 %v1491, %v1571
      %v1588 = vadd.f32 %v1492, %v1572
      %v1589 = vadd.f32 %v1493, %v1573
      %v1590 = vadd.f32 %v1494, %v1574
      %v1591 = vadd.f32 %v1495, %v1575
      %v1592 = vadd.f32 %v1496, %v1576
      %v1593 = vadd.f32 %v1497, %v1577
      %v1594 = vadd.f32 %v1498, %v1578
      %1595 = vset.pattern.permute.xlu0 3
      %1596 = vperm.xlu0 %1595, %v1275
      %v1597 = vpop.permute.xlu0 %1596
      %1599 = vset.pattern.permute.xlu0 3
      %1600 = vperm.xlu0 %1599, %v1276
      %v1601 = vpop.permute.xlu0 %1600
      %1603 = vset.pattern.permute.xlu0 3
      %1604 = vperm.xlu0 %1603, %v1277
      %v1605 = vpop.permute.xlu0 %1604
      %1607 = vset.pattern.permute.xlu0 3
      %1608 = vperm.xlu0 %1607, %v1278
      %v1609 = vpop.permute.xlu0 %1608
      %1611 = vset.pattern.permute.xlu0 3
      %1612 = vperm.xlu0 %1611, %v1279
      %v1613 = vpop.permute.xlu0 %1612
      %1615 = vset.pattern.permute.xlu0 3
      %1616 = vperm.xlu0 %1615, %v1280
      %v1617 = vpop.permute.xlu0 %1616
      %1619 = vset.pattern.permute.xlu0 3
      %1620 = vperm.xlu0 %1619, %v1281
      %v1621 = vpop.permute.xlu0 %1620
      %1623 = vset.pattern.permute.xlu0 3
      %1624 = vperm.xlu0 %1623, %v1282
      %v1625 = vpop.permute.xlu0 %1624
      %1627 = vset.pattern.permute.xlu0 3
      %1628 = vperm.xlu0 %1627, %v1283
      %v1629 = vpop.permute.xlu0 %1628
      %1631 = vset.pattern.permute.xlu0 3
      %1632 = vperm.xlu0 %1631, %v1284
      %v1633 = vpop.permute.xlu0 %1632
      %1635 = vset.pattern.permute.xlu0 3
      %1636 = vperm.xlu0 %1635, %v1285
      %v1637 = vpop.permute.xlu0 %1636
      %1639 = vset.pattern.permute.xlu0 3
      %1640 = vperm.xlu0 %1639, %v1286
      %v1641 = vpop.permute.xlu0 %1640
      %1643 = vset.pattern.permute.xlu0 3
      %1644 = vperm.xlu0 %1643, %v1287
      %v1645 = vpop.permute.xlu0 %1644
      %1647 = vset.pattern.permute.xlu0 3
      %1648 = vperm.xlu0 %1647, %v1288
      %v1649 = vpop.permute.xlu0 %1648
      %1651 = vset.pattern.permute.xlu0 3
      %1652 = vperm.xlu0 %1651, %v1289
      %v1653 = vpop.permute.xlu0 %1652
      %1655 = vset.pattern.permute.xlu0 3
      %1656 = vperm.xlu0 %1655, %v1290
      %v1657 = vpop.permute.xlu0 %1656
      %v1659 = vmul.f32 %v1597, %v1236
      %v1660 = vmul.f32 %v1601, %v1238
      %v1661 = vmul.f32 %v1605, %v1241
      %v1662 = vmul.f32 %v1609, %v1243
      %v1663 = vmul.f32 %v1613, %v1246
      %v1664 = vmul.f32 %v1617, %v1248
      %v1665 = vmul.f32 %v1621, %v1251
      %v1666 = vmul.f32 %v1625, %v1253
      %v1667 = vmul.f32 %v1629, %v1256
      %v1668 = vmul.f32 %v1633, %v1258
      %v1669 = vmul.f32 %v1637, %v1261
      %v1670 = vmul.f32 %v1641, %v1263
      %v1671 = vmul.f32 %v1645, %v1266
      %v1672 = vmul.f32 %v1649, %v1268
      %v1673 = vmul.f32 %v1653, %v1271
      %v1674 = vmul.f32 %v1657, %v1273
      %v1675 = vadd.f32 %v1579, %v1659
      %v1676 = vadd.f32 %v1580, %v1660
      %v1677 = vadd.f32 %v1581, %v1661
      %v1678 = vadd.f32 %v1582, %v1662
      %v1679 = vadd.f32 %v1583, %v1663
      %v1680 = vadd.f32 %v1584, %v1664
      %v1681 = vadd.f32 %v1585, %v1665
      %v1682 = vadd.f32 %v1586, %v1666
      %v1683 = vadd.f32 %v1587, %v1667
      %v1684 = vadd.f32 %v1588, %v1668
      %v1685 = vadd.f32 %v1589, %v1669
      %v1686 = vadd.f32 %v1590, %v1670
      %v1687 = vadd.f32 %v1591, %v1671
      %v1688 = vadd.f32 %v1592, %v1672
      %v1689 = vadd.f32 %v1593, %v1673
      %v1690 = vadd.f32 %v1594, %v1674
      %1691 = vst [vmem:[#allocation12] sm:$0xff] %v1675
      %1692 = vst [vmem:[#allocation12 + $0x8] sm:$0xff] %v1676
      %1693 = vst [vmem:[#allocation12 + $0x10] sm:$0xff] %v1677
      %1694 = vst [vmem:[#allocation12 + $0x18] sm:$0xff] %v1678
      %1695 = vst [vmem:[#allocation12 + $0x20] sm:$0xff] %v1679
      %1696 = vst [vmem:[#allocation12 + $0x28] sm:$0xff] %v1680
      %1697 = vst [vmem:[#allocation12 + $0x30] sm:$0xff] %v1681
      %1698 = vst [vmem:[#allocation12 + $0x38] sm:$0xff] %v1682
      %1699 = vst [vmem:[#allocation12 + $0x40] sm:$0xff] %v1683
      %1700 = vst [vmem:[#allocation12 + $0x48] sm:$0xff] %v1684
      %1701 = vst [vmem:[#allocation12 + $0x50] sm:$0xff] %v1685
      %1702 = vst [vmem:[#allocation12 + $0x58] sm:$0xff] %v1686
      %1703 = vst [vmem:[#allocation12 + $0x60] sm:$0xff] %v1687
      %1704 = vst [vmem:[#allocation12 + $0x68] sm:$0xff] %v1688
      %1705 = vst [vmem:[#allocation12 + $0x70] sm:$0xff] %v1689
      %1706 = vst [vmem:[#allocation12 + $0x78] sm:$0xff] %v1690
    $region45: #{tpu_custom_call.1} parent=1 // pred_fallthru
      _
    // Predicated region
    $region46: #{tpu_custom_call.1} parent=1 // pred_check
      _
    $region47: #{tpu_custom_call.1} parent=1 // pred_check_branch
      %1708 = sbr.rel (0) target = $region49
    $region48: #{tpu_custom_call.1} parent=1 // pred_region
      %1710 = vsyncadd [#allocation8], 0
      %s1711 = sshll.u32 [#allocation12], 4
      %s1712 = int_to_ptr.vmem [resolvable:$true] %s1711
      %s1713 = sshll.u32 %s7, 4
      %s1714 = int_to_ptr.hbm [resolvable:$true] %s1713
      %1719 = dma.vmem_to_hbm [thread:$0]  %s1712, 2048, %s1714, [#allocation8], 128, 128, 8
    $region49: #{tpu_custom_call.1} parent=1 // pred_fallthru
      _
    // Predicated region
    $region50: #{tpu_custom_call.1} parent=1 // pred_check
      _
    $region51: #{tpu_custom_call.1} parent=1 // pred_check_branch
      %1721 = sbr.rel (0) target = $region53
    $region52: #{tpu_custom_call.1} parent=1 // pred_region
      %1723 = dma.done [#allocation8], 2048
    $region53: #{tpu_custom_call.1} parent=1 // pred_fallthru
      _
    %1724 = vsyncpa [#allocation7], 1
    %1725 = vsyncpa [#allocation10], 1
    %1726 = vsyncpa [#allocation8], 1

</llo_original>
